<compile_context>
chip_gen: v7x
topology: tpu7x:2x2x1
jax: 0.10.0
libtpu: 0.0.40
codegen_flags: <defaults>
</compile_context>

<pallas_src>
import numpy as np
import jax
import jax.numpy as jnp
from jax import lax
from jax.experimental import pallas as pl
from jax.experimental.pallas import tpu as pltpu

# ---------------- problem sizes (small, consistent with the module) -----------
NUM_NODES = 576                 # 24x24 nodal grid (perfect square)
G = int(np.sqrt(NUM_NODES))     # input grid size (24)
G_OUT = 16                      # fixed 16x16 output grid
B = 2                           # batch
T = 6                           # polynomial terms per sample
C1, C2 = 8, 16                  # conv1 / conv2 channels
C3 = 3                          # fused conv3 heads: 1 (weights) + 2 (deltas)


def _margin(n_pix, min_margin):
    """Smallest margin >= min_margin making (n_pix + 2*margin) % 128 == 0."""
    ex = min_margin
    while (n_pix + 2 * ex) % 128 != 0:
        ex += 1
    return ex


# padded-flat geometry for the 24x24 grid (lane axis a multiple of 128)
WP = G + 2                      # 26
NP = WP * WP                    # 676
EX = _margin(NP, WP + 1)        # 46
NB = NP + 2 * EX                # 768

# padded-flat geometry for the pooled 16x16 grid
WP2 = G_OUT + 2                 # 18
NP2 = WP2 * WP2                 # 324
EX2 = _margin(NP2, WP2 + 1)     # 30
NB2 = NP2 + 2 * EX2             # 384
PW = G_OUT * G_OUT              # 256 pooled pixels

# tap offsets in flat-padded indexing, k = kh*3 + kw (PyTorch cross-correlation)
OFFS1 = [(kh - 1) * WP + (kw - 1) for kh in range(3) for kw in range(3)]
OFFS3 = [(kh - 1) * WP2 + (kw - 1) for kh in range(3) for kw in range(3)]


# ---------------- shared math helpers (used in-kernel and in the reference) ---
def _safe_pow(base, e):
    """x ** e matching torch semantics for integer-valued float exponents."""
    ab = jnp.abs(base)
    safe = jnp.where(ab > 0.0, ab, 1.0)
    p = jnp.exp(e * jnp.log(safe))
    p = jnp.where(ab > 0.0, p, jnp.where(e == 0.0, 1.0, 0.0))
    half = e * 0.5
    odd = (half - jnp.floor(half)) > 0.25
    return jnp.where((base < 0.0) & odd, -p, p)


def _softplus(x):
    # torch Softplus(beta=1, threshold=20)
    return jnp.where(x > 20.0, x, jnp.log(1.0 + jnp.exp(jnp.minimum(x, 20.0))))


def adaptive_pool_matrix(in_size, out_size):
    """Exact PyTorch adaptive_avg_pool1d averaging matrix (out_size, in_size)."""
    m = np.zeros((out_size, in_size), np.float32)
    for o in range(out_size):
        s = (o * in_size) // out_size
        e = -((-(o + 1) * in_size) // out_size)
        m[o, s:e] = 1.0 / (e - s)
    return m


def _shift(x, off, n):
    """Circular lane shift: result[..., p] = x[..., (p + off) % n]."""
    if off == 0:
        return x
    return pltpu.roll(x, (-off) % n, 1)


# ---------------- the Pallas kernel (one batch element per grid step) ---------
def _kernel(ex_ref, ey_ref, cf_ref, xs_ref, mr_ref, gx_ref, gy_ref,
            ps_ref, e3t_ref, w1_ref, b1_ref, w2_ref, b2_ref, w3_ref, b3_ref,
            out_ref):
    ex = ex_ref[0]                # (T, 1)
    ey = ey_ref[0]
    cf = cf_ref[0]
    xs = xs_ref[...]              # (1, G)   1-D node coordinates (ys == xs)
    m = mr_ref[...]               # (1, NB)  1.0 on real nodes, 0.0 on ring/margins

    # --- NodalPreprocessor ----------------------------------------------------
    # X depends only on the grid row and Y only on the grid column, so the pow
    # tables are tiny (T, G) -> the EUP (exp/log) works on ~1 vreg instead of 6.
    ax = cf * _safe_pow(xs, ex)                                 # (T, G) incl. coeff
    by = _safe_pow(xs, ey)                                      # (T, G)
    # expand to the padded-flat pixel layout with constant 0/1 MXU matmuls
    xtf = jnp.dot(ax, gx_ref[...], preferred_element_type=jnp.float32)   # (T, NB)
    ytf = jnp.dot(by, gy_ref[...], preferred_element_type=jnp.float32)   # (T, NB)
    nodal = jnp.sum(xtf * ytf, axis=0, keepdims=True)           # (1, NB)

    masked = jnp.where(m > 0.5, nodal, -jnp.inf)
    maxv = jnp.max(masked, axis=1, keepdims=True)               # (1, 1)
    a0 = (nodal / (maxv + 1e-6)) * m                            # zero off real nodes

    # --- conv1: 1 -> 8 channels, 3x3, pad 1, ReLU (9 rolled broadcast-FMAs) ---
    acc1 = None
    for k, off in enumerate(OFFS1):
        t = w1_ref[k] * _shift(a0, off, NB)                     # (C1,1)*(1,NB)
        acc1 = t if acc1 is None else acc1 + t
    h1 = jnp.maximum(acc1 + b1_ref[...], 0.0) * m               # (C1, NB)

    # --- conv2: 8 -> 16 channels, fused im2col matmul (K = 72) ----------------
    slab2 = jnp.concatenate([_shift(h1, off, NB) for off in OFFS1], axis=0)   # (72, NB)
    h2 = jnp.dot(w2_ref[...], slab2, preferred_element_type=jnp.float32)
    h2 = jnp.maximum(h2 + b2_ref[...], 0.0) * m                 # (C2, NB)

    # --- adaptive_avg_pool2d to 16x16 + scatter into the padded 18x18 flat
    #     layout, fused into a single constant matmul --------------------------
    p2 = jnp.dot(h2, ps_ref[...], preferred_element_type=jnp.float32)         # (C2, NB2)

    # --- conv3 (weights + delta heads fused): 16 -> 3, im2col (K = 144) -------
    slab3 = jnp.concatenate([_shift(p2, off, NB2) for off in OFFS3], axis=0)  # (144, NB2)
    c3 = jnp.dot(w3_ref[...], slab3, preferred_element_type=jnp.float32)      # (3, NB2)

    # gather the 16x16 interior -> lane-dense (3, 256), add bias, activations
    g = jnp.dot(c3, e3t_ref[...], preferred_element_type=jnp.float32) + b3_ref[...]
    row = lax.broadcasted_iota(jnp.int32, (C3, PW), 0)
    out_ref[0] = jnp.where(row == 0, _softplus(g), jnp.tanh(g))  # (3, PW)


# ---------------- constants (coords, mask, expansion / pool / gather matrices) -
def make_constants():
    xs = np.linspace(-1.0, 1.0, G, dtype=np.float32)
    ii, jj = np.meshgrid(np.arange(G), np.arange(G), indexing="ij")
    pos = (EX + (ii + 1) * WP + (jj + 1)).reshape(-1)      # buffer idx of node (ii,jj)

    xsr = xs.reshape(1, G)
    mr = np.zeros((1, NB), np.float32); mr[0, pos] = 1.0

    # row/col expansion matrices: gx[i, p] = 1 if buffer pos p lies in grid row i,
    # gy[j, p] = 1 if buffer pos p lies in grid col j (zero on ring / margins).
    gx = np.zeros((G, NB), np.float32); gx[ii.reshape(-1), pos] = 1.0
    gy = np.zeros((G, NB), np.float32); gy[jj.reshape(-1), pos] = 1.0

    # fused: exact adaptive_avg_pool2d (24->16) followed by scatter into the
    # padded-flat 18x18 layout (zeros on ring / margins).
    ph = adaptive_pool_matrix(G, G_OUT)                    # (16, 24)
    kron = np.kron(ph, ph).astype(np.float32)              # (256, 576)
    oi, oj = np.meshgrid(np.arange(G_OUT), np.arange(G_OUT), indexing="ij")
    pos2 = (EX2 + (oi + 1) * WP2 + (oj + 1)).reshape(-1)   # buffer idx of out pixel
    o_flat = (oi * G_OUT + oj).reshape(-1)

    ps = np.zeros((NB, NB2), np.float32)
    ps[np.ix_(pos, pos2)] = kron.T                         # (NB, NB2)

    e3t = np.zeros((NB2, PW), np.float32)
    e3t[pos2, o_flat] = 1.0                                # interior gather (NB2, 256)

    return tuple(jnp.asarray(a) for a in (xsr, mr, gx, gy, ps, e3t))


def init_params(key):
    ks = jax.random.split(key, 8)
    return dict(
        w1=jax.random.normal(ks[0], (C1, 1, 3, 3), jnp.float32) * 0.2,
        b1=jax.random.normal(ks[1], (C1,), jnp.float32) * 0.1,
        w2=jax.random.normal(ks[2], (C2, C1, 3, 3), jnp.float32) * 0.1,
        b2=jax.random.normal(ks[3], (C2,), jnp.float32) * 0.1,
        w3w=jax.random.normal(ks[4], (1, C2, 3, 3), jnp.float32) * 0.08,
        b3w=jax.random.normal(ks[5], (1,), jnp.float32) * 0.1,
        w3d=jax.random.normal(ks[6], (2, C2, 3, 3), jnp.float32) * 0.08,
        b3d=jax.random.normal(ks[7], (2,), jnp.float32) * 0.1,
    )


# ---------------- wrapper: pallas_call ----------------------------------------
def cnn_forward_pallas(exp_x, exp_y, coeff, params, consts):
    xsr, mr, gx, gy, ps, e3t = consts

    # conv1 taps, tap-major: (9, C1, 1) so w1_ref[k] -> (C1, 1)
    w1 = jnp.transpose(params["w1"].reshape(C1, 9), (1, 0)).reshape(9, C1, 1)
    # fused im2col weights: row order of the slabs is (tap k, in-channel)
    w2 = jnp.transpose(params["w2"], (0, 2, 3, 1)).reshape(C2, 9 * C1)
    w3f = jnp.concatenate([params["w3w"], params["w3d"]], axis=0)      # (3, C2, 3, 3)
    w3 = jnp.transpose(w3f, (0, 2, 3, 1)).reshape(C3, 9 * C2)
    b1 = params["b1"].reshape(C1, 1)
    b2 = params["b2"].reshape(C2, 1)
    b3 = jnp.concatenate([params["b3w"], params["b3d"]]).reshape(C3, 1)

    ex = exp_x.reshape(B, T, 1).astype(jnp.float32)
    ey = exp_y.reshape(B, T, 1).astype(jnp.float32)
    cf = coeff.reshape(B, T, 1).astype(jnp.float32)

    def const_spec(shape):
        return pl.BlockSpec(shape, lambda b, _n=len(shape): (0,) * _n)

    batch_spec = pl.BlockSpec((1, T, 1), lambda b: (b, 0, 0))

    out = pl.pallas_call(
        _kernel,
        out_shape=jax.ShapeDtypeStruct((B, C3, PW), jnp.float32),
        grid_spec=pltpu.PrefetchScalarGridSpec(
            num_scalar_prefetch=0,
            grid=(B,),
            in_specs=[batch_spec, batch_spec, batch_spec,
                      const_spec((1, G)), const_spec((1, NB)),
                      const_spec((G, NB)), const_spec((G, NB)),
                      const_spec((NB, NB2)), const_spec((NB2, PW)),
                      const_spec((9, C1, 1)), const_spec((C1, 1)),
                      const_spec((C2, 9 * C1)), const_spec((C2, 1)),
                      const_spec((C3, 9 * C2)), const_spec((C3, 1))],
            out_specs=pl.BlockSpec((1, C3, PW), lambda b: (b, 0, 0))),
        compiler_params=pltpu.CompilerParams(
            dimension_semantics=("parallel",),          # v7x: one batch elt per TC
            vmem_limit_bytes=16 * 1024 * 1024),
    )(ex, ey, cf, xsr, mr, gx, gy, ps, e3t, w1, b1, w2, b2, w3, b3)

    # (B, C, 256) is already NCHW-flattened: plain reshape, no transpose needed.
    weight_out = out[:, 0:1, :].reshape(B, 1, G_OUT, G_OUT)
    delta_out = out[:, 1:3, :].reshape(B, 2, G_OUT, G_OUT)
    return weight_out, delta_out


# ---------------- pure-JAX reference (mirrors the PyTorch forward) ------------
def _conv2d_nchw(x, w, b):
    y = lax.conv_general_dilated(x, w, (1, 1), ((1, 1), (1, 1)),
                                 dimension_numbers=("NCHW", "OIHW", "NCHW"))
    return y + b.reshape(1, -1, 1, 1)


def cnn_forward_reference(exp_x, exp_y, coeff, params):
    xs = jnp.linspace(-1.0, 1.0, G, dtype=jnp.float32)
    Xg, Yg = jnp.meshgrid(xs, xs, indexing="ij")
    Xf, Yf = Xg.reshape(-1), Yg.reshape(-1)
    xt = _safe_pow(Xf[None, :, None], exp_x[:, None, :])
    yt = _safe_pow(Yf[None, :, None], exp_y[:, None, :])
    nodal = jnp.sum(coeff[:, None, :] * xt * yt, axis=2)
    nodal = nodal / (jnp.max(nodal, axis=1, keepdims=True) + 1e-6)
    img = nodal.reshape(B, 1, G, G)
    h1 = jax.nn.relu(_conv2d_nchw(img, params["w1"], params["b1"]))
    h2 = jax.nn.relu(_conv2d_nchw(h1, params["w2"], params["b2"]))
    ph = jnp.asarray(adaptive_pool_matrix(G, G_OUT))
    pooled = jnp.einsum("oi,bcij,pj->bcop", ph, h2, ph)
    wout = _softplus(_conv2d_nchw(pooled, params["w3w"], params["b3w"]))
    dout = jnp.tanh(_conv2d_nchw(pooled, params["w3d"], params["b3d"]))
    return wout, dout


# ---------------- main ---------------------------------------------------------
if __name__ == "__main__":
    key = jax.random.PRNGKey(0)
    k_par, k_ex, k_ey, k_cf = jax.random.split(key, 4)
    params = init_params(k_par)
    exp_x = jax.random.randint(k_ex, (B, T), 0, 4).astype(jnp.float32)
    exp_y = jax.random.randint(k_ey, (B, T), 0, 4).astype(jnp.float32)
    coeff = jax.random.normal(k_cf, (B, T), jnp.float32)

    consts = make_constants()
    fwd = jax.jit(cnn_forward_pallas)
    w_out, d_out = fwd(exp_x, exp_y, coeff, params, consts)
    jax.block_until_ready((w_out, d_out))

    assert w_out.shape == (B, 1, G_OUT, G_OUT)
    assert d_out.shape == (B, 2, G_OUT, G_OUT)

    w_ref, d_ref = cnn_forward_reference(exp_x, exp_y, coeff, params)
    np.testing.assert_allclose(np.asarray(w_out), np.asarray(w_ref), rtol=2e-2, atol=2e-2)
    np.testing.assert_allclose(np.asarray(d_out), np.asarray(d_ref), rtol=2e-2, atol=2e-2)

    print("KERNEL_OK")
</pallas_src>

<mosaic_0001>
module attributes {stable_mosaic.version = 11 : i64} {
  func.func @_kernel(%arg0: i32, %arg1: memref<1x6x1xf32, #tpu.memory_space<vmem>>, %arg2: memref<1x6x1xf32, #tpu.memory_space<vmem>>, %arg3: memref<1x6x1xf32, #tpu.memory_space<vmem>>, %arg4: memref<1x24xf32, #tpu.memory_space<vmem>>, %arg5: memref<1x768xf32, #tpu.memory_space<vmem>>, %arg6: memref<24x768xf32, #tpu.memory_space<vmem>>, %arg7: memref<24x768xf32, #tpu.memory_space<vmem>>, %arg8: memref<768x384xf32, #tpu.memory_space<vmem>>, %arg9: memref<384x256xf32, #tpu.memory_space<vmem>>, %arg10: memref<9x8x1xf32, #tpu.memory_space<vmem>>, %arg11: memref<8x1xf32, #tpu.memory_space<vmem>>, %arg12: memref<16x72xf32, #tpu.memory_space<vmem>>, %arg13: memref<16x1xf32, #tpu.memory_space<vmem>>, %arg14: memref<3x144xf32, #tpu.memory_space<vmem>>, %arg15: memref<3x1xf32, #tpu.memory_space<vmem>>, %arg16: memref<1x3x256xf32, #tpu.memory_space<vmem>>) attributes {dimension_semantics = [#tpu.dimension_semantics<parallel>], iteration_bounds = array<i64: 2>, scalar_prefetch = 0 : i64, scratch_operands = 0 : i64, tpu.core_type = #tpu.core_type<tc>, window_params = [{transform_indices = @transform_0, window_bounds = array<i64: 1, 6, 1>}, {transform_indices = @transform_1, window_bounds = array<i64: 1, 6, 1>}, {transform_indices = @transform_2, window_bounds = array<i64: 1, 6, 1>}, {pipeline_mode = #tpu.pipeline_mode<synchronous>, transform_indices = @transform_3, window_bounds = array<i64: 1, 24>}, {pipeline_mode = #tpu.pipeline_mode<synchronous>, transform_indices = @transform_4, window_bounds = array<i64: 1, 768>}, {pipeline_mode = #tpu.pipeline_mode<synchronous>, transform_indices = @transform_5, window_bounds = array<i64: 24, 768>}, {pipeline_mode = #tpu.pipeline_mode<synchronous>, transform_indices = @transform_6, window_bounds = array<i64: 24, 768>}, {pipeline_mode = #tpu.pipeline_mode<synchronous>, transform_indices = @transform_7, window_bounds = array<i64: 768, 384>}, {pipeline_mode = #tpu.pipeline_mode<synchronous>, transform_indices = @transform_8, window_bounds = array<i64: 384, 256>}, {pipeline_mode = #tpu.pipeline_mode<synchronous>, transform_indices = @transform_9, window_bounds = array<i64: 9, 8, 1>}, {pipeline_mode = #tpu.pipeline_mode<synchronous>, transform_indices = @transform_10, window_bounds = array<i64: 8, 1>}, {pipeline_mode = #tpu.pipeline_mode<synchronous>, transform_indices = @transform_11, window_bounds = array<i64: 16, 72>}, {pipeline_mode = #tpu.pipeline_mode<synchronous>, transform_indices = @transform_12, window_bounds = array<i64: 16, 1>}, {pipeline_mode = #tpu.pipeline_mode<synchronous>, transform_indices = @transform_13, window_bounds = array<i64: 3, 144>}, {pipeline_mode = #tpu.pipeline_mode<synchronous>, transform_indices = @transform_14, window_bounds = array<i64: 3, 1>}, {transform_indices = @transform_15, window_bounds = array<i64: 1, 3, 256>}]} {
    %c0 = arith.constant 0 : index
    %c0_0 = arith.constant 0 : index
    %c0_1 = arith.constant 0 : index
    %0 = vector.load %arg1[%c0, %c0_0, %c0_1] : memref<1x6x1xf32, #tpu.memory_space<vmem>>, vector<1x6x1xf32>
    %1 = vector.shape_cast %0 : vector<1x6x1xf32> to vector<6x1xf32>
    %c0_2 = arith.constant 0 : index
    %c0_3 = arith.constant 0 : index
    %c0_4 = arith.constant 0 : index
    %2 = vector.load %arg2[%c0_2, %c0_3, %c0_4] : memref<1x6x1xf32, #tpu.memory_space<vmem>>, vector<1x6x1xf32>
    %3 = vector.shape_cast %2 : vector<1x6x1xf32> to vector<6x1xf32>
    %c0_5 = arith.constant 0 : index
    %c0_6 = arith.constant 0 : index
    %c0_7 = arith.constant 0 : index
    %4 = vector.load %arg3[%c0_5, %c0_6, %c0_7] : memref<1x6x1xf32, #tpu.memory_space<vmem>>, vector<1x6x1xf32>
    %5 = vector.shape_cast %4 : vector<1x6x1xf32> to vector<6x1xf32>
    %c0_8 = arith.constant 0 : index
    %c0_9 = arith.constant 0 : index
    %6 = vector.load %arg4[%c0_8, %c0_9] : memref<1x24xf32, #tpu.memory_space<vmem>>, vector<1x24xf32>
    %c0_10 = arith.constant 0 : index
    %c0_11 = arith.constant 0 : index
    %7 = vector.load %arg5[%c0_10, %c0_11] : memref<1x768xf32, #tpu.memory_space<vmem>>, vector<1x768xf32>
    %8 = math.absf %6 : vector<1x24xf32>
    %cst = arith.constant 0.000000e+00 : f32
    %9 = vector.broadcast %cst : f32 to vector<1x24xf32>
    %10 = arith.cmpf ogt, %8, %9 : vector<1x24xf32>
    %cst_12 = arith.constant 1.000000e+00 : f32
    %11 = vector.broadcast %cst_12 : f32 to vector<1x24xf32>
    %12 = arith.select %10, %8, %11 : vector<1x24xi1>, vector<1x24xf32>
    %13 = math.log %12 : vector<1x24xf32>
    %14 = vector.broadcast %1 : vector<6x1xf32> to vector<6x24xf32>
    %15 = vector.broadcast %13 : vector<1x24xf32> to vector<6x24xf32>
    %16 = arith.mulf %14, %15 : vector<6x24xf32>
    %17 = math.exp %16 : vector<6x24xf32>
    %cst_13 = arith.constant 0.000000e+00 : f32
    %18 = vector.broadcast %cst_13 : f32 to vector<1x24xf32>
    %19 = arith.cmpf ogt, %8, %18 : vector<1x24xf32>
    %cst_14 = arith.constant 0.000000e+00 : f32
    %20 = vector.broadcast %cst_14 : f32 to vector<6x1xf32>
    %21 = arith.cmpf oeq, %1, %20 : vector<6x1xf32>
    %cst_15 = arith.constant 1.000000e+00 : f32
    %cst_16 = arith.constant 0.000000e+00 : f32
    %22 = vector.broadcast %cst_15 : f32 to vector<6x1xf32>
    %23 = vector.broadcast %cst_16 : f32 to vector<6x1xf32>
    %24 = arith.select %21, %22, %23 : vector<6x1xi1>, vector<6x1xf32>
    %25 = vector.shape_cast %19 : vector<1x24xi1> to vector<1x24xi1>
    %26 = vector.broadcast %25 : vector<1x24xi1> to vector<6x24xi1>
    %27 = vector.shape_cast %24 : vector<6x1xf32> to vector<6x1xf32>
    %28 = vector.broadcast %27 : vector<6x1xf32> to vector<6x24xf32>
    %29 = arith.select %26, %17, %28 : vector<6x24xi1>, vector<6x24xf32>
    %cst_17 = arith.constant 5.000000e-01 : f32
    %30 = vector.broadcast %cst_17 : f32 to vector<6x1xf32>
    %31 = arith.mulf %1, %30 : vector<6x1xf32>
    %32 = math.floor %31 : vector<6x1xf32>
    %33 = arith.subf %31, %32 : vector<6x1xf32>
    %cst_18 = arith.constant 2.500000e-01 : f32
    %34 = vector.broadcast %cst_18 : f32 to vector<6x1xf32>
    %35 = arith.cmpf ogt, %33, %34 : vector<6x1xf32>
    %cst_19 = arith.constant 0.000000e+00 : f32
    %36 = vector.broadcast %cst_19 : f32 to vector<1x24xf32>
    %37 = arith.cmpf olt, %6, %36 : vector<1x24xf32>
    %38 = vector.broadcast %37 : vector<1x24xi1> to vector<6x24xi1>
    %39 = vector.broadcast %35 : vector<6x1xi1> to vector<6x24xi1>
    %40 = arith.andi %38, %39 : vector<6x24xi1>
    %cst_20 = arith.constant 0.000000e+00 : f32
    %41 = vector.broadcast %cst_20 : f32 to vector<6x24xf32>
    %42 = arith.subf %41, %29 : vector<6x24xf32>
    %43 = arith.select %40, %42, %29 : vector<6x24xi1>, vector<6x24xf32>
    %44 = vector.broadcast %5 : vector<6x1xf32> to vector<6x24xf32>
    %45 = arith.mulf %44, %43 : vector<6x24xf32>
    %46 = math.absf %6 : vector<1x24xf32>
    %cst_21 = arith.constant 0.000000e+00 : f32
    %47 = vector.broadcast %cst_21 : f32 to vector<1x24xf32>
    %48 = arith.cmpf ogt, %46, %47 : vector<1x24xf32>
    %cst_22 = arith.constant 1.000000e+00 : f32
    %49 = vector.broadcast %cst_22 : f32 to vector<1x24xf32>
    %50 = arith.select %48, %46, %49 : vector<1x24xi1>, vector<1x24xf32>
    %51 = math.log %50 : vector<1x24xf32>
    %52 = vector.broadcast %3 : vector<6x1xf32> to vector<6x24xf32>
    %53 = vector.broadcast %51 : vector<1x24xf32> to vector<6x24xf32>
    %54 = arith.mulf %52, %53 : vector<6x24xf32>
    %55 = math.exp %54 : vector<6x24xf32>
    %cst_23 = arith.constant 0.000000e+00 : f32
    %56 = vector.broadcast %cst_23 : f32 to vector<1x24xf32>
    %57 = arith.cmpf ogt, %46, %56 : vector<1x24xf32>
    %cst_24 = arith.constant 0.000000e+00 : f32
    %58 = vector.broadcast %cst_24 : f32 to vector<6x1xf32>
    %59 = arith.cmpf oeq, %3, %58 : vector<6x1xf32>
    %cst_25 = arith.constant 1.000000e+00 : f32
    %cst_26 = arith.constant 0.000000e+00 : f32
    %60 = vector.broadcast %cst_25 : f32 to vector<6x1xf32>
    %61 = vector.broadcast %cst_26 : f32 to vector<6x1xf32>
    %62 = arith.select %59, %60, %61 : vector<6x1xi1>, vector<6x1xf32>
    %63 = vector.shape_cast %57 : vector<1x24xi1> to vector<1x24xi1>
    %64 = vector.broadcast %63 : vector<1x24xi1> to vector<6x24xi1>
    %65 = vector.shape_cast %62 : vector<6x1xf32> to vector<6x1xf32>
    %66 = vector.broadcast %65 : vector<6x1xf32> to vector<6x24xf32>
    %67 = arith.select %64, %55, %66 : vector<6x24xi1>, vector<6x24xf32>
    %cst_27 = arith.constant 5.000000e-01 : f32
    %68 = vector.broadcast %cst_27 : f32 to vector<6x1xf32>
    %69 = arith.mulf %3, %68 : vector<6x1xf32>
    %70 = math.floor %69 : vector<6x1xf32>
    %71 = arith.subf %69, %70 : vector<6x1xf32>
    %cst_28 = arith.constant 2.500000e-01 : f32
    %72 = vector.broadcast %cst_28 : f32 to vector<6x1xf32>
    %73 = arith.cmpf ogt, %71, %72 : vector<6x1xf32>
    %cst_29 = arith.constant 0.000000e+00 : f32
    %74 = vector.broadcast %cst_29 : f32 to vector<1x24xf32>
    %75 = arith.cmpf olt, %6, %74 : vector<1x24xf32>
    %76 = vector.broadcast %75 : vector<1x24xi1> to vector<6x24xi1>
    %77 = vector.broadcast %73 : vector<6x1xi1> to vector<6x24xi1>
    %78 = arith.andi %76, %77 : vector<6x24xi1>
    %cst_30 = arith.constant 0.000000e+00 : f32
    %79 = vector.broadcast %cst_30 : f32 to vector<6x24xf32>
    %80 = arith.subf %79, %67 : vector<6x24xf32>
    %81 = arith.select %78, %80, %67 : vector<6x24xi1>, vector<6x24xf32>
    %c0_31 = arith.constant 0 : index
    %c0_32 = arith.constant 0 : index
    %82 = vector.load %arg6[%c0_31, %c0_32] : memref<24x768xf32, #tpu.memory_space<vmem>>, vector<24x768xf32>
    %cst_33 = arith.constant dense<0.000000e+00> : vector<6x768xf32>
    %83 = tpu.matmul %45, %82, %cst_33 {dimension_numbers = #tpu.dot_dimension_numbers<[1], [0], [0], [1], [0, 0, 1, 1], [], []>} : vector<6x24xf32>, vector<24x768xf32>, vector<6x768xf32> -> vector<6x768xf32>
    %c0_34 = arith.constant 0 : index
    %c0_35 = arith.constant 0 : index
    %84 = vector.load %arg7[%c0_34, %c0_35] : memref<24x768xf32, #tpu.memory_space<vmem>>, vector<24x768xf32>
    %cst_36 = arith.constant dense<0.000000e+00> : vector<6x768xf32>
    %85 = tpu.matmul %81, %84, %cst_36 {dimension_numbers = #tpu.dot_dimension_numbers<[1], [0], [0], [1], [0, 0, 1, 1], [], []>} : vector<6x24xf32>, vector<24x768xf32>, vector<6x768xf32> -> vector<6x768xf32>
    %86 = arith.mulf %83, %85 : vector<6x768xf32>
    %cst_37 = arith.constant dense<0.000000e+00> : vector<768xf32>
    %87 = vector.multi_reduction <add>, %86, %cst_37 [0] : vector<6x768xf32> to vector<768xf32>
    %88 = vector.shape_cast %87 : vector<768xf32> to vector<1x768xf32>
    %cst_38 = arith.constant 5.000000e-01 : f32
    %89 = vector.broadcast %cst_38 : f32 to vector<1x768xf32>
    %90 = arith.cmpf ogt, %7, %89 : vector<1x768xf32>
    %cst_39 = arith.constant 0xFF800000 : f32
    %91 = vector.broadcast %cst_39 : f32 to vector<1x768xf32>
    %92 = arith.select %90, %88, %91 : vector<1x768xi1>, vector<1x768xf32>
    %cst_40 = arith.constant dense<0xFF800000> : vector<1xf32>
    %93 = vector.multi_reduction <maximumf>, %92, %cst_40 [1] : vector<1x768xf32> to vector<1xf32>
    %94 = vector.shape_cast %93 : vector<1xf32> to vector<1x1xf32>
    %cst_41 = arith.constant 9.99999997E-7 : f32
    %95 = vector.broadcast %cst_41 : f32 to vector<1x1xf32>
    %96 = arith.addf %94, %95 : vector<1x1xf32>
    %97 = vector.broadcast %96 : vector<1x1xf32> to vector<1x768xf32>
    %98 = arith.divf %88, %97 : vector<1x768xf32>
    %99 = arith.mulf %98, %7 : vector<1x768xf32>
    %c0_42 = arith.constant 0 : index
    %c0_43 = arith.constant 0 : index
    %c0_44 = arith.constant 0 : index
    %100 = vector.load %arg10[%c0_42, %c0_43, %c0_44] : memref<9x8x1xf32, #tpu.memory_space<vmem>>, vector<1x8x1xf32>
    %101 = vector.shape_cast %100 : vector<1x8x1xf32> to vector<8x1xf32>
    %c27_i32 = arith.constant 27 : i32
    %102 = tpu.dynamic_rotate %99 by %c27_i32 dim 1 : vector<1x768xf32>, i32 -> vector<1x768xf32>
    %103 = vector.broadcast %101 : vector<8x1xf32> to vector<8x768xf32>
    %104 = vector.broadcast %102 : vector<1x768xf32> to vector<8x768xf32>
    %105 = arith.mulf %103, %104 : vector<8x768xf32>
    %c1 = arith.constant 1 : index
    %c0_45 = arith.constant 0 : index
    %c0_46 = arith.constant 0 : index
    %106 = vector.load %arg10[%c1, %c0_45, %c0_46] : memref<9x8x1xf32, #tpu.memory_space<vmem>>, vector<1x8x1xf32>
    %107 = vector.shape_cast %106 : vector<1x8x1xf32> to vector<8x1xf32>
    %c26_i32 = arith.constant 26 : i32
    %108 = tpu.dynamic_rotate %99 by %c26_i32 dim 1 : vector<1x768xf32>, i32 -> vector<1x768xf32>
    %109 = vector.broadcast %107 : vector<8x1xf32> to vector<8x768xf32>
    %110 = vector.broadcast %108 : vector<1x768xf32> to vector<8x768xf32>
    %111 = arith.mulf %109, %110 : vector<8x768xf32>
    %112 = arith.addf %105, %111 : vector<8x768xf32>
    %c2 = arith.constant 2 : index
    %c0_47 = arith.constant 0 : index
    %c0_48 = arith.constant 0 : index
    %113 = vector.load %arg10[%c2, %c0_47, %c0_48] : memref<9x8x1xf32, #tpu.memory_space<vmem>>, vector<1x8x1xf32>
    %114 = vector.shape_cast %113 : vector<1x8x1xf32> to vector<8x1xf32>
    %c25_i32 = arith.constant 25 : i32
    %115 = tpu.dynamic_rotate %99 by %c25_i32 dim 1 : vector<1x768xf32>, i32 -> vector<1x768xf32>
    %116 = vector.broadcast %114 : vector<8x1xf32> to vector<8x768xf32>
    %117 = vector.broadcast %115 : vector<1x768xf32> to vector<8x768xf32>
    %118 = arith.mulf %116, %117 : vector<8x768xf32>
    %119 = arith.addf %112, %118 : vector<8x768xf32>
    %c3 = arith.constant 3 : index
    %c0_49 = arith.constant 0 : index
    %c0_50 = arith.constant 0 : index
    %120 = vector.load %arg10[%c3, %c0_49, %c0_50] : memref<9x8x1xf32, #tpu.memory_space<vmem>>, vector<1x8x1xf32>
    %121 = vector.shape_cast %120 : vector<1x8x1xf32> to vector<8x1xf32>
    %c1_i32 = arith.constant 1 : i32
    %122 = tpu.dynamic_rotate %99 by %c1_i32 dim 1 : vector<1x768xf32>, i32 -> vector<1x768xf32>
    %123 = vector.broadcast %121 : vector<8x1xf32> to vector<8x768xf32>
    %124 = vector.broadcast %122 : vector<1x768xf32> to vector<8x768xf32>
    %125 = arith.mulf %123, %124 : vector<8x768xf32>
    %126 = arith.addf %119, %125 : vector<8x768xf32>
    %c4 = arith.constant 4 : index
    %c0_51 = arith.constant 0 : index
    %c0_52 = arith.constant 0 : index
    %127 = vector.load %arg10[%c4, %c0_51, %c0_52] : memref<9x8x1xf32, #tpu.memory_space<vmem>>, vector<1x8x1xf32>
    %128 = vector.shape_cast %127 : vector<1x8x1xf32> to vector<8x1xf32>
    %129 = vector.broadcast %128 : vector<8x1xf32> to vector<8x768xf32>
    %130 = vector.broadcast %99 : vector<1x768xf32> to vector<8x768xf32>
    %131 = arith.mulf %129, %130 : vector<8x768xf32>
    %132 = arith.addf %126, %131 : vector<8x768xf32>
    %c5 = arith.constant 5 : index
    %c0_53 = arith.constant 0 : index
    %c0_54 = arith.constant 0 : index
    %133 = vector.load %arg10[%c5, %c0_53, %c0_54] : memref<9x8x1xf32, #tpu.memory_space<vmem>>, vector<1x8x1xf32>
    %134 = vector.shape_cast %133 : vector<1x8x1xf32> to vector<8x1xf32>
    %c767_i32 = arith.constant 767 : i32
    %135 = tpu.dynamic_rotate %99 by %c767_i32 dim 1 : vector<1x768xf32>, i32 -> vector<1x768xf32>
    %136 = vector.broadcast %134 : vector<8x1xf32> to vector<8x768xf32>
    %137 = vector.broadcast %135 : vector<1x768xf32> to vector<8x768xf32>
    %138 = arith.mulf %136, %137 : vector<8x768xf32>
    %139 = arith.addf %132, %138 : vector<8x768xf32>
    %c6 = arith.constant 6 : index
    %c0_55 = arith.constant 0 : index
    %c0_56 = arith.constant 0 : index
    %140 = vector.load %arg10[%c6, %c0_55, %c0_56] : memref<9x8x1xf32, #tpu.memory_space<vmem>>, vector<1x8x1xf32>
    %141 = vector.shape_cast %140 : vector<1x8x1xf32> to vector<8x1xf32>
    %c743_i32 = arith.constant 743 : i32
    %142 = tpu.dynamic_rotate %99 by %c743_i32 dim 1 : vector<1x768xf32>, i32 -> vector<1x768xf32>
    %143 = vector.broadcast %141 : vector<8x1xf32> to vector<8x768xf32>
    %144 = vector.broadcast %142 : vector<1x768xf32> to vector<8x768xf32>
    %145 = arith.mulf %143, %144 : vector<8x768xf32>
    %146 = arith.addf %139, %145 : vector<8x768xf32>
    %c7 = arith.constant 7 : index
    %c0_57 = arith.constant 0 : index
    %c0_58 = arith.constant 0 : index
    %147 = vector.load %arg10[%c7, %c0_57, %c0_58] : memref<9x8x1xf32, #tpu.memory_space<vmem>>, vector<1x8x1xf32>
    %148 = vector.shape_cast %147 : vector<1x8x1xf32> to vector<8x1xf32>
    %c742_i32 = arith.constant 742 : i32
    %149 = tpu.dynamic_rotate %99 by %c742_i32 dim 1 : vector<1x768xf32>, i32 -> vector<1x768xf32>
    %150 = vector.broadcast %148 : vector<8x1xf32> to vector<8x768xf32>
    %151 = vector.broadcast %149 : vector<1x768xf32> to vector<8x768xf32>
    %152 = arith.mulf %150, %151 : vector<8x768xf32>
    %153 = arith.addf %146, %152 : vector<8x768xf32>
    %c8 = arith.constant 8 : index
    %c0_59 = arith.constant 0 : index
    %c0_60 = arith.constant 0 : index
    %154 = vector.load %arg10[%c8, %c0_59, %c0_60] : memref<9x8x1xf32, #tpu.memory_space<vmem>>, vector<1x8x1xf32>
    %155 = vector.shape_cast %154 : vector<1x8x1xf32> to vector<8x1xf32>
    %c741_i32 = arith.constant 741 : i32
    %156 = tpu.dynamic_rotate %99 by %c741_i32 dim 1 : vector<1x768xf32>, i32 -> vector<1x768xf32>
    %157 = vector.broadcast %155 : vector<8x1xf32> to vector<8x768xf32>
    %158 = vector.broadcast %156 : vector<1x768xf32> to vector<8x768xf32>
    %159 = arith.mulf %157, %158 : vector<8x768xf32>
    %160 = arith.addf %153, %159 : vector<8x768xf32>
    %c0_61 = arith.constant 0 : index
    %c0_62 = arith.constant 0 : index
    %161 = vector.load %arg11[%c0_61, %c0_62] : memref<8x1xf32, #tpu.memory_space<vmem>>, vector<8x1xf32>
    %162 = vector.broadcast %161 : vector<8x1xf32> to vector<8x768xf32>
    %163 = arith.addf %160, %162 : vector<8x768xf32>
    %cst_63 = arith.constant 0.000000e+00 : f32
    %164 = vector.broadcast %cst_63 : f32 to vector<8x768xf32>
    %165 = arith.maximumf %163, %164 : vector<8x768xf32>
    %166 = vector.broadcast %7 : vector<1x768xf32> to vector<8x768xf32>
    %167 = arith.mulf %165, %166 : vector<8x768xf32>
    %c27_i32_64 = arith.constant 27 : i32
    %168 = tpu.dynamic_rotate %167 by %c27_i32_64 dim 1 : vector<8x768xf32>, i32 -> vector<8x768xf32>
    %c26_i32_65 = arith.constant 26 : i32
    %169 = tpu.dynamic_rotate %167 by %c26_i32_65 dim 1 : vector<8x768xf32>, i32 -> vector<8x768xf32>
    %c25_i32_66 = arith.constant 25 : i32
    %170 = tpu.dynamic_rotate %167 by %c25_i32_66 dim 1 : vector<8x768xf32>, i32 -> vector<8x768xf32>
    %c1_i32_67 = arith.constant 1 : i32
    %171 = tpu.dynamic_rotate %167 by %c1_i32_67 dim 1 : vector<8x768xf32>, i32 -> vector<8x768xf32>
    %c767_i32_68 = arith.constant 767 : i32
    %172 = tpu.dynamic_rotate %167 by %c767_i32_68 dim 1 : vector<8x768xf32>, i32 -> vector<8x768xf32>
    %c743_i32_69 = arith.constant 743 : i32
    %173 = tpu.dynamic_rotate %167 by %c743_i32_69 dim 1 : vector<8x768xf32>, i32 -> vector<8x768xf32>
    %c742_i32_70 = arith.constant 742 : i32
    %174 = tpu.dynamic_rotate %167 by %c742_i32_70 dim 1 : vector<8x768xf32>, i32 -> vector<8x768xf32>
    %c741_i32_71 = arith.constant 741 : i32
    %175 = tpu.dynamic_rotate %167 by %c741_i32_71 dim 1 : vector<8x768xf32>, i32 -> vector<8x768xf32>
    %176 = tpu.concatenate %168, %169, %170, %171, %167, %172, %173, %174, %175 in 0 : vector<8x768xf32>, vector<8x768xf32>, vector<8x768xf32>, vector<8x768xf32>, vector<8x768xf32>, vector<8x768xf32>, vector<8x768xf32>, vector<8x768xf32>, vector<8x768xf32> -> vector<72x768xf32>
    %c0_72 = arith.constant 0 : index
    %c0_73 = arith.constant 0 : index
    %177 = vector.load %arg12[%c0_72, %c0_73] : memref<16x72xf32, #tpu.memory_space<vmem>>, vector<16x72xf32>
    %cst_74 = arith.constant dense<0.000000e+00> : vector<16x768xf32>
    %178 = tpu.matmul %177, %176, %cst_74 {dimension_numbers = #tpu.dot_dimension_numbers<[1], [0], [0], [1], [0, 0, 1, 1], [], []>} : vector<16x72xf32>, vector<72x768xf32>, vector<16x768xf32> -> vector<16x768xf32>
    %c0_75 = arith.constant 0 : index
    %c0_76 = arith.constant 0 : index
    %179 = vector.load %arg13[%c0_75, %c0_76] : memref<16x1xf32, #tpu.memory_space<vmem>>, vector<16x1xf32>
    %180 = vector.broadcast %179 : vector<16x1xf32> to vector<16x768xf32>
    %181 = arith.addf %178, %180 : vector<16x768xf32>
    %cst_77 = arith.constant 0.000000e+00 : f32
    %182 = vector.broadcast %cst_77 : f32 to vector<16x768xf32>
    %183 = arith.maximumf %181, %182 : vector<16x768xf32>
    %184 = vector.broadcast %7 : vector<1x768xf32> to vector<16x768xf32>
    %185 = arith.mulf %183, %184 : vector<16x768xf32>
    %c0_78 = arith.constant 0 : index
    %c0_79 = arith.constant 0 : index
    %186 = vector.load %arg8[%c0_78, %c0_79] : memref<768x384xf32, #tpu.memory_space<vmem>>, vector<768x384xf32>
    %cst_80 = arith.constant dense<0.000000e+00> : vector<16x384xf32>
    %187 = tpu.matmul %185, %186, %cst_80 {dimension_numbers = #tpu.dot_dimension_numbers<[1], [0], [0], [1], [0, 0, 1, 1], [], []>} : vector<16x768xf32>, vector<768x384xf32>, vector<16x384xf32> -> vector<16x384xf32>
    %c19_i32 = arith.constant 19 : i32
    %188 = tpu.dynamic_rotate %187 by %c19_i32 dim 1 : vector<16x384xf32>, i32 -> vector<16x384xf32>
    %c18_i32 = arith.constant 18 : i32
    %189 = tpu.dynamic_rotate %187 by %c18_i32 dim 1 : vector<16x384xf32>, i32 -> vector<16x384xf32>
    %c17_i32 = arith.constant 17 : i32
    %190 = tpu.dynamic_rotate %187 by %c17_i32 dim 1 : vector<16x384xf32>, i32 -> vector<16x384xf32>
    %c1_i32_81 = arith.constant 1 : i32
    %191 = tpu.dynamic_rotate %187 by %c1_i32_81 dim 1 : vector<16x384xf32>, i32 -> vector<16x384xf32>
    %c383_i32 = arith.constant 383 : i32
    %192 = tpu.dynamic_rotate %187 by %c383_i32 dim 1 : vector<16x384xf32>, i32 -> vector<16x384xf32>
    %c367_i32 = arith.constant 367 : i32
    %193 = tpu.dynamic_rotate %187 by %c367_i32 dim 1 : vector<16x384xf32>, i32 -> vector<16x384xf32>
    %c366_i32 = arith.constant 366 : i32
    %194 = tpu.dynamic_rotate %187 by %c366_i32 dim 1 : vector<16x384xf32>, i32 -> vector<16x384xf32>
    %c365_i32 = arith.constant 365 : i32
    %195 = tpu.dynamic_rotate %187 by %c365_i32 dim 1 : vector<16x384xf32>, i32 -> vector<16x384xf32>
    %196 = tpu.concatenate %188, %189, %190, %191, %187, %192, %193, %194, %195 in 0 : vector<16x384xf32>, vector<16x384xf32>, vector<16x384xf32>, vector<16x384xf32>, vector<16x384xf32>, vector<16x384xf32>, vector<16x384xf32>, vector<16x384xf32>, vector<16x384xf32> -> vector<144x384xf32>
    %c0_82 = arith.constant 0 : index
    %c0_83 = arith.constant 0 : index
    %197 = vector.load %arg14[%c0_82, %c0_83] : memref<3x144xf32, #tpu.memory_space<vmem>>, vector<3x144xf32>
    %cst_84 = arith.constant dense<0.000000e+00> : vector<3x384xf32>
    %198 = tpu.matmul %197, %196, %cst_84 {dimension_numbers = #tpu.dot_dimension_numbers<[1], [0], [0], [1], [0, 0, 1, 1], [], []>} : vector<3x144xf32>, vector<144x384xf32>, vector<3x384xf32> -> vector<3x384xf32>
    %c0_85 = arith.constant 0 : index
    %c0_86 = arith.constant 0 : index
    %199 = vector.load %arg9[%c0_85, %c0_86] : memref<384x256xf32, #tpu.memory_space<vmem>>, vector<384x256xf32>
    %cst_87 = arith.constant dense<0.000000e+00> : vector<3x256xf32>
    %200 = tpu.matmul %198, %199, %cst_87 {dimension_numbers = #tpu.dot_dimension_numbers<[1], [0], [0], [1], [0, 0, 1, 1], [], []>} : vector<3x384xf32>, vector<384x256xf32>, vector<3x256xf32> -> vector<3x256xf32>
    %c0_88 = arith.constant 0 : index
    %c0_89 = arith.constant 0 : index
    %201 = vector.load %arg15[%c0_88, %c0_89] : memref<3x1xf32, #tpu.memory_space<vmem>>, vector<3x1xf32>
    %202 = vector.broadcast %201 : vector<3x1xf32> to vector<3x256xf32>
    %203 = arith.addf %200, %202 : vector<3x256xf32>
    %204 = tpu.iota {dimensions = array<i32: 0>} : vector<3x256xi32>
    %c0_i32 = arith.constant 0 : i32
    %205 = vector.broadcast %c0_i32 : i32 to vector<3x256xi32>
    %206 = arith.cmpi eq, %204, %205 : vector<3x256xi32>
    %cst_90 = arith.constant 2.000000e+01 : f32
    %207 = vector.broadcast %cst_90 : f32 to vector<3x256xf32>
    %208 = arith.cmpf ogt, %203, %207 : vector<3x256xf32>
    %cst_91 = arith.constant 2.000000e+01 : f32
    %209 = vector.broadcast %cst_91 : f32 to vector<3x256xf32>
    %210 = arith.minimumf %203, %209 : vector<3x256xf32>
    %211 = math.exp %210 : vector<3x256xf32>
    %cst_92 = arith.constant 1.000000e+00 : f32
    %212 = vector.broadcast %cst_92 : f32 to vector<3x256xf32>
    %213 = arith.addf %212, %211 : vector<3x256xf32>
    %214 = math.log %213 : vector<3x256xf32>
    %215 = arith.select %208, %203, %214 : vector<3x256xi1>, vector<3x256xf32>
    %216 = math.tanh %203 : vector<3x256xf32>
    %217 = arith.select %206, %215, %216 : vector<3x256xi1>, vector<3x256xf32>
    %c0_93 = arith.constant 0 : index
    %c0_94 = arith.constant 0 : index
    %c0_95 = arith.constant 0 : index
    %218 = vector.load %arg16[%c0_93, %c0_94, %c0_95] : memref<1x3x256xf32, #tpu.memory_space<vmem>>, vector<1x3x256xf32>
    %219 = vector.shape_cast %218 : vector<1x3x256xf32> to vector<3x256xf32>
    %220 = vector.shape_cast %217 : vector<3x256xf32> to vector<1x3x256xf32>
    tpu.vector_store %arg16[%c0_93, %c0_94, %c0_95], %220 {strides = array<i32>} : memref<1x3x256xf32, #tpu.memory_space<vmem>>, vector<1x3x256xf32>,
    return
  }
  func.func @transform_0(%arg0: i32) -> (i32, i32, i32) {
    %c0_i32 = arith.constant 0 : i32
    %c0_i32_0 = arith.constant 0 : i32
    %c0_i32_1 = arith.constant 0 : i32
    return %arg0, %c0_i32, %c0_i32_0 : i32, i32, i32
  }
  func.func @transform_1(%arg0: i32) -> (i32, i32, i32) {
    %c0_i32 = arith.constant 0 : i32
    %c0_i32_0 = arith.constant 0 : i32
    %c0_i32_1 = arith.constant 0 : i32
    return %arg0, %c0_i32, %c0_i32_0 : i32, i32, i32
  }
  func.func @transform_2(%arg0: i32) -> (i32, i32, i32) {
    %c0_i32 = arith.constant 0 : i32
    %c0_i32_0 = arith.constant 0 : i32
    %c0_i32_1 = arith.constant 0 : i32
    return %arg0, %c0_i32, %c0_i32_0 : i32, i32, i32
  }
  func.func @transform_3(%arg0: i32) -> (i32, i32) {
    %c0_i32 = arith.constant 0 : i32
    %c0_i32_0 = arith.constant 0 : i32
    %c0_i32_1 = arith.constant 0 : i32
    return %c0_i32, %c0_i32_0 : i32, i32
  }
  func.func @transform_4(%arg0: i32) -> (i32, i32) {
    %c0_i32 = arith.constant 0 : i32
    %c0_i32_0 = arith.constant 0 : i32
    %c0_i32_1 = arith.constant 0 : i32
    return %c0_i32, %c0_i32_0 : i32, i32
  }
  func.func @transform_5(%arg0: i32) -> (i32, i32) {
    %c0_i32 = arith.constant 0 : i32
    %c0_i32_0 = arith.constant 0 : i32
    %c0_i32_1 = arith.constant 0 : i32
    return %c0_i32, %c0_i32_0 : i32, i32
  }
  func.func @transform_6(%arg0: i32) -> (i32, i32) {
    %c0_i32 = arith.constant 0 : i32
    %c0_i32_0 = arith.constant 0 : i32
    %c0_i32_1 = arith.constant 0 : i32
    return %c0_i32, %c0_i32_0 : i32, i32
  }
  func.func @transform_7(%arg0: i32) -> (i32, i32) {
    %c0_i32 = arith.constant 0 : i32
    %c0_i32_0 = arith.constant 0 : i32
    %c0_i32_1 = arith.constant 0 : i32
    return %c0_i32, %c0_i32_0 : i32, i32
  }
  func.func @transform_8(%arg0: i32) -> (i32, i32) {
    %c0_i32 = arith.constant 0 : i32
    %c0_i32_0 = arith.constant 0 : i32
    %c0_i32_1 = arith.constant 0 : i32
    return %c0_i32, %c0_i32_0 : i32, i32
  }
  func.func @transform_9(%arg0: i32) -> (i32, i32, i32) {
    %c0_i32 = arith.constant 0 : i32
    %c0_i32_0 = arith.constant 0 : i32
    %c0_i32_1 = arith.constant 0 : i32
    %c0_i32_2 = arith.constant 0 : i32
    return %c0_i32, %c0_i32_0, %c0_i32_1 : i32, i32, i32
  }
  func.func @transform_10(%arg0: i32) -> (i32, i32) {
    %c0_i32 = arith.constant 0 : i32
    %c0_i32_0 = arith.constant 0 : i32
    %c0_i32_1 = arith.constant 0 : i32
    return %c0_i32, %c0_i32_0 : i32, i32
  }
  func.func @transform_11(%arg0: i32) -> (i32, i32) {
    %c0_i32 = arith.constant 0 : i32
    %c0_i32_0 = arith.constant 0 : i32
    %c0_i32_1 = arith.constant 0 : i32
    return %c0_i32, %c0_i32_0 : i32, i32
  }
  func.func @transform_12(%arg0: i32) -> (i32, i32) {
    %c0_i32 = arith.constant 0 : i32
    %c0_i32_0 = arith.constant 0 : i32
    %c0_i32_1 = arith.constant 0 : i32
    return %c0_i32, %c0_i32_0 : i32, i32
  }
  func.func @transform_13(%arg0: i32) -> (i32, i32) {
    %c0_i32 = arith.constant 0 : i32
    %c0_i32_0 = arith.constant 0 : i32
    %c0_i32_1 = arith.constant 0 : i32
    return %c0_i32, %c0_i32_0 : i32, i32
  }
  func.func @transform_14(%arg0: i32) -> (i32, i32) {
    %c0_i32 = arith.constant 0 : i32
    %c0_i32_0 = arith.constant 0 : i32
    %c0_i32_1 = arith.constant 0 : i32
    return %c0_i32, %c0_i32_0 : i32, i32
  }
  func.func @transform_15(%arg0: i32) -> (i32, i32, i32) {
    %c0_i32 = arith.constant 0 : i32
    %c0_i32_0 = arith.constant 0 : i32
    %c0_i32_1 = arith.constant 0 : i32
    return %arg0, %c0_i32, %c0_i32_0 : i32, i32, i32
  }
}

</mosaic_0001>

<llo_original>
// kernel: cnn_forward_pallas.1
$region0: #{cnn_forward_pallas.1}
  #allocation0 [shape = 'u32[]', space=smem, size = 0x4, offset = 0x4, fixed_abs, tag = 'smem constant byte address 0x4 - core index']
  #allocation1 [shape = 'u32[144,128]{1,0:T(1,128)}', space=vmem, size = 0x12000, scoped, tag = 'internal scratch']
  %s0 = inlined_call_operand.vmem [shape: f32[2,6,1], index: 0, kind: input, shape index: {}]
  %s1 = inlined_call_operand.vmem [shape: f32[2,6,1], index: 1, kind: input, shape index: {}]
  %s2 = inlined_call_operand.vmem [shape: f32[2,6,1], index: 2, kind: input, shape index: {}]
  %s3 = inlined_call_operand.hbm [shape: f32[1,24], index: 3, kind: input, shape index: {}]
  %s4 = inlined_call_operand.hbm [shape: f32[1,768], index: 4, kind: input, shape index: {}]
  %s5 = inlined_call_operand.hbm [shape: f32[24,768], index: 5, kind: input, shape index: {}]
  %s6 = inlined_call_operand.hbm [shape: f32[24,768], index: 6, kind: input, shape index: {}]
  %s7 = inlined_call_operand.hbm [shape: f32[768,384], index: 7, kind: input, shape index: {}]
  %s8 = inlined_call_operand.hbm [shape: f32[384,256], index: 8, kind: input, shape index: {}]
  %s9 = inlined_call_operand.vmem [shape: f32[9,8,1], index: 9, kind: input, shape index: {}]
  %s10 = inlined_call_operand.vmem [shape: f32[8,1], index: 10, kind: input, shape index: {}]
  %s11 = inlined_call_operand.vmem [shape: f32[16,72], index: 11, kind: input, shape index: {}]
  %s12 = inlined_call_operand.vmem [shape: f32[16,1], index: 12, kind: input, shape index: {}]
  %s13 = inlined_call_operand.vmem [shape: f32[3,144], index: 13, kind: input, shape index: {}]
  %s14 = inlined_call_operand.vmem [shape: f32[3,1], index: 14, kind: input, shape index: {}]
  %s15 = inlined_call_operand.vmem [shape: f32[2,3,256], index: 15, kind: output, shape index: {}]
  %s16 = sld [smem:[#allocation0]]
  $region117: #{cnn_forward_pallas.1} parent=0
    _
  %s18 = ssub.s32 1, %s16
  %s19 = scalar_select 0, %s18, %s16
  $region1: #{cnn_forward_pallas.1} parent=0
    #allocation2 [shape = 'u8[512]{0}', space=vmem, size = 0x400, scoped, tag = 'input window, operand 3, single buffered']
    #allocation3 [shape = 's32[2]{0}', space=sflag, size = 0x8, scoped, tag = 'scoped memory for cnn_forward_pallas.1']
    #allocation4 [shape = 'u8[3072]{0}', space=vmem, size = 0xc00, scoped, tag = 'input window, operand 4, single buffered']
    #allocation5 [shape = 's32[1]{0}', space=sflag, size = 0x4, scoped, tag = 'scoped memory for cnn_forward_pallas.1']
    #allocation6 [shape = 'u8[73728]{0}', space=vmem, size = 0x12000, scoped, tag = 'input window, operand 5, single buffered']
    #allocation7 [shape = 'u8[73728]{0}', space=vmem, size = 0x12000, scoped, tag = 'input window, operand 6, single buffered']
    #allocation8 [shape = 's32[1]{0}', space=sflag, size = 0x4, scoped, tag = 'scoped memory for cnn_forward_pallas.1']
    #allocation9 [shape = 'u8[1179648]{0}', space=vmem, size = 0x120000, scoped, tag = 'input window, operand 7, single buffered']
    #allocation10 [shape = 'u8[393216]{0}', space=vmem, size = 0x60000, scoped, tag = 'input window, operand 8, single buffered']
    #allocation11 [shape = 's32[1]{0}', space=sflag, size = 0x4, scoped, tag = 'scoped memory for cnn_forward_pallas.1']
    %20 = vsyncpa [#allocation3], 0
    %21 = vsyncpa [#allocation5], 0
    %22 = vsyncpa [#allocation8], 0
    %23 = vsyncpa [#allocation11], 0
    loop: start=0, step=1, limit=4
    $region2: #{cnn_forward_pallas.1} parent=1 // loop_pre_header
      _
    $region3: #{cnn_forward_pallas.1} parent=1 // loop_header
      %s25 = sphi 0, %s29
      %p26 = scmp.ge.s32.totalorder %s25, 4
      %s35 = sphi 0, %s37
      %s38 = sphi 0, %s35
      %s39 = sphi 0, %s38
      %s55 = sphi 0, %s39
      %s61 = sphi 0, %s63
      %s64 = sphi 0, %s61
      %s65 = sphi 0, %s64
      %s81 = sphi 0, %s65
      %s87 = sphi 0, %s89
      %s90 = sphi 0, %s87
      %s91 = sphi 0, %s90
      %s107 = sphi 0, %s91
      %s111 = sphi 0, %s111
      %s113 = sphi 0, %s111
      %s114 = sphi 0, %s113
      %s128 = sphi 0, %s114
      %s132 = sphi 0, %s132
      %s134 = sphi 0, %s132
      %s135 = sphi 0, %s134
      %s149 = sphi 0, %s135
      %s153 = sphi 0, %s153
      %s155 = sphi 0, %s153
      %s156 = sphi 0, %s155
      %s170 = sphi 0, %s156
      %s174 = sphi 0, %s174
      %s176 = sphi 0, %s174
      %s177 = sphi 0, %s176
      %s191 = sphi 0, %s177
      %s195 = sphi 0, %s195
      %s197 = sphi 0, %s195
      %s198 = sphi 0, %s197
      %s212 = sphi 0, %s198
      %s216 = sphi 0, %s216
      %s218 = sphi 0, %s216
      %s219 = sphi 0, %s218
      %s233 = sphi 0, %s219
      %s237 = sphi 0, %s237
      %s239 = sphi 0, %s237
      %s240 = sphi 0, %s239
      %s254 = sphi 0, %s240
      %s258 = sphi 0, %s258
      %s260 = sphi 0, %s258
      %s261 = sphi 0, %s260
      %s275 = sphi 0, %s261
      %s279 = sphi 0, %s279
      %s281 = sphi 0, %s279
      %s282 = sphi 0, %s281
      %s296 = sphi 0, %s282
      %s300 = sphi 0, %s300
      %s302 = sphi 0, %s300
      %s303 = sphi 0, %s302
      %s317 = sphi 0, %s303
      %s321 = sphi 0, %s321
      %s323 = sphi 0, %s321
      %s324 = sphi 0, %s323
      %s338 = sphi 0, %s324
      %s342 = sphi 0, %s342
      %s344 = sphi 0, %s342
      %s345 = sphi 0, %s344
      %s359 = sphi 0, %s345
      %s365 = sphi 0, %s367
      %s368 = sphi 0, %s365
      %s369 = sphi 0, %s368
      %s385 = sphi 0, %s369
    $region4: #{cnn_forward_pallas.1} parent=1 // loop_header_branch
      %28 = sbr.rel (%p26) target = $region8
    $region5: #{cnn_forward_pallas.1} parent=1 // loop_body
      %s30 = ssub.s32 %s25, 1
      %s31 = ssub.s32 %s25, 2
      %s32 = sadd.s32 %s25, 1
      %s33 = ssub.s32 %s25, %s32
      %p34 = scmp.eq.s32.totalorder %s33, 0
      %s36 = sadd.s32 %s35, 1
      %s37 = scalar_select %p34, %s35, %s36
      %p40 = pneg %p34
      %p41 = scmp.eq.s32.totalorder %s25, 1
      %p42 = por %p40, %p41
      %p43 = scmp.ne.s32.totalorder %s35, %s38
      %p44 = scmp.eq.s32.totalorder %s25, 0
      %p45 = por %p43, %p44
      %p46 = scmp.ne.s32.totalorder %s35, %s38
      %p47 = scmp.eq.s32.totalorder %s30, 1
      %p48 = por %p46, %p47
      %p49 = scmp.ne.s32.totalorder %s38, %s39
      %p50 = scmp.eq.s32.totalorder %s30, 0
      %p51 = por %p49, %p50
      %p52 = scmp.ne.s32.totalorder %s38, %s39
      %p53 = scmp.eq.s32.totalorder %s31, 1
      %p54 = por %p52, %p53
      %p56 = scmp.ne.s32.totalorder %s39, %s55
      %p57 = scmp.eq.s32.totalorder %s31, 0
      %p58 = por %p56, %p57
      %s59 = ssub.s32 %s25, %s32
      %p60 = scmp.eq.s32.totalorder %s59, 0
      %s62 = sadd.s32 %s61, 1
      %s63 = scalar_select %p60, %s61, %s62
      %p66 = pneg %p60
      %p67 = scmp.eq.s32.totalorder %s25, 1
      %p68 = por %p66, %p67
      %p69 = scmp.ne.s32.totalorder %s61, %s64
      %p70 = scmp.eq.s32.totalorder %s25, 0
      %p71 = por %p69, %p70
      %p72 = scmp.ne.s32.totalorder %s61, %s64
      %p73 = scmp.eq.s32.totalorder %s30, 1
      %p74 = por %p72, %p73
      %p75 = scmp.ne.s32.totalorder %s64, %s65
      %p76 = scmp.eq.s32.totalorder %s30, 0
      %p77 = por %p75, %p76
      %p78 = scmp.ne.s32.totalorder %s64, %s65
      %p79 = scmp.eq.s32.totalorder %s31, 1
      %p80 = por %p78, %p79
      %p82 = scmp.ne.s32.totalorder %s65, %s81
      %p83 = scmp.eq.s32.totalorder %s31, 0
      %p84 = por %p82, %p83
      %s85 = ssub.s32 %s25, %s32
      %p86 = scmp.eq.s32.totalorder %s85, 0
      %s88 = sadd.s32 %s87, 1
      %s89 = scalar_select %p86, %s87, %s88
      %p92 = pneg %p86
      %p93 = scmp.eq.s32.totalorder %s25, 1
      %p94 = por %p92, %p93
      %p95 = scmp.ne.s32.totalorder %s87, %s90
      %p96 = scmp.eq.s32.totalorder %s25, 0
      %p97 = por %p95, %p96
      %p98 = scmp.ne.s32.totalorder %s87, %s90
      %p99 = scmp.eq.s32.totalorder %s30, 1
      %p100 = por %p98, %p99
      %p101 = scmp.ne.s32.totalorder %s90, %s91
      %p102 = scmp.eq.s32.totalorder %s30, 0
      %p103 = por %p101, %p102
      %p104 = scmp.ne.s32.totalorder %s90, %s91
      %p105 = scmp.eq.s32.totalorder %s31, 1
      %p106 = por %p104, %p105
      %p108 = scmp.ne.s32.totalorder %s91, %s107
      %p109 = scmp.eq.s32.totalorder %s31, 0
      %p110 = por %p108, %p109
      %s112 = sadd.s32 %s111, 1
      %p115 = scmp.eq.s32.totalorder %s25, 1
      %p116 = scmp.ne.s32.totalorder %s111, %s113
      %p117 = scmp.eq.s32.totalorder %s25, 0
      %p118 = por %p116, %p117
      %p119 = scmp.ne.s32.totalorder %s111, %s113
      %p120 = scmp.eq.s32.totalorder %s30, 1
      %p121 = por %p119, %p120
      %p122 = scmp.ne.s32.totalorder %s113, %s114
      %p123 = scmp.eq.s32.totalorder %s30, 0
      %p124 = por %p122, %p123
      %p125 = scmp.ne.s32.totalorder %s113, %s114
      %p126 = scmp.eq.s32.totalorder %s31, 1
      %p127 = por %p125, %p126
      %p129 = scmp.ne.s32.totalorder %s114, %s128
      %p130 = scmp.eq.s32.totalorder %s31, 0
      %p131 = por %p129, %p130
      %s133 = sadd.s32 %s132, 1
      %p136 = scmp.eq.s32.totalorder %s25, 1
      %p137 = scmp.ne.s32.totalorder %s132, %s134
      %p138 = scmp.eq.s32.totalorder %s25, 0
      %p139 = por %p137, %p138
      %p140 = scmp.ne.s32.totalorder %s132, %s134
      %p141 = scmp.eq.s32.totalorder %s30, 1
      %p142 = por %p140, %p141
      %p143 = scmp.ne.s32.totalorder %s134, %s135
      %p144 = scmp.eq.s32.totalorder %s30, 0
      %p145 = por %p143, %p144
      %p146 = scmp.ne.s32.totalorder %s134, %s135
      %p147 = scmp.eq.s32.totalorder %s31, 1
      %p148 = por %p146, %p147
      %p150 = scmp.ne.s32.totalorder %s135, %s149
      %p151 = scmp.eq.s32.totalorder %s31, 0
      %p152 = por %p150, %p151
      %s154 = sadd.s32 %s153, 1
      %p157 = scmp.eq.s32.totalorder %s25, 1
      %p158 = scmp.ne.s32.totalorder %s153, %s155
      %p159 = scmp.eq.s32.totalorder %s25, 0
      %p160 = por %p158, %p159
      %p161 = scmp.ne.s32.totalorder %s153, %s155
      %p162 = scmp.eq.s32.totalorder %s30, 1
      %p163 = por %p161, %p162
      %p164 = scmp.ne.s32.totalorder %s155, %s156
      %p165 = scmp.eq.s32.totalorder %s30, 0
      %p166 = por %p164, %p165
      %p167 = scmp.ne.s32.totalorder %s155, %s156
      %p168 = scmp.eq.s32.totalorder %s31, 1
      %p169 = por %p167, %p168
      %p171 = scmp.ne.s32.totalorder %s156, %s170
      %p172 = scmp.eq.s32.totalorder %s31, 0
      %p173 = por %p171, %p172
      %s175 = sadd.s32 %s174, 1
      %p178 = scmp.eq.s32.totalorder %s25, 1
      %p179 = scmp.ne.s32.totalorder %s174, %s176
      %p180 = scmp.eq.s32.totalorder %s25, 0
      %p181 = por %p179, %p180
      %p182 = scmp.ne.s32.totalorder %s174, %s176
      %p183 = scmp.eq.s32.totalorder %s30, 1
      %p184 = por %p182, %p183
      %p185 = scmp.ne.s32.totalorder %s176, %s177
      %p186 = scmp.eq.s32.totalorder %s30, 0
      %p187 = por %p185, %p186
      %p188 = scmp.ne.s32.totalorder %s176, %s177
      %p189 = scmp.eq.s32.totalorder %s31, 1
      %p190 = por %p188, %p189
      %p192 = scmp.ne.s32.totalorder %s177, %s191
      %p193 = scmp.eq.s32.totalorder %s31, 0
      %p194 = por %p192, %p193
      %s196 = sadd.s32 %s195, 1
      %p199 = scmp.eq.s32.totalorder %s25, 1
      %p200 = scmp.ne.s32.totalorder %s195, %s197
      %p201 = scmp.eq.s32.totalorder %s25, 0
      %p202 = por %p200, %p201
      %p203 = scmp.ne.s32.totalorder %s195, %s197
      %p204 = scmp.eq.s32.totalorder %s30, 1
      %p205 = por %p203, %p204
      %p206 = scmp.ne.s32.totalorder %s197, %s198
      %p207 = scmp.eq.s32.totalorder %s30, 0
      %p208 = por %p206, %p207
      %p209 = scmp.ne.s32.totalorder %s197, %s198
      %p210 = scmp.eq.s32.totalorder %s31, 1
      %p211 = por %p209, %p210
      %p213 = scmp.ne.s32.totalorder %s198, %s212
      %p214 = scmp.eq.s32.totalorder %s31, 0
      %p215 = por %p213, %p214
      %s217 = sadd.s32 %s216, 1
      %p220 = scmp.eq.s32.totalorder %s25, 1
      %p221 = scmp.ne.s32.totalorder %s216, %s218
      %p222 = scmp.eq.s32.totalorder %s25, 0
      %p223 = por %p221, %p222
      %p224 = scmp.ne.s32.totalorder %s216, %s218
      %p225 = scmp.eq.s32.totalorder %s30, 1
      %p226 = por %p224, %p225
      %p227 = scmp.ne.s32.totalorder %s218, %s219
      %p228 = scmp.eq.s32.totalorder %s30, 0
      %p229 = por %p227, %p228
      %p230 = scmp.ne.s32.totalorder %s218, %s219
      %p231 = scmp.eq.s32.totalorder %s31, 1
      %p232 = por %p230, %p231
      %p234 = scmp.ne.s32.totalorder %s219, %s233
      %p235 = scmp.eq.s32.totalorder %s31, 0
      %p236 = por %p234, %p235
      %s238 = sadd.s32 %s237, 1
      %p241 = scmp.eq.s32.totalorder %s25, 1
      %p242 = scmp.ne.s32.totalorder %s237, %s239
      %p243 = scmp.eq.s32.totalorder %s25, 0
      %p244 = por %p242, %p243
      %p245 = scmp.ne.s32.totalorder %s237, %s239
      %p246 = scmp.eq.s32.totalorder %s30, 1
      %p247 = por %p245, %p246
      %p248 = scmp.ne.s32.totalorder %s239, %s240
      %p249 = scmp.eq.s32.totalorder %s30, 0
      %p250 = por %p248, %p249
      %p251 = scmp.ne.s32.totalorder %s239, %s240
      %p252 = scmp.eq.s32.totalorder %s31, 1
      %p253 = por %p251, %p252
      %p255 = scmp.ne.s32.totalorder %s240, %s254
      %p256 = scmp.eq.s32.totalorder %s31, 0
      %p257 = por %p255, %p256
      %s259 = sadd.s32 %s258, 1
      %p262 = scmp.eq.s32.totalorder %s25, 1
      %p263 = scmp.ne.s32.totalorder %s258, %s260
      %p264 = scmp.eq.s32.totalorder %s25, 0
      %p265 = por %p263, %p264
      %p266 = scmp.ne.s32.totalorder %s258, %s260
      %p267 = scmp.eq.s32.totalorder %s30, 1
      %p268 = por %p266, %p267
      %p269 = scmp.ne.s32.totalorder %s260, %s261
      %p270 = scmp.eq.s32.totalorder %s30, 0
      %p271 = por %p269, %p270
      %p272 = scmp.ne.s32.totalorder %s260, %s261
      %p273 = scmp.eq.s32.totalorder %s31, 1
      %p274 = por %p272, %p273
      %p276 = scmp.ne.s32.totalorder %s261, %s275
      %p277 = scmp.eq.s32.totalorder %s31, 0
      %p278 = por %p276, %p277
      %s280 = sadd.s32 %s279, 1
      %p283 = scmp.eq.s32.totalorder %s25, 1
      %p284 = scmp.ne.s32.totalorder %s279, %s281
      %p285 = scmp.eq.s32.totalorder %s25, 0
      %p286 = por %p284, %p285
      %p287 = scmp.ne.s32.totalorder %s279, %s281
      %p288 = scmp.eq.s32.totalorder %s30, 1
      %p289 = por %p287, %p288
      %p290 = scmp.ne.s32.totalorder %s281, %s282
      %p291 = scmp.eq.s32.totalorder %s30, 0
      %p292 = por %p290, %p291
      %p293 = scmp.ne.s32.totalorder %s281, %s282
      %p294 = scmp.eq.s32.totalorder %s31, 1
      %p295 = por %p293, %p294
      %p297 = scmp.ne.s32.totalorder %s282, %s296
      %p298 = scmp.eq.s32.totalorder %s31, 0
      %p299 = por %p297, %p298
      %s301 = sadd.s32 %s300, 1
      %p304 = scmp.eq.s32.totalorder %s25, 1
      %p305 = scmp.ne.s32.totalorder %s300, %s302
      %p306 = scmp.eq.s32.totalorder %s25, 0
      %p307 = por %p305, %p306
      %p308 = scmp.ne.s32.totalorder %s300, %s302
      %p309 = scmp.eq.s32.totalorder %s30, 1
      %p310 = por %p308, %p309
      %p311 = scmp.ne.s32.totalorder %s302, %s303
      %p312 = scmp.eq.s32.totalorder %s30, 0
      %p313 = por %p311, %p312
      %p314 = scmp.ne.s32.totalorder %s302, %s303
      %p315 = scmp.eq.s32.totalorder %s31, 1
      %p316 = por %p314, %p315
      %p318 = scmp.ne.s32.totalorder %s303, %s317
      %p319 = scmp.eq.s32.totalorder %s31, 0
      %p320 = por %p318, %p319
      %s322 = sadd.s32 %s321, 1
      %p325 = scmp.eq.s32.totalorder %s25, 1
      %p326 = scmp.ne.s32.totalorder %s321, %s323
      %p327 = scmp.eq.s32.totalorder %s25, 0
      %p328 = por %p326, %p327
      %p329 = scmp.ne.s32.totalorder %s321, %s323
      %p330 = scmp.eq.s32.totalorder %s30, 1
      %p331 = por %p329, %p330
      %p332 = scmp.ne.s32.totalorder %s323, %s324
      %p333 = scmp.eq.s32.totalorder %s30, 0
      %p334 = por %p332, %p333
      %p335 = scmp.ne.s32.totalorder %s323, %s324
      %p336 = scmp.eq.s32.totalorder %s31, 1
      %p337 = por %p335, %p336
      %p339 = scmp.ne.s32.totalorder %s324, %s338
      %p340 = scmp.eq.s32.totalorder %s31, 0
      %p341 = por %p339, %p340
      %s343 = sadd.s32 %s342, 1
      %p346 = scmp.eq.s32.totalorder %s25, 1
      %p347 = scmp.ne.s32.totalorder %s342, %s344
      %p348 = scmp.eq.s32.totalorder %s25, 0
      %p349 = por %p347, %p348
      %p350 = scmp.ne.s32.totalorder %s342, %s344
      %p351 = scmp.eq.s32.totalorder %s30, 1
      %p352 = por %p350, %p351
      %p353 = scmp.ne.s32.totalorder %s344, %s345
      %p354 = scmp.eq.s32.totalorder %s30, 0
      %p355 = por %p353, %p354
      %p356 = scmp.ne.s32.totalorder %s344, %s345
      %p357 = scmp.eq.s32.totalorder %s31, 1
      %p358 = por %p356, %p357
      %p360 = scmp.ne.s32.totalorder %s345, %s359
      %p361 = scmp.eq.s32.totalorder %s31, 0
      %p362 = por %p360, %p361
      %s363 = ssub.s32 %s25, %s32
      %p364 = scmp.eq.s32.totalorder %s363, 0
      %s366 = sadd.s32 %s365, 1
      %s367 = scalar_select %p364, %s365, %s366
      %p370 = pneg %p364
      %p371 = scmp.eq.s32.totalorder %s25, 1
      %p372 = por %p370, %p371
      %p373 = scmp.ne.s32.totalorder %s365, %s368
      %p374 = scmp.eq.s32.totalorder %s25, 0
      %p375 = por %p373, %p374
      %p376 = scmp.ne.s32.totalorder %s365, %s368
      %p377 = scmp.eq.s32.totalorder %s30, 1
      %p378 = por %p376, %p377
      %p379 = scmp.ne.s32.totalorder %s368, %s369
      %p380 = scmp.eq.s32.totalorder %s30, 0
      %p381 = por %p379, %p380
      %p382 = scmp.ne.s32.totalorder %s368, %s369
      %p383 = scmp.eq.s32.totalorder %s31, 1
      %p384 = por %p382, %p383
      %p386 = scmp.ne.s32.totalorder %s369, %s385
      %p387 = scmp.eq.s32.totalorder %s31, 0
      %p388 = por %p386, %p387
      %p389 = scmp.le.s32.totalorder 1, %s25
      %p390 = scmp.lt.s32.totalorder %s25, 3
      %p391 = pnand %p389, %p390
      %p392 = pneg %p391
      // Predicated region
      $region9: #{cnn_forward_pallas.1} parent=5 // pred_check
        _
      $region10: #{cnn_forward_pallas.1} parent=5 // pred_check_branch
        %394 = sbr.rel (%p391) target = $region12
      $region11: #{cnn_forward_pallas.1} parent=5 // pred_region
        %s395 = ssub.s32 %s25, 1
        // Predicated region
        $region13: #{cnn_forward_pallas.1} parent=11 // pred_check
          %p396 = pneg %p124
        $region14: #{cnn_forward_pallas.1} parent=11 // pred_check_branch
          %398 = sbr.rel (%p396) target = $region16
        $region15: #{cnn_forward_pallas.1} parent=11 // pred_region
          %s400 = ssub.s32 16, 16
          %401 = vsyncadd [#allocation3], %s400
          %s403 = sshll.u32 [#allocation2], 4
          %s404 = int_to_ptr.vmem [resolvable:$true] %s403
          %406 = dma.hbm_to_vmem [thread:$0]  %s3, 16, %s404, [#allocation3]
        $region16: #{cnn_forward_pallas.1} parent=11 // pred_fallthru
          _
        // Predicated region
        $region17: #{cnn_forward_pallas.1} parent=11 // pred_check
          %p407 = pneg %p145
        $region18: #{cnn_forward_pallas.1} parent=11 // pred_check_branch
          %409 = sbr.rel (%p407) target = $region20
        $region19: #{cnn_forward_pallas.1} parent=11 // pred_region
          %s411 = ssub.s32 96, 96
          %412 = vsyncadd [#allocation5], %s411
          %s414 = sshll.u32 [#allocation4], 4
          %s415 = int_to_ptr.vmem [resolvable:$true] %s414
          %417 = dma.hbm_to_vmem [thread:$0]  %s4, 96, %s415, [#allocation5]
        $region20: #{cnn_forward_pallas.1} parent=11 // pred_fallthru
          _
        // Predicated region
        $region21: #{cnn_forward_pallas.1} parent=11 // pred_check
          %p418 = pneg %p166
        $region22: #{cnn_forward_pallas.1} parent=11 // pred_check_branch
          %420 = sbr.rel (%p418) target = $region24
        $region23: #{cnn_forward_pallas.1} parent=11 // pred_region
          %s422 = ssub.s32 2304, 2304
          %423 = vsyncadd [#allocation5], %s422
          %s424 = sshll.u32 [#allocation6], 4
          %s425 = int_to_ptr.vmem [resolvable:$true] %s424
          %430 = dma.hbm_to_vmem [thread:$0]  %s5, 2304, %s425, [#allocation5], 768, 768, 48
        $region24: #{cnn_forward_pallas.1} parent=11 // pred_fallthru
          _
        // Predicated region
        $region25: #{cnn_forward_pallas.1} parent=11 // pred_check
          %p431 = pneg %p187
        $region26: #{cnn_forward_pallas.1} parent=11 // pred_check_branch
          %433 = sbr.rel (%p431) target = $region28
        $region27: #{cnn_forward_pallas.1} parent=11 // pred_region
          %s435 = ssub.s32 2304, 2304
          %436 = vsyncadd [#allocation8], %s435
          %s437 = sshll.u32 [#allocation7], 4
          %s438 = int_to_ptr.vmem [resolvable:$true] %s437
          %443 = dma.hbm_to_vmem [thread:$0]  %s6, 2304, %s438, [#allocation8], 768, 768, 48
        $region28: #{cnn_forward_pallas.1} parent=11 // pred_fallthru
          _
        // Predicated region
        $region29: #{cnn_forward_pallas.1} parent=11 // pred_check
          %p444 = pneg %p208
        $region30: #{cnn_forward_pallas.1} parent=11 // pred_check_branch
          %446 = sbr.rel (%p444) target = $region32
        $region31: #{cnn_forward_pallas.1} parent=11 // pred_region
          %s448 = ssub.s32 36864, 36864
          %449 = vsyncadd [#allocation8], %s448
          %s450 = sshll.u32 [#allocation9], 4
          %s451 = int_to_ptr.vmem [resolvable:$true] %s450
          %456 = dma.hbm_to_vmem [thread:$0]  %s7, 36864, %s451, [#allocation8], 384, 384, 24
        $region32: #{cnn_forward_pallas.1} parent=11 // pred_fallthru
          _
        // Predicated region
        $region33: #{cnn_forward_pallas.1} parent=11 // pred_check
          %p457 = pneg %p229
        $region34: #{cnn_forward_pallas.1} parent=11 // pred_check_branch
          %459 = sbr.rel (%p457) target = $region36
        $region35: #{cnn_forward_pallas.1} parent=11 // pred_region
          %s461 = ssub.s32 12288, 12288
          %462 = vsyncadd [#allocation11], %s461
          %s463 = sshll.u32 [#allocation10], 4
          %s464 = int_to_ptr.vmem [resolvable:$true] %s463
          %469 = dma.hbm_to_vmem [thread:$0]  %s8, 12288, %s464, [#allocation11], 256, 256, 16
        $region36: #{cnn_forward_pallas.1} parent=11 // pred_fallthru
          _
        // Predicated region
        $region37: #{cnn_forward_pallas.1} parent=11 // pred_check
          %p470 = pneg %p250
        $region38: #{cnn_forward_pallas.1} parent=11 // pred_check_branch
          %472 = sbr.rel (%p470) target = $region40
        $region39: #{cnn_forward_pallas.1} parent=11 // pred_region
          _
        $region40: #{cnn_forward_pallas.1} parent=11 // pred_fallthru
          _
        // Predicated region
        $region41: #{cnn_forward_pallas.1} parent=11 // pred_check
          %p473 = pneg %p271
        $region42: #{cnn_forward_pallas.1} parent=11 // pred_check_branch
          %475 = sbr.rel (%p473) target = $region44
        $region43: #{cnn_forward_pallas.1} parent=11 // pred_region
          _
        $region44: #{cnn_forward_pallas.1} parent=11 // pred_fallthru
          _
        // Predicated region
        $region45: #{cnn_forward_pallas.1} parent=11 // pred_check
          %p476 = pneg %p292
        $region46: #{cnn_forward_pallas.1} parent=11 // pred_check_branch
          %478 = sbr.rel (%p476) target = $region48
        $region47: #{cnn_forward_pallas.1} parent=11 // pred_region
          _
        $region48: #{cnn_forward_pallas.1} parent=11 // pred_fallthru
          _
        // Predicated region
        $region49: #{cnn_forward_pallas.1} parent=11 // pred_check
          %p479 = pneg %p313
        $region50: #{cnn_forward_pallas.1} parent=11 // pred_check_branch
          %481 = sbr.rel (%p479) target = $region52
        $region51: #{cnn_forward_pallas.1} parent=11 // pred_region
          _
        $region52: #{cnn_forward_pallas.1} parent=11 // pred_fallthru
          _
        // Predicated region
        $region53: #{cnn_forward_pallas.1} parent=11 // pred_check
          %p482 = pneg %p334
        $region54: #{cnn_forward_pallas.1} parent=11 // pred_check_branch
          %484 = sbr.rel (%p482) target = $region56
        $region55: #{cnn_forward_pallas.1} parent=11 // pred_region
          _
        $region56: #{cnn_forward_pallas.1} parent=11 // pred_fallthru
          _
        // Predicated region
        $region57: #{cnn_forward_pallas.1} parent=11 // pred_check
          %p485 = pneg %p355
        $region58: #{cnn_forward_pallas.1} parent=11 // pred_check_branch
          %487 = sbr.rel (%p485) target = $region60
        $region59: #{cnn_forward_pallas.1} parent=11 // pred_region
          _
        $region60: #{cnn_forward_pallas.1} parent=11 // pred_fallthru
          _
      $region12: #{cnn_forward_pallas.1} parent=5 // pred_fallthru
        _
      %p488 = scmp.lt.s32.totalorder %s25, 2
      // Predicated region
      $region61: #{cnn_forward_pallas.1} parent=5 // pred_check
        %p489 = pneg %p488
      $region62: #{cnn_forward_pallas.1} parent=5 // pred_check_branch
        %491 = sbr.rel (%p489) target = $region64
      $region63: #{cnn_forward_pallas.1} parent=5 // pred_region
        // Predicated region
        $region65: #{cnn_forward_pallas.1} parent=63 // pred_check
          %p492 = pneg %p45
        $region66: #{cnn_forward_pallas.1} parent=63 // pred_check_branch
          %494 = sbr.rel (%p492) target = $region68
        $region67: #{cnn_forward_pallas.1} parent=63 // pred_region
          %p495 = scmp.lt.s32.totalorder %s25, 1
          %s496 = scalar_select %p495, %s25, 1
          %s497 = smul.addr %s496, 8
          %s498 = scalar_lea.vmem %s0, %s497
        $region68: #{cnn_forward_pallas.1} parent=63 // pred_fallthru
          _
        // Predicated region
        $region69: #{cnn_forward_pallas.1} parent=63 // pred_check
          %p499 = pneg %p71
        $region70: #{cnn_forward_pallas.1} parent=63 // pred_check_branch
          %501 = sbr.rel (%p499) target = $region72
        $region71: #{cnn_forward_pallas.1} parent=63 // pred_region
          %p502 = scmp.lt.s32.totalorder %s25, 1
          %s503 = scalar_select %p502, %s25, 1
          %s504 = smul.addr %s503, 8
          %s505 = scalar_lea.vmem %s1, %s504
        $region72: #{cnn_forward_pallas.1} parent=63 // pred_fallthru
          _
        // Predicated region
        $region73: #{cnn_forward_pallas.1} parent=63 // pred_check
          %p506 = pneg %p97
        $region74: #{cnn_forward_pallas.1} parent=63 // pred_check_branch
          %508 = sbr.rel (%p506) target = $region76
        $region75: #{cnn_forward_pallas.1} parent=63 // pred_region
          %p509 = scmp.lt.s32.totalorder %s25, 1
          %s510 = scalar_select %p509, %s25, 1
          %s511 = smul.addr %s510, 8
          %s512 = scalar_lea.vmem %s2, %s511
        $region76: #{cnn_forward_pallas.1} parent=63 // pred_fallthru
          _
      $region64: #{cnn_forward_pallas.1} parent=5 // pred_fallthru
        _
      %p513 = scmp.le.s32.totalorder 1, %s25
      %p514 = scmp.lt.s32.totalorder %s25, 3
      %p515 = pnand %p513, %p514
      %p516 = pneg %p515
      // Predicated region
      $region77: #{cnn_forward_pallas.1} parent=5 // pred_check
        _
      $region78: #{cnn_forward_pallas.1} parent=5 // pred_check_branch
        %518 = sbr.rel (%p515) target = $region80
      $region79: #{cnn_forward_pallas.1} parent=5 // pred_region
        %s519 = ssub.s32 %s25, 1
        // Predicated region
        $region81: #{cnn_forward_pallas.1} parent=79 // pred_check
          %p520 = pneg %p124
        $region82: #{cnn_forward_pallas.1} parent=79 // pred_check_branch
          %522 = sbr.rel (%p520) target = $region84
        $region83: #{cnn_forward_pallas.1} parent=79 // pred_region
          %523 = dma.done [#allocation3], 16
        $region84: #{cnn_forward_pallas.1} parent=79 // pred_fallthru
          _
        // Predicated region
        $region85: #{cnn_forward_pallas.1} parent=79 // pred_check
          %p524 = pneg %p145
        $region86: #{cnn_forward_pallas.1} parent=79 // pred_check_branch
          %526 = sbr.rel (%p524) target = $region88
        $region87: #{cnn_forward_pallas.1} parent=79 // pred_region
          %527 = dma.done [#allocation5], 96
        $region88: #{cnn_forward_pallas.1} parent=79 // pred_fallthru
          _
        // Predicated region
        $region89: #{cnn_forward_pallas.1} parent=79 // pred_check
          %p528 = pneg %p166
        $region90: #{cnn_forward_pallas.1} parent=79 // pred_check_branch
          %530 = sbr.rel (%p528) target = $region92
        $region91: #{cnn_forward_pallas.1} parent=79 // pred_region
          %531 = dma.done [#allocation5], 2304
        $region92: #{cnn_forward_pallas.1} parent=79 // pred_fallthru
          _
        // Predicated region
        $region93: #{cnn_forward_pallas.1} parent=79 // pred_check
          %p532 = pneg %p187
        $region94: #{cnn_forward_pallas.1} parent=79 // pred_check_branch
          %534 = sbr.rel (%p532) target = $region96
        $region95: #{cnn_forward_pallas.1} parent=79 // pred_region
          %535 = dma.done [#allocation8], 2304
        $region96: #{cnn_forward_pallas.1} parent=79 // pred_fallthru
          _
        // Predicated region
        $region97: #{cnn_forward_pallas.1} parent=79 // pred_check
          %p536 = pneg %p208
        $region98: #{cnn_forward_pallas.1} parent=79 // pred_check_branch
          %538 = sbr.rel (%p536) target = $region100
        $region99: #{cnn_forward_pallas.1} parent=79 // pred_region
          %539 = dma.done [#allocation8], 36864
        $region100: #{cnn_forward_pallas.1} parent=79 // pred_fallthru
          _
        // Predicated region
        $region101: #{cnn_forward_pallas.1} parent=79 // pred_check
          %p540 = pneg %p229
        $region102: #{cnn_forward_pallas.1} parent=79 // pred_check_branch
          %542 = sbr.rel (%p540) target = $region104
        $region103: #{cnn_forward_pallas.1} parent=79 // pred_region
          %543 = dma.done [#allocation11], 12288
        $region104: #{cnn_forward_pallas.1} parent=79 // pred_fallthru
          _
        %p544 = scmp.lt.s32.totalorder %s30, 1
        %s545 = scalar_select %p544, %s30, 1
        %s546 = smul.addr %s545, 8
        %s547 = scalar_lea.vmem %s0, %s546
        %p548 = pneg %p51
        %p549 = pneg %p48
        %p550 = scmp.lt.s32.totalorder %s30, 1
        %s551 = scalar_select %p550, %s30, 1
        %s552 = smul.addr %s551, 8
        %s553 = scalar_lea.vmem %s1, %s552
        %p554 = pneg %p77
        %p555 = pneg %p74
        %p556 = scmp.lt.s32.totalorder %s30, 1
        %s557 = scalar_select %p556, %s30, 1
        %s558 = smul.addr %s557, 8
        %s559 = scalar_lea.vmem %s2, %s558
        %p560 = pneg %p103
        %p561 = pneg %p100
        %p562 = pneg %p124
        %p563 = pneg %p121
        %p564 = pneg %p145
        %p565 = pneg %p142
        %p566 = pneg %p166
        %p567 = pneg %p163
        %p568 = pneg %p187
        %p569 = pneg %p184
        %p570 = pneg %p208
        %p571 = pneg %p205
        %p572 = pneg %p229
        %p573 = pneg %p226
        %p574 = pneg %p250
        %p575 = pneg %p247
        %p576 = pneg %p271
        %p577 = pneg %p268
        %p578 = pneg %p292
        %p579 = pneg %p289
        %p580 = pneg %p313
        %p581 = pneg %p310
        %p582 = pneg %p334
        %p583 = pneg %p331
        %p584 = pneg %p355
        %p585 = pneg %p352
        %p586 = pneg %p381
        %p587 = pneg %p378
        %p588 = scmp.lt.s32.totalorder %s30, 1
        %s589 = scalar_select %p588, %s30, 1
        %s590 = smul.addr %s589, 2
        %s591 = smul.addr %s590, 4
        %s592 = scalar_lea.vmem %s15, %s591
        %p593 = scmp.lt.s32.totalorder %s30, 1
        %s594 = scalar_select %p593, %s30, 1
        %s595 = smul.addr %s594, 8
        %s596 = scalar_lea.vmem %s0, %s595
        %p597 = scmp.lt.s32.totalorder %s30, 1
        %s598 = scalar_select %p597, %s30, 1
        %s599 = smul.addr %s598, 8
        %s600 = scalar_lea.vmem %s1, %s599
        %p601 = scmp.lt.s32.totalorder %s30, 1
        %s602 = scalar_select %p601, %s30, 1
        %s603 = smul.addr %s602, 8
        %s604 = scalar_lea.vmem %s2, %s603
        %p605 = scmp.lt.s32.totalorder %s30, 1
        %s606 = scalar_select %p605, %s30, 1
        %s607 = smul.addr %s606, 2
        %s608 = smul.addr %s607, 4
        %s609 = scalar_lea.vmem %s15, %s608
        %v610 = vld [vmem:[%s596] sm:$0x3f]
        %v611 = vld [vmem:[%s600] sm:$0x3f]
        %v612 = vld [vmem:[%s604] sm:$0x3f]
        %v613 = vld [vmem:[#allocation2] sm:$0x1]
        %v614 = vld [vmem:[#allocation4] sm:$0x3f]
        %v615 = vand.u32 2147483647, %v613
        %vm616 = vcmp.gt.f32.partialorder %v615, 0.0
        %v617 = vsel %vm616, %v615, 1.0
        %v618 = vlog2.pop %v617
        %v619 = vmul.f32 %v618, 0.6931472
        %621 = vset.pattern.permute.xlu0 0
        %622 = vperm.xlu0 %621, %v610
        %v623 = vpop.permute.xlu0 %622
        %v626 = vlaneseq
        %v627 = vshrl.u32 %v626, 7
        %v628 = vsub.s32 0, %v627
        %v629 = vrot.slane %v619, %v628
        %v631 = vmul.f32 %v623, %v629
        %v632 = vmul.f32 %v631, 1.442695
        %v633 = vpow.pop %v632
        %vm634 = vcmp.eq.f32.partialorder %v610, 0.0
        %v635 = vsel %vm634, 1.0, 0.0
        %v636 = vsel %vm616, 1, 0
        %v637 = vlaneseq
        %v638 = vshrl.u32 %v637, 7
        %v639 = vsub.s32 0, %v638
        %v640 = vrot.slane %v636, %v639
        %vm641 = vcmp.eq.s32.totalorder %v640, 1
        %643 = vset.pattern.permute.xlu0 0
        %644 = vperm.xlu0 %643, %v635
        %v645 = vpop.permute.xlu0 %644
        %v647 = vsel %vm641, %v633, %v645
        %v648 = vmul.f32 %v610, 0.5
        %v649 = vfloor.f32 %v648
        %v650 = vsub.f32 %v648, %v649
        %vm651 = vcmp.gt.f32.partialorder %v650, 0.25
        %vm652 = vcmp.lt.f32.partialorder %v613, 0.0
        %v653 = vsel %vm652, 1, 0
        %v654 = vlaneseq
        %v655 = vshrl.u32 %v654, 7
        %v656 = vsub.s32 0, %v655
        %v657 = vrot.slane %v653, %v656
        %vm658 = vcmp.eq.s32.totalorder %v657, 1
        %v659 = vsel %vm651, 1, 0
        %660 = vset.pattern.permute.xlu0 0
        %661 = vperm.xlu0 %660, %v659
        %v662 = vpop.permute.xlu0 %661
        %vm663 = vcmp.eq.s32.totalorder %v662, 1
        %vm664 = vmand %vm658, %vm663
        %v665 = vsub.f32 0.0, %v647
        %v666 = vsel %vm664, %v665, %v647
        %668 = vset.pattern.permute.xlu0 0
        %669 = vperm.xlu0 %668, %v612
        %v670 = vpop.permute.xlu0 %669
        %v672 = vmul.f32 %v670, %v666
        %674 = vset.pattern.permute.xlu0 0
        %675 = vperm.xlu0 %674, %v611
        %v676 = vpop.permute.xlu0 %675
        %v678 = vmul.f32 %v676, %v629
        %v679 = vmul.f32 %v678, 1.442695
        %v680 = vpow.pop %v679
        %vm681 = vcmp.eq.f32.partialorder %v611, 0.0
        %v682 = vsel %vm681, 1.0, 0.0
        %684 = vset.pattern.permute.xlu0 0
        %685 = vperm.xlu0 %684, %v682
        %v686 = vpop.permute.xlu0 %685
        %v688 = vsel %vm641, %v680, %v686
        %v689 = vmul.f32 %v611, 0.5
        %v690 = vfloor.f32 %v689
        %v691 = vsub.f32 %v689, %v690
        %vm692 = vcmp.gt.f32.partialorder %v691, 0.25
        %v693 = vsel %vm692, 1, 0
        %694 = vset.pattern.permute.xlu0 0
        %695 = vperm.xlu0 %694, %v693
        %v696 = vpop.permute.xlu0 %695
        %vm697 = vcmp.eq.s32.totalorder %v696, 1
        %vm698 = vmand %vm658, %vm697
        %v699 = vsub.f32 0.0, %v688
        %v700 = vsel %vm698, %v699, %v688
        %v701 = vld [vmem:[#allocation6] sm:$0xff]
        %v702 = vld [vmem:[#allocation6 + $0x8] sm:$0xff]
        %v703 = vld [vmem:[#allocation6 + $0x10] sm:$0xff]
        %v704 = vld [vmem:[#allocation6 + $0x18] sm:$0xff]
        %v705 = vld [vmem:[#allocation6 + $0x20] sm:$0xff]
        %v706 = vld [vmem:[#allocation6 + $0x28] sm:$0xff]
        %v707 = vld [vmem:[#allocation6 + $0x30] sm:$0xff]
        %v708 = vld [vmem:[#allocation6 + $0x38] sm:$0xff]
        %v709 = vld [vmem:[#allocation6 + $0x40] sm:$0xff]
        %v710 = vld [vmem:[#allocation6 + $0x48] sm:$0xff]
        %v711 = vld [vmem:[#allocation6 + $0x50] sm:$0xff]
        %v712 = vld [vmem:[#allocation6 + $0x58] sm:$0xff]
        %v713 = vld [vmem:[#allocation6 + $0x60] sm:$0xff]
        %v714 = vld [vmem:[#allocation6 + $0x68] sm:$0xff]
        %v715 = vld [vmem:[#allocation6 + $0x70] sm:$0xff]
        %v716 = vld [vmem:[#allocation6 + $0x78] sm:$0xff]
        %v717 = vld [vmem:[#allocation6 + $0x80] sm:$0xff]
        %v718 = vld [vmem:[#allocation6 + $0x88] sm:$0xff]
        %vm719 = vcmask 195584
        %v721 = vsel %vm719, %v672, 0
        %723 = vmatprep.subr.mxu0 %v702
        %724 = vmatpush1.msra.mxu0 %v701
        %725 = vmatprep.subr.mxu0 %v708
        %726 = vmatpush1.msra.mxu0 %v707
        %727 = vmatprep.subr.mxu0 %v714
        %728 = vmatpush1.msra.mxu0 %v713
        %729 = vmatprep.subr.mxu0 0.0
        %730 = vmatpush1.msra.mxu0 0.0
        %731 = vmatprep.subr.mxu0 0.0
        %732 = vmatpush1.msra.mxu0 0.0
        %733 = vmatprep.subr.mxu0 0.0
        %734 = vmatpush1.msra.mxu0 0.0
        %735 = vmatprep.subr.mxu0 0.0
        %736 = vmatpush1.msra.mxu0 0.0
        %737 = vmatprep.subr.mxu0 0.0
        %738 = vmatpush1.msra.mxu0 0.0
        %739 = vmatprep.subr.mxu0 0.0
        %740 = vmatpush1.msra.mxu0 0.0
        %741 = vmatprep.subr.mxu0 0.0
        %742 = vmatpush1.msra.mxu0 0.0
        %743 = vmatprep.subr.mxu0 0.0
        %744 = vmatpush1.msra.mxu0 0.0
        %745 = vmatprep.subr.mxu0 0.0
        %746 = vmatpush1.msra.mxu0 0.0
        %747 = vmatprep.subr.mxu0 0.0
        %748 = vmatpush1.msra.mxu0 0.0
        %749 = vmatprep.subr.mxu0 0.0
        %750 = vmatpush1.msra.mxu0 0.0
        %751 = vmatprep.subr.mxu0 0.0
        %752 = vmatpush1.msra.mxu0 0.0
        %753 = vmatprep.subr.mxu0 0.0
        %754 = vmatpush1.msra.mxu0 0.0
        %755 = vmatprep.subr.mxu0 0.0
        %756 = vmatpush1.msra.mxu0 0.0
        %757 = vmatprep.subr.mxu0 0.0
        %758 = vmatpush1.msra.mxu0 0.0
        %759 = vmatprep.subr.mxu0 0.0
        %760 = vmatpush1.msra.mxu0 0.0
        %761 = vmatprep.subr.mxu0 0.0
        %762 = vmatpush1.msra.mxu0 0.0
        %763 = vmatprep.subr.mxu0 0.0
        %764 = vmatpush1.msra.mxu0 0.0
        %765 = vmatprep.subr.mxu0 0.0
        %766 = vmatpush1.msra.mxu0 0.0
        %767 = vmatprep.subr.mxu0 0.0
        %768 = vmatpush1.msra.mxu0 0.0
        %769 = vmatprep.subr.mxu0 0.0
        %770 = vmatpush1.msra.mxu0 0.0
        %771 = vmatprep.subr.mxu0 0.0
        %772 = vmatpush1.msra.mxu0 0.0
        %773 = vmatprep.subr.mxu0 0.0
        %774 = vmatpush1.msra.mxu0 0.0
        %775 = vmatprep.subr.mxu0 0.0
        %776 = vmatpush1.msra.mxu0 0.0
        %777 = vmatprep.subr.mxu0 0.0
        %778 = vmatpush1.msra.mxu0 0.0
        %779 = vmatprep.subr.mxu0 0.0
        %780 = vmatpush1.msra.mxu0 0.0
        %781 = vmatprep.subr.mxu0 0.0
        %782 = vmatpush1.msra.mxu0 0.0
        %783 = vmatprep.subr.mxu0 0.0
        %784 = vmatpush1.msra.mxu0 0.0
        %785 = vmatprep.subr.mxu0 0.0
        %786 = vmatpush1.msra.mxu0 0.0
        %787 = vmatprep.mubr.f32.mxu0 0.0
        %788 = vmatmul.mubr.f32.gmra.mrb[0].mxu0 %v721
        %v789 = vpop.f32.mrb[0].mxu0
        %v790 = vadd.f32 0.0, %v789
        %v791 = vpop.f32.mrb[0].mxu0
        %v792 = vadd.f32 0.0, %v791
        %793 = vdwg.mxu0
        %794 = vmatprep.subr.mxu0 %v704
        %795 = vmatpush1.msra.mxu0 %v703
        %796 = vmatprep.subr.mxu0 %v710
        %797 = vmatpush1.msra.mxu0 %v709
        %798 = vmatprep.subr.mxu0 %v716
        %799 = vmatpush1.msra.mxu0 %v715
        %800 = vmatprep.subr.mxu0 0.0
        %801 = vmatpush1.msra.mxu0 0.0
        %802 = vmatprep.subr.mxu0 0.0
        %803 = vmatpush1.msra.mxu0 0.0
        %804 = vmatprep.subr.mxu0 0.0
        %805 = vmatpush1.msra.mxu0 0.0
        %806 = vmatprep.subr.mxu0 0.0
        %807 = vmatpush1.msra.mxu0 0.0
        %808 = vmatprep.subr.mxu0 0.0
        %809 = vmatpush1.msra.mxu0 0.0
        %810 = vmatprep.subr.mxu0 0.0
        %811 = vmatpush1.msra.mxu0 0.0
        %812 = vmatprep.subr.mxu0 0.0
        %813 = vmatpush1.msra.mxu0 0.0
        %814 = vmatprep.subr.mxu0 0.0
        %815 = vmatpush1.msra.mxu0 0.0
        %816 = vmatprep.subr.mxu0 0.0
        %817 = vmatpush1.msra.mxu0 0.0
        %818 = vmatprep.subr.mxu0 0.0
        %819 = vmatpush1.msra.mxu0 0.0
        %820 = vmatprep.subr.mxu0 0.0
        %821 = vmatpush1.msra.mxu0 0.0
        %822 = vmatprep.subr.mxu0 0.0
        %823 = vmatpush1.msra.mxu0 0.0
        %824 = vmatprep.subr.mxu0 0.0
        %825 = vmatpush1.msra.mxu0 0.0
        %826 = vmatprep.subr.mxu0 0.0
        %827 = vmatpush1.msra.mxu0 0.0
        %828 = vmatprep.subr.mxu0 0.0
        %829 = vmatpush1.msra.mxu0 0.0
        %830 = vmatprep.subr.mxu0 0.0
        %831 = vmatpush1.msra.mxu0 0.0
        %832 = vmatprep.subr.mxu0 0.0
        %833 = vmatpush1.msra.mxu0 0.0
        %834 = vmatprep.subr.mxu0 0.0
        %835 = vmatpush1.msra.mxu0 0.0
        %836 = vmatprep.subr.mxu0 0.0
        %837 = vmatpush1.msra.mxu0 0.0
        %838 = vmatprep.subr.mxu0 0.0
        %839 = vmatpush1.msra.mxu0 0.0
        %840 = vmatprep.subr.mxu0 0.0
        %841 = vmatpush1.msra.mxu0 0.0
        %842 = vmatprep.subr.mxu0 0.0
        %843 = vmatpush1.msra.mxu0 0.0
        %844 = vmatprep.subr.mxu0 0.0
        %845 = vmatpush1.msra.mxu0 0.0
        %846 = vmatprep.subr.mxu0 0.0
        %847 = vmatpush1.msra.mxu0 0.0
        %848 = vmatprep.subr.mxu0 0.0
        %849 = vmatpush1.msra.mxu0 0.0
        %850 = vmatprep.subr.mxu0 0.0
        %851 = vmatpush1.msra.mxu0 0.0
        %852 = vmatprep.subr.mxu0 0.0
        %853 = vmatpush1.msra.mxu0 0.0
        %854 = vmatprep.subr.mxu0 0.0
        %855 = vmatpush1.msra.mxu0 0.0
        %856 = vmatprep.subr.mxu0 0.0
        %857 = vmatpush1.msra.mxu0 0.0
        %858 = vmatprep.mubr.f32.mxu0 0.0
        %859 = vmatmul.mubr.f32.gmra.mrb[0].mxu0 %v721
        %v860 = vpop.f32.mrb[0].mxu0
        %v861 = vadd.f32 0.0, %v860
        %v862 = vpop.f32.mrb[0].mxu0
        %v863 = vadd.f32 0.0, %v862
        %864 = vdwg.mxu0
        %865 = vmatprep.subr.mxu0 %v706
        %866 = vmatpush1.msra.mxu0 %v705
        %867 = vmatprep.subr.mxu0 %v712
        %868 = vmatpush1.msra.mxu0 %v711
        %869 = vmatprep.subr.mxu0 %v718
        %870 = vmatpush1.msra.mxu0 %v717
        %871 = vmatprep.subr.mxu0 0.0
        %872 = vmatpush1.msra.mxu0 0.0
        %873 = vmatprep.subr.mxu0 0.0
        %874 = vmatpush1.msra.mxu0 0.0
        %875 = vmatprep.subr.mxu0 0.0
        %876 = vmatpush1.msra.mxu0 0.0
        %877 = vmatprep.subr.mxu0 0.0
        %878 = vmatpush1.msra.mxu0 0.0
        %879 = vmatprep.subr.mxu0 0.0
        %880 = vmatpush1.msra.mxu0 0.0
        %881 = vmatprep.subr.mxu0 0.0
        %882 = vmatpush1.msra.mxu0 0.0
        %883 = vmatprep.subr.mxu0 0.0
        %884 = vmatpush1.msra.mxu0 0.0
        %885 = vmatprep.subr.mxu0 0.0
        %886 = vmatpush1.msra.mxu0 0.0
        %887 = vmatprep.subr.mxu0 0.0
        %888 = vmatpush1.msra.mxu0 0.0
        %889 = vmatprep.subr.mxu0 0.0
        %890 = vmatpush1.msra.mxu0 0.0
        %891 = vmatprep.subr.mxu0 0.0
        %892 = vmatpush1.msra.mxu0 0.0
        %893 = vmatprep.subr.mxu0 0.0
        %894 = vmatpush1.msra.mxu0 0.0
        %895 = vmatprep.subr.mxu0 0.0
        %896 = vmatpush1.msra.mxu0 0.0
        %897 = vmatprep.subr.mxu0 0.0
        %898 = vmatpush1.msra.mxu0 0.0
        %899 = vmatprep.subr.mxu0 0.0
        %900 = vmatpush1.msra.mxu0 0.0
        %901 = vmatprep.subr.mxu0 0.0
        %902 = vmatpush1.msra.mxu0 0.0
        %903 = vmatprep.subr.mxu0 0.0
        %904 = vmatpush1.msra.mxu0 0.0
        %905 = vmatprep.subr.mxu0 0.0
        %906 = vmatpush1.msra.mxu0 0.0
        %907 = vmatprep.subr.mxu0 0.0
        %908 = vmatpush1.msra.mxu0 0.0
        %909 = vmatprep.subr.mxu0 0.0
        %910 = vmatpush1.msra.mxu0 0.0
        %911 = vmatprep.subr.mxu0 0.0
        %912 = vmatpush1.msra.mxu0 0.0
        %913 = vmatprep.subr.mxu0 0.0
        %914 = vmatpush1.msra.mxu0 0.0
        %915 = vmatprep.subr.mxu0 0.0
        %916 = vmatpush1.msra.mxu0 0.0
        %917 = vmatprep.subr.mxu0 0.0
        %918 = vmatpush1.msra.mxu0 0.0
        %919 = vmatprep.subr.mxu0 0.0
        %920 = vmatpush1.msra.mxu0 0.0
        %921 = vmatprep.subr.mxu0 0.0
        %922 = vmatpush1.msra.mxu0 0.0
        %923 = vmatprep.subr.mxu0 0.0
        %924 = vmatpush1.msra.mxu0 0.0
        %925 = vmatprep.subr.mxu0 0.0
        %926 = vmatpush1.msra.mxu0 0.0
        %927 = vmatprep.subr.mxu0 0.0
        %928 = vmatpush1.msra.mxu0 0.0
        %929 = vmatprep.mubr.f32.mxu0 0.0
        %930 = vmatmul.mubr.f32.gmra.mrb[0].mxu0 %v721
        %v931 = vpop.f32.mrb[0].mxu0
        %v932 = vadd.f32 0.0, %v931
        %v933 = vpop.f32.mrb[0].mxu0
        %v934 = vadd.f32 0.0, %v933
        %935 = vdwg.mxu0
        %v936 = vld [vmem:[#allocation7] sm:$0xff]
        %v937 = vld [vmem:[#allocation7 + $0x8] sm:$0xff]
        %v938 = vld [vmem:[#allocation7 + $0x10] sm:$0xff]
        %v939 = vld [vmem:[#allocation7 + $0x18] sm:$0xff]
        %v940 = vld [vmem:[#allocation7 + $0x20] sm:$0xff]
        %v941 = vld [vmem:[#allocation7 + $0x28] sm:$0xff]
        %v942 = vld [vmem:[#allocation7 + $0x30] sm:$0xff]
        %v943 = vld [vmem:[#allocation7 + $0x38] sm:$0xff]
        %v944 = vld [vmem:[#allocation7 + $0x40] sm:$0xff]
        %v945 = vld [vmem:[#allocation7 + $0x48] sm:$0xff]
        %v946 = vld [vmem:[#allocation7 + $0x50] sm:$0xff]
        %v947 = vld [vmem:[#allocation7 + $0x58] sm:$0xff]
        %v948 = vld [vmem:[#allocation7 + $0x60] sm:$0xff]
        %v949 = vld [vmem:[#allocation7 + $0x68] sm:$0xff]
        %v950 = vld [vmem:[#allocation7 + $0x70] sm:$0xff]
        %v951 = vld [vmem:[#allocation7 + $0x78] sm:$0xff]
        %v952 = vld [vmem:[#allocation7 + $0x80] sm:$0xff]
        %v953 = vld [vmem:[#allocation7 + $0x88] sm:$0xff]
        %v955 = vsel %vm719, %v700, 0
        %957 = vmatprep.subr.mxu0 %v937
        %958 = vmatpush1.msra.mxu0 %v936
        %959 = vmatprep.subr.mxu0 %v943
        %960 = vmatpush1.msra.mxu0 %v942
        %961 = vmatprep.subr.mxu0 %v949
        %962 = vmatpush1.msra.mxu0 %v948
        %963 = vmatprep.subr.mxu0 0.0
        %964 = vmatpush1.msra.mxu0 0.0
        %965 = vmatprep.subr.mxu0 0.0
        %966 = vmatpush1.msra.mxu0 0.0
        %967 = vmatprep.subr.mxu0 0.0
        %968 = vmatpush1.msra.mxu0 0.0
        %969 = vmatprep.subr.mxu0 0.0
        %970 = vmatpush1.msra.mxu0 0.0
        %971 = vmatprep.subr.mxu0 0.0
        %972 = vmatpush1.msra.mxu0 0.0
        %973 = vmatprep.subr.mxu0 0.0
        %974 = vmatpush1.msra.mxu0 0.0
        %975 = vmatprep.subr.mxu0 0.0
        %976 = vmatpush1.msra.mxu0 0.0
        %977 = vmatprep.subr.mxu0 0.0
        %978 = vmatpush1.msra.mxu0 0.0
        %979 = vmatprep.subr.mxu0 0.0
        %980 = vmatpush1.msra.mxu0 0.0
        %981 = vmatprep.subr.mxu0 0.0
        %982 = vmatpush1.msra.mxu0 0.0
        %983 = vmatprep.subr.mxu0 0.0
        %984 = vmatpush1.msra.mxu0 0.0
        %985 = vmatprep.subr.mxu0 0.0
        %986 = vmatpush1.msra.mxu0 0.0
        %987 = vmatprep.subr.mxu0 0.0
        %988 = vmatpush1.msra.mxu0 0.0
        %989 = vmatprep.subr.mxu0 0.0
        %990 = vmatpush1.msra.mxu0 0.0
        %991 = vmatprep.subr.mxu0 0.0
        %992 = vmatpush1.msra.mxu0 0.0
        %993 = vmatprep.subr.mxu0 0.0
        %994 = vmatpush1.msra.mxu0 0.0
        %995 = vmatprep.subr.mxu0 0.0
        %996 = vmatpush1.msra.mxu0 0.0
        %997 = vmatprep.subr.mxu0 0.0
        %998 = vmatpush1.msra.mxu0 0.0
        %999 = vmatprep.subr.mxu0 0.0
        %1000 = vmatpush1.msra.mxu0 0.0
        %1001 = vmatprep.subr.mxu0 0.0
        %1002 = vmatpush1.msra.mxu0 0.0
        %1003 = vmatprep.subr.mxu0 0.0
        %1004 = vmatpush1.msra.mxu0 0.0
        %1005 = vmatprep.subr.mxu0 0.0
        %1006 = vmatpush1.msra.mxu0 0.0
        %1007 = vmatprep.subr.mxu0 0.0
        %1008 = vmatpush1.msra.mxu0 0.0
        %1009 = vmatprep.subr.mxu0 0.0
        %1010 = vmatpush1.msra.mxu0 0.0
        %1011 = vmatprep.subr.mxu0 0.0
        %1012 = vmatpush1.msra.mxu0 0.0
        %1013 = vmatprep.subr.mxu0 0.0
        %1014 = vmatpush1.msra.mxu0 0.0
        %1015 = vmatprep.subr.mxu0 0.0
        %1016 = vmatpush1.msra.mxu0 0.0
        %1017 = vmatprep.subr.mxu0 0.0
        %1018 = vmatpush1.msra.mxu0 0.0
        %1019 = vmatprep.subr.mxu0 0.0
        %1020 = vmatpush1.msra.mxu0 0.0
        %1021 = vmatprep.mubr.f32.mxu0 0.0
        %1022 = vmatmul.mubr.f32.gmra.mrb[0].mxu0 %v955
        %v1023 = vpop.f32.mrb[0].mxu0
        %v1024 = vadd.f32 0.0, %v1023
        %v1025 = vpop.f32.mrb[0].mxu0
        %v1026 = vadd.f32 0.0, %v1025
        %1027 = vdwg.mxu0
        %1028 = vmatprep.subr.mxu0 %v939
        %1029 = vmatpush1.msra.mxu0 %v938
        %1030 = vmatprep.subr.mxu0 %v945
        %1031 = vmatpush1.msra.mxu0 %v944
        %1032 = vmatprep.subr.mxu0 %v951
        %1033 = vmatpush1.msra.mxu0 %v950
        %1034 = vmatprep.subr.mxu0 0.0
        %1035 = vmatpush1.msra.mxu0 0.0
        %1036 = vmatprep.subr.mxu0 0.0
        %1037 = vmatpush1.msra.mxu0 0.0
        %1038 = vmatprep.subr.mxu0 0.0
        %1039 = vmatpush1.msra.mxu0 0.0
        %1040 = vmatprep.subr.mxu0 0.0
        %1041 = vmatpush1.msra.mxu0 0.0
        %1042 = vmatprep.subr.mxu0 0.0
        %1043 = vmatpush1.msra.mxu0 0.0
        %1044 = vmatprep.subr.mxu0 0.0
        %1045 = vmatpush1.msra.mxu0 0.0
        %1046 = vmatprep.subr.mxu0 0.0
        %1047 = vmatpush1.msra.mxu0 0.0
        %1048 = vmatprep.subr.mxu0 0.0
        %1049 = vmatpush1.msra.mxu0 0.0
        %1050 = vmatprep.subr.mxu0 0.0
        %1051 = vmatpush1.msra.mxu0 0.0
        %1052 = vmatprep.subr.mxu0 0.0
        %1053 = vmatpush1.msra.mxu0 0.0
        %1054 = vmatprep.subr.mxu0 0.0
        %1055 = vmatpush1.msra.mxu0 0.0
        %1056 = vmatprep.subr.mxu0 0.0
        %1057 = vmatpush1.msra.mxu0 0.0
        %1058 = vmatprep.subr.mxu0 0.0
        %1059 = vmatpush1.msra.mxu0 0.0
        %1060 = vmatprep.subr.mxu0 0.0
        %1061 = vmatpush1.msra.mxu0 0.0
        %1062 = vmatprep.subr.mxu0 0.0
        %1063 = vmatpush1.msra.mxu0 0.0
        %1064 = vmatprep.subr.mxu0 0.0
        %1065 = vmatpush1.msra.mxu0 0.0
        %1066 = vmatprep.subr.mxu0 0.0
        %1067 = vmatpush1.msra.mxu0 0.0
        %1068 = vmatprep.subr.mxu0 0.0
        %1069 = vmatpush1.msra.mxu0 0.0
        %1070 = vmatprep.subr.mxu0 0.0
        %1071 = vmatpush1.msra.mxu0 0.0
        %1072 = vmatprep.subr.mxu0 0.0
        %1073 = vmatpush1.msra.mxu0 0.0
        %1074 = vmatprep.subr.mxu0 0.0
        %1075 = vmatpush1.msra.mxu0 0.0
        %1076 = vmatprep.subr.mxu0 0.0
        %1077 = vmatpush1.msra.mxu0 0.0
        %1078 = vmatprep.subr.mxu0 0.0
        %1079 = vmatpush1.msra.mxu0 0.0
        %1080 = vmatprep.subr.mxu0 0.0
        %1081 = vmatpush1.msra.mxu0 0.0
        %1082 = vmatprep.subr.mxu0 0.0
        %1083 = vmatpush1.msra.mxu0 0.0
        %1084 = vmatprep.subr.mxu0 0.0
        %1085 = vmatpush1.msra.mxu0 0.0
        %1086 = vmatprep.subr.mxu0 0.0
        %1087 = vmatpush1.msra.mxu0 0.0
        %1088 = vmatprep.subr.mxu0 0.0
        %1089 = vmatpush1.msra.mxu0 0.0
        %1090 = vmatprep.subr.mxu0 0.0
        %1091 = vmatpush1.msra.mxu0 0.0
        %1092 = vmatprep.mubr.f32.mxu0 0.0
        %1093 = vmatmul.mubr.f32.gmra.mrb[0].mxu0 %v955
        %v1094 = vpop.f32.mrb[0].mxu0
        %v1095 = vadd.f32 0.0, %v1094
        %v1096 = vpop.f32.mrb[0].mxu0
        %v1097 = vadd.f32 0.0, %v1096
        %1098 = vdwg.mxu0
        %1099 = vmatprep.subr.mxu0 %v941
        %1100 = vmatpush1.msra.mxu0 %v940
        %1101 = vmatprep.subr.mxu0 %v947
        %1102 = vmatpush1.msra.mxu0 %v946
        %1103 = vmatprep.subr.mxu0 %v953
        %1104 = vmatpush1.msra.mxu0 %v952
        %1105 = vmatprep.subr.mxu0 0.0
        %1106 = vmatpush1.msra.mxu0 0.0
        %1107 = vmatprep.subr.mxu0 0.0
        %1108 = vmatpush1.msra.mxu0 0.0
        %1109 = vmatprep.subr.mxu0 0.0
        %1110 = vmatpush1.msra.mxu0 0.0
        %1111 = vmatprep.subr.mxu0 0.0
        %1112 = vmatpush1.msra.mxu0 0.0
        %1113 = vmatprep.subr.mxu0 0.0
        %1114 = vmatpush1.msra.mxu0 0.0
        %1115 = vmatprep.subr.mxu0 0.0
        %1116 = vmatpush1.msra.mxu0 0.0
        %1117 = vmatprep.subr.mxu0 0.0
        %1118 = vmatpush1.msra.mxu0 0.0
        %1119 = vmatprep.subr.mxu0 0.0
        %1120 = vmatpush1.msra.mxu0 0.0
        %1121 = vmatprep.subr.mxu0 0.0
        %1122 = vmatpush1.msra.mxu0 0.0
        %1123 = vmatprep.subr.mxu0 0.0
        %1124 = vmatpush1.msra.mxu0 0.0
        %1125 = vmatprep.subr.mxu0 0.0
        %1126 = vmatpush1.msra.mxu0 0.0
        %1127 = vmatprep.subr.mxu0 0.0
        %1128 = vmatpush1.msra.mxu0 0.0
        %1129 = vmatprep.subr.mxu0 0.0
        %1130 = vmatpush1.msra.mxu0 0.0
        %1131 = vmatprep.subr.mxu0 0.0
        %1132 = vmatpush1.msra.mxu0 0.0
        %1133 = vmatprep.subr.mxu0 0.0
        %1134 = vmatpush1.msra.mxu0 0.0
        %1135 = vmatprep.subr.mxu0 0.0
        %1136 = vmatpush1.msra.mxu0 0.0
        %1137 = vmatprep.subr.mxu0 0.0
        %1138 = vmatpush1.msra.mxu0 0.0
        %1139 = vmatprep.subr.mxu0 0.0
        %1140 = vmatpush1.msra.mxu0 0.0
        %1141 = vmatprep.subr.mxu0 0.0
        %1142 = vmatpush1.msra.mxu0 0.0
        %1143 = vmatprep.subr.mxu0 0.0
        %1144 = vmatpush1.msra.mxu0 0.0
        %1145 = vmatprep.subr.mxu0 0.0
        %1146 = vmatpush1.msra.mxu0 0.0
        %1147 = vmatprep.subr.mxu0 0.0
        %1148 = vmatpush1.msra.mxu0 0.0
        %1149 = vmatprep.subr.mxu0 0.0
        %1150 = vmatpush1.msra.mxu0 0.0
        %1151 = vmatprep.subr.mxu0 0.0
        %1152 = vmatpush1.msra.mxu0 0.0
        %1153 = vmatprep.subr.mxu0 0.0
        %1154 = vmatpush1.msra.mxu0 0.0
        %1155 = vmatprep.subr.mxu0 0.0
        %1156 = vmatpush1.msra.mxu0 0.0
        %1157 = vmatprep.subr.mxu0 0.0
        %1158 = vmatpush1.msra.mxu0 0.0
        %1159 = vmatprep.subr.mxu0 0.0
        %1160 = vmatpush1.msra.mxu0 0.0
        %1161 = vmatprep.subr.mxu0 0.0
        %1162 = vmatpush1.msra.mxu0 0.0
        %1163 = vmatprep.mubr.f32.mxu0 0.0
        %1164 = vmatmul.mubr.f32.gmra.mrb[0].mxu0 %v955
        %v1165 = vpop.f32.mrb[0].mxu0
        %v1166 = vadd.f32 0.0, %v1165
        %v1167 = vpop.f32.mrb[0].mxu0
        %v1168 = vadd.f32 0.0, %v1167
        %1169 = vdwg.mxu0
        %v1170 = vmul.f32 %v790, %v1024
        %v1171 = vmul.f32 %v792, %v1026
        %v1172 = vmul.f32 %v861, %v1095
        %v1173 = vmul.f32 %v863, %v1097
        %v1174 = vmul.f32 %v932, %v1166
        %v1175 = vmul.f32 %v934, %v1168
        %vm1176 = vcmask 1045504
        %v1177 = vsel %vm1176, %v1170, 0.0
        %v1178 = vrot.slane %v1177, 4
        %v1179 = vadd.f32 %v1177, %v1178
        %v1180 = vrot.slane %v1179, 2
        %v1181 = vadd.f32 %v1179, %v1180
        %v1182 = vrot.slane %v1181, 1
        %v1183 = vadd.f32 %v1181, %v1182
        %v1184 = vsel %vm1176, %v1171, 0.0
        %v1185 = vrot.slane %v1184, 4
        %v1186 = vadd.f32 %v1184, %v1185
        %v1187 = vrot.slane %v1186, 2
        %v1188 = vadd.f32 %v1186, %v1187
        %v1189 = vrot.slane %v1188, 1
        %v1190 = vadd.f32 %v1188, %v1189
        %v1191 = vsel %vm1176, %v1172, 0.0
        %v1192 = vrot.slane %v1191, 4
        %v1193 = vadd.f32 %v1191, %v1192
        %v1194 = vrot.slane %v1193, 2
        %v1195 = vadd.f32 %v1193, %v1194
        %v1196 = vrot.slane %v1195, 1
        %v1197 = vadd.f32 %v1195, %v1196
        %v1198 = vsel %vm1176, %v1173, 0.0
        %v1199 = vrot.slane %v1198, 4
        %v1200 = vadd.f32 %v1198, %v1199
        %v1201 = vrot.slane %v1200, 2
        %v1202 = vadd.f32 %v1200, %v1201
        %v1203 = vrot.slane %v1202, 1
        %v1204 = vadd.f32 %v1202, %v1203
        %v1205 = vsel %vm1176, %v1174, 0.0
        %v1206 = vrot.slane %v1205, 4
        %v1207 = vadd.f32 %v1205, %v1206
        %v1208 = vrot.slane %v1207, 2
        %v1209 = vadd.f32 %v1207, %v1208
        %v1210 = vrot.slane %v1209, 1
        %v1211 = vadd.f32 %v1209, %v1210
        %v1212 = vsel %vm1176, %v1175, 0.0
        %v1213 = vrot.slane %v1212, 4
        %v1214 = vadd.f32 %v1212, %v1213
        %v1215 = vrot.slane %v1214, 2
        %v1216 = vadd.f32 %v1214, %v1215
        %v1217 = vrot.slane %v1216, 1
        %v1218 = vadd.f32 %v1216, %v1217
        %vm1219 = vcmp.gt.f32.partialorder %v614, 0.5
        %v1226 = vcombine.low %v1183, %v1190
        %v1227 = vcombine.low %v1197, %v1204
        %v1228 = vcombine.low %v1211, %v1218
        %v1230 = vunpack.c.l.s4 1966171168
        %v1231 = vunpack.c.0.s8 %v1230
        %v1232 = vlaneseq
        %v1233 = vshrl.u32 %v1232, 7
        %v1234 = vsub.s32 %v1231, %v1233
        %v1235 = vrot.slane %v1226, %v1234
        %v1237 = vunpack.c.l.s4 1966171168
        %v1238 = vunpack.c.0.s8 %v1237
        %v1239 = vlaneseq
        %v1240 = vshrl.u32 %v1239, 7
        %v1241 = vsub.s32 %v1238, %v1240
        %v1242 = vrot.slane %v1227, %v1241
        %v1244 = vunpack.c.l.s4 1966171168
        %v1245 = vunpack.c.0.s8 %v1244
        %v1246 = vlaneseq
        %v1247 = vshrl.u32 %v1246, 7
        %v1248 = vsub.s32 %v1245, %v1247
        %v1249 = vrot.slane %v1228, %v1248
        %v1250 = vcombine.low %v1235, %v1242
        %v1252 = vunpack.c.l.s4 1966171168
        %v1253 = vunpack.c.0.s8 %v1252
        %v1254 = vlaneseq
        %v1255 = vshrl.u32 %v1254, 7
        %v1256 = vsub.s32 %v1253, %v1255
        %v1257 = vrot.slane %v1250, %v1256
        %v1259 = vunpack.c.l.s4 1966171168
        %v1260 = vunpack.c.0.s8 %v1259
        %v1261 = vlaneseq
        %v1262 = vshrl.u32 %v1261, 7
        %v1263 = vsub.s32 %v1260, %v1262
        %v1264 = vrot.slane %v1249, %v1263
        %v1265 = vcombine.low %v1257, %v1264
        %v1267 = vsel %vm1219, %v1265, -inf
        %v1269 = vlaneseq
        %v1270 = vshrl.u32 %v1269, 7
        %v1271 = vsub.s32 0, %v1270
        %v1272 = vrot.slane %v1267, %v1271
        %v1273 = vlaneseq
        %v1274 = vshrl.u32 %v1273, 7
        %v1275 = vsub.s32 1, %v1274
        %v1276 = vrot.slane %v1267, %v1275
        %v1277 = vlaneseq
        %v1278 = vshrl.u32 %v1277, 7
        %v1279 = vsub.s32 2, %v1278
        %v1280 = vrot.slane %v1267, %v1279
        %v1281 = vlaneseq
        %v1282 = vshrl.u32 %v1281, 7
        %v1283 = vsub.s32 3, %v1282
        %v1284 = vrot.slane %v1267, %v1283
        %v1285 = vlaneseq
        %v1286 = vshrl.u32 %v1285, 7
        %v1287 = vsub.s32 4, %v1286
        %v1288 = vrot.slane %v1267, %v1287
        %v1289 = vlaneseq
        %v1290 = vshrl.u32 %v1289, 7
        %v1291 = vsub.s32 5, %v1290
        %v1292 = vrot.slane %v1267, %v1291
        %vm1299 = vcmask 1040384
        %v1300 = vsel %vm1299, %v1272, -inf
        %v1301 = vsel %vm1299, %v1276, -inf
        %v1302 = vsel %vm1299, %v1280, -inf
        %v1303 = vsel %vm1299, %v1284, -inf
        %v1304 = vsel %vm1299, %v1288, -inf
        %v1305 = vmax.f32 %v1300, %v1304
        %v1306 = vsel %vm1299, %v1292, -inf
        %v1307 = vmax.f32 %v1301, %v1306
        %v1308 = vmax.f32 %v1305, %v1307
        %v1309 = vmax.f32 %v1302, %v1303
        %v1310 = vmax.f32 %v1308, %v1309
        %1311 = vmax.xlane.f32.xlu0 %v1310
        %v1312 = vpop.xlane.xlu0 %1311
        %v1313 = vadd.f32 %v1312, 1e-06
        %v1314 = vrcp.pop %v1313
        %v1315 = vmul.f32 %v1183, %v1314
        %v1316 = vmul.f32 %v1190, %v1314
        %v1317 = vmul.f32 %v1197, %v1314
        %v1318 = vmul.f32 %v1204, %v1314
        %v1319 = vmul.f32 %v1211, %v1314
        %v1320 = vmul.f32 %v1218, %v1314
        %v1322 = vlaneseq
        %v1323 = vshrl.u32 %v1322, 7
        %v1324 = vsub.s32 0, %v1323
        %v1325 = vrot.slane %v614, %v1324
        %v1326 = vlaneseq
        %v1327 = vshrl.u32 %v1326, 7
        %v1328 = vsub.s32 1, %v1327
        %v1329 = vrot.slane %v614, %v1328
        %v1330 = vlaneseq
        %v1331 = vshrl.u32 %v1330, 7
        %v1332 = vsub.s32 2, %v1331
        %v1333 = vrot.slane %v614, %v1332
        %v1334 = vlaneseq
        %v1335 = vshrl.u32 %v1334, 7
        %v1336 = vsub.s32 3, %v1335
        %v1337 = vrot.slane %v614, %v1336
        %v1338 = vlaneseq
        %v1339 = vshrl.u32 %v1338, 7
        %v1340 = vsub.s32 4, %v1339
        %v1341 = vrot.slane %v614, %v1340
        %v1342 = vlaneseq
        %v1343 = vshrl.u32 %v1342, 7
        %v1344 = vsub.s32 5, %v1343
        %v1345 = vrot.slane %v614, %v1344
        %v1352 = vmul.f32 %v1315, %v1325
        %v1353 = vmul.f32 %v1316, %v1329
        %v1354 = vmul.f32 %v1317, %v1333
        %v1355 = vmul.f32 %v1318, %v1337
        %v1356 = vmul.f32 %v1319, %v1341
        %v1357 = vmul.f32 %v1320, %v1345
        %v1358 = vld [vmem:[%s9] sm:$0xff]
        %1359 = vrot.lane.b32.xlu0 %v1352, 27
        %v1360 = vpop.permute.xlu0 %1359
        %1361 = vrot.lane.b32.xlu0 %v1353, 27
        %v1362 = vpop.permute.xlu0 %1361
        %1363 = vrot.lane.b32.xlu0 %v1354, 27
        %v1364 = vpop.permute.xlu0 %1363
        %1365 = vrot.lane.b32.xlu0 %v1355, 27
        %v1366 = vpop.permute.xlu0 %1365
        %1367 = vrot.lane.b32.xlu0 %v1356, 27
        %v1368 = vpop.permute.xlu0 %1367
        %1369 = vrot.lane.b32.xlu0 %v1357, 27
        %v1370 = vpop.permute.xlu0 %1369
        %v1371 = vlaneseq
        %v1372 = vand.u32 %v1371, 127
        %vm1373 = vcmp.lt.s32.totalorder %v1372, 27
        %v1374 = vsel %vm1373, %v1368, %v1370
        %v1375 = vsel %vm1373, %v1366, %v1368
        %v1376 = vsel %vm1373, %v1364, %v1366
        %v1377 = vsel %vm1373, %v1362, %v1364
        %v1378 = vsel %vm1373, %v1360, %v1362
        %v1379 = vsel %vm1373, %v1370, %v1360
        %1381 = vset.pattern.permute.xlu0 0
        %1382 = vperm.xlu0 %1381, %v1358
        %v1383 = vpop.permute.xlu0 %1382
        %v1385 = vlaneseq
        %v1386 = vshrl.u32 %v1385, 7
        %v1387 = vsub.s32 0, %v1386
        %v1388 = vrot.slane %v1379, %v1387
        %v1389 = vlaneseq
        %v1390 = vshrl.u32 %v1389, 7
        %v1391 = vsub.s32 0, %v1390
        %v1392 = vrot.slane %v1378, %v1391
        %v1393 = vlaneseq
        %v1394 = vshrl.u32 %v1393, 7
        %v1395 = vsub.s32 0, %v1394
        %v1396 = vrot.slane %v1377, %v1395
        %v1397 = vlaneseq
        %v1398 = vshrl.u32 %v1397, 7
        %v1399 = vsub.s32 0, %v1398
        %v1400 = vrot.slane %v1376, %v1399
        %v1401 = vlaneseq
        %v1402 = vshrl.u32 %v1401, 7
        %v1403 = vsub.s32 0, %v1402
        %v1404 = vrot.slane %v1375, %v1403
        %v1405 = vlaneseq
        %v1406 = vshrl.u32 %v1405, 7
        %v1407 = vsub.s32 0, %v1406
        %v1408 = vrot.slane %v1374, %v1407
        %v1409 = vmul.f32 %v1383, %v1388
        %v1410 = vmul.f32 %v1383, %v1392
        %v1411 = vmul.f32 %v1383, %v1396
        %v1412 = vmul.f32 %v1383, %v1400
        %v1413 = vmul.f32 %v1383, %v1404
        %v1414 = vmul.f32 %v1383, %v1408
        %s1415 = scalar_lea.vmem %s9, 8
        %v1416 = vld [vmem:[%s1415] sm:$0xff]
        %1417 = vrot.lane.b32.xlu0 %v1352, 26
        %v1418 = vpop.permute.xlu0 %1417
        %1419 = vrot.lane.b32.xlu0 %v1353, 26
        %v1420 = vpop.permute.xlu0 %1419
        %1421 = vrot.lane.b32.xlu0 %v1354, 26
        %v1422 = vpop.permute.xlu0 %1421
        %1423 = vrot.lane.b32.xlu0 %v1355, 26
        %v1424 = vpop.permute.xlu0 %1423
        %1425 = vrot.lane.b32.xlu0 %v1356, 26
        %v1426 = vpop.permute.xlu0 %1425
        %1427 = vrot.lane.b32.xlu0 %v1357, 26
        %v1428 = vpop.permute.xlu0 %1427
        %vm1429 = vcmp.lt.s32.totalorder %v1372, 26
        %v1430 = vsel %vm1429, %v1426, %v1428
        %v1431 = vsel %vm1429, %v1424, %v1426
        %v1432 = vsel %vm1429, %v1422, %v1424
        %v1433 = vsel %vm1429, %v1420, %v1422
        %v1434 = vsel %vm1429, %v1418, %v1420
        %v1435 = vsel %vm1429, %v1428, %v1418
        %1437 = vset.pattern.permute.xlu0 0
        %1438 = vperm.xlu0 %1437, %v1416
        %v1439 = vpop.permute.xlu0 %1438
        %v1441 = vlaneseq
        %v1442 = vshrl.u32 %v1441, 7
        %v1443 = vsub.s32 0, %v1442
        %v1444 = vrot.slane %v1435, %v1443
        %v1445 = vlaneseq
        %v1446 = vshrl.u32 %v1445, 7
        %v1447 = vsub.s32 0, %v1446
        %v1448 = vrot.slane %v1434, %v1447
        %v1449 = vlaneseq
        %v1450 = vshrl.u32 %v1449, 7
        %v1451 = vsub.s32 0, %v1450
        %v1452 = vrot.slane %v1433, %v1451
        %v1453 = vlaneseq
        %v1454 = vshrl.u32 %v1453, 7
        %v1455 = vsub.s32 0, %v1454
        %v1456 = vrot.slane %v1432, %v1455
        %v1457 = vlaneseq
        %v1458 = vshrl.u32 %v1457, 7
        %v1459 = vsub.s32 0, %v1458
        %v1460 = vrot.slane %v1431, %v1459
        %v1461 = vlaneseq
        %v1462 = vshrl.u32 %v1461, 7
        %v1463 = vsub.s32 0, %v1462
        %v1464 = vrot.slane %v1430, %v1463
        %v1465 = vmul.f32 %v1439, %v1444
        %v1466 = vmul.f32 %v1439, %v1448
        %v1467 = vmul.f32 %v1439, %v1452
        %v1468 = vmul.f32 %v1439, %v1456
        %v1469 = vmul.f32 %v1439, %v1460
        %v1470 = vmul.f32 %v1439, %v1464
        %v1471 = vadd.f32 %v1409, %v1465
        %v1472 = vadd.f32 %v1410, %v1466
        %v1473 = vadd.f32 %v1411, %v1467
        %v1474 = vadd.f32 %v1412, %v1468
        %v1475 = vadd.f32 %v1413, %v1469
        %v1476 = vadd.f32 %v1414, %v1470
        %s1477 = scalar_lea.vmem %s9, 16
        %v1478 = vld [vmem:[%s1477] sm:$0xff]
        %1479 = vrot.lane.b32.xlu0 %v1352, 25
        %v1480 = vpop.permute.xlu0 %1479
        %1481 = vrot.lane.b32.xlu0 %v1353, 25
        %v1482 = vpop.permute.xlu0 %1481
        %1483 = vrot.lane.b32.xlu0 %v1354, 25
        %v1484 = vpop.permute.xlu0 %1483
        %1485 = vrot.lane.b32.xlu0 %v1355, 25
        %v1486 = vpop.permute.xlu0 %1485
        %1487 = vrot.lane.b32.xlu0 %v1356, 25
        %v1488 = vpop.permute.xlu0 %1487
        %1489 = vrot.lane.b32.xlu0 %v1357, 25
        %v1490 = vpop.permute.xlu0 %1489
        %vm1491 = vcmp.lt.s32.totalorder %v1372, 25
        %v1492 = vsel %vm1491, %v1488, %v1490
        %v1493 = vsel %vm1491, %v1486, %v1488
        %v1494 = vsel %vm1491, %v1484, %v1486
        %v1495 = vsel %vm1491, %v1482, %v1484
        %v1496 = vsel %vm1491, %v1480, %v1482
        %v1497 = vsel %vm1491, %v1490, %v1480
        %1499 = vset.pattern.permute.xlu0 0
        %1500 = vperm.xlu0 %1499, %v1478
        %v1501 = vpop.permute.xlu0 %1500
        %v1503 = vlaneseq
        %v1504 = vshrl.u32 %v1503, 7
        %v1505 = vsub.s32 0, %v1504
        %v1506 = vrot.slane %v1497, %v1505
        %v1507 = vlaneseq
        %v1508 = vshrl.u32 %v1507, 7
        %v1509 = vsub.s32 0, %v1508
        %v1510 = vrot.slane %v1496, %v1509
        %v1511 = vlaneseq
        %v1512 = vshrl.u32 %v1511, 7
        %v1513 = vsub.s32 0, %v1512
        %v1514 = vrot.slane %v1495, %v1513
        %v1515 = vlaneseq
        %v1516 = vshrl.u32 %v1515, 7
        %v1517 = vsub.s32 0, %v1516
        %v1518 = vrot.slane %v1494, %v1517
        %v1519 = vlaneseq
        %v1520 = vshrl.u32 %v1519, 7
        %v1521 = vsub.s32 0, %v1520
        %v1522 = vrot.slane %v1493, %v1521
        %v1523 = vlaneseq
        %v1524 = vshrl.u32 %v1523, 7
        %v1525 = vsub.s32 0, %v1524
        %v1526 = vrot.slane %v1492, %v1525
        %v1527 = vmul.f32 %v1501, %v1506
        %v1528 = vmul.f32 %v1501, %v1510
        %v1529 = vmul.f32 %v1501, %v1514
        %v1530 = vmul.f32 %v1501, %v1518
        %v1531 = vmul.f32 %v1501, %v1522
        %v1532 = vmul.f32 %v1501, %v1526
        %v1533 = vadd.f32 %v1471, %v1527
        %v1534 = vadd.f32 %v1472, %v1528
        %v1535 = vadd.f32 %v1473, %v1529
        %v1536 = vadd.f32 %v1474, %v1530
        %v1537 = vadd.f32 %v1475, %v1531
        %v1538 = vadd.f32 %v1476, %v1532
        %s1539 = scalar_lea.vmem %s9, 24
        %v1540 = vld [vmem:[%s1539] sm:$0xff]
        %1541 = vrot.lane.b32.xlu0 %v1352, 1
        %v1542 = vpop.permute.xlu0 %1541
        %1543 = vrot.lane.b32.xlu0 %v1353, 1
        %v1544 = vpop.permute.xlu0 %1543
        %1545 = vrot.lane.b32.xlu0 %v1354, 1
        %v1546 = vpop.permute.xlu0 %1545
        %1547 = vrot.lane.b32.xlu0 %v1355, 1
        %v1548 = vpop.permute.xlu0 %1547
        %1549 = vrot.lane.b32.xlu0 %v1356, 1
        %v1550 = vpop.permute.xlu0 %1549
        %1551 = vrot.lane.b32.xlu0 %v1357, 1
        %v1552 = vpop.permute.xlu0 %1551
        %vm1553 = vcmp.lt.s32.totalorder %v1372, 1
        %v1554 = vsel %vm1553, %v1550, %v1552
        %v1555 = vsel %vm1553, %v1548, %v1550
        %v1556 = vsel %vm1553, %v1546, %v1548
        %v1557 = vsel %vm1553, %v1544, %v1546
        %v1558 = vsel %vm1553, %v1542, %v1544
        %v1559 = vsel %vm1553, %v1552, %v1542
        %1561 = vset.pattern.permute.xlu0 0
        %1562 = vperm.xlu0 %1561, %v1540
        %v1563 = vpop.permute.xlu0 %1562
        %v1565 = vlaneseq
        %v1566 = vshrl.u32 %v1565, 7
        %v1567 = vsub.s32 0, %v1566
        %v1568 = vrot.slane %v1559, %v1567
        %v1569 = vlaneseq
        %v1570 = vshrl.u32 %v1569, 7
        %v1571 = vsub.s32 0, %v1570
        %v1572 = vrot.slane %v1558, %v1571
        %v1573 = vlaneseq
        %v1574 = vshrl.u32 %v1573, 7
        %v1575 = vsub.s32 0, %v1574
        %v1576 = vrot.slane %v1557, %v1575
        %v1577 = vlaneseq
        %v1578 = vshrl.u32 %v1577, 7
        %v1579 = vsub.s32 0, %v1578
        %v1580 = vrot.slane %v1556, %v1579
        %v1581 = vlaneseq
        %v1582 = vshrl.u32 %v1581, 7
        %v1583 = vsub.s32 0, %v1582
        %v1584 = vrot.slane %v1555, %v1583
        %v1585 = vlaneseq
        %v1586 = vshrl.u32 %v1585, 7
        %v1587 = vsub.s32 0, %v1586
        %v1588 = vrot.slane %v1554, %v1587
        %v1589 = vmul.f32 %v1563, %v1568
        %v1590 = vmul.f32 %v1563, %v1572
        %v1591 = vmul.f32 %v1563, %v1576
        %v1592 = vmul.f32 %v1563, %v1580
        %v1593 = vmul.f32 %v1563, %v1584
        %v1594 = vmul.f32 %v1563, %v1588
        %v1595 = vadd.f32 %v1533, %v1589
        %v1596 = vadd.f32 %v1534, %v1590
        %v1597 = vadd.f32 %v1535, %v1591
        %v1598 = vadd.f32 %v1536, %v1592
        %v1599 = vadd.f32 %v1537, %v1593
        %v1600 = vadd.f32 %v1538, %v1594
        %s1601 = scalar_lea.vmem %s9, 32
        %v1602 = vld [vmem:[%s1601] sm:$0xff]
        %1604 = vset.pattern.permute.xlu0 0
        %1605 = vperm.xlu0 %1604, %v1602
        %v1606 = vpop.permute.xlu0 %1605
        %v1608 = vlaneseq
        %v1609 = vshrl.u32 %v1608, 7
        %v1610 = vsub.s32 0, %v1609
        %v1611 = vrot.slane %v1352, %v1610
        %v1612 = vlaneseq
        %v1613 = vshrl.u32 %v1612, 7
        %v1614 = vsub.s32 0, %v1613
        %v1615 = vrot.slane %v1353, %v1614
        %v1616 = vlaneseq
        %v1617 = vshrl.u32 %v1616, 7
        %v1618 = vsub.s32 0, %v1617
        %v1619 = vrot.slane %v1354, %v1618
        %v1620 = vlaneseq
        %v1621 = vshrl.u32 %v1620, 7
        %v1622 = vsub.s32 0, %v1621
        %v1623 = vrot.slane %v1355, %v1622
        %v1624 = vlaneseq
        %v1625 = vshrl.u32 %v1624, 7
        %v1626 = vsub.s32 0, %v1625
        %v1627 = vrot.slane %v1356, %v1626
        %v1628 = vlaneseq
        %v1629 = vshrl.u32 %v1628, 7
        %v1630 = vsub.s32 0, %v1629
        %v1631 = vrot.slane %v1357, %v1630
        %v1632 = vmul.f32 %v1606, %v1611
        %v1633 = vmul.f32 %v1606, %v1615
        %v1634 = vmul.f32 %v1606, %v1619
        %v1635 = vmul.f32 %v1606, %v1623
        %v1636 = vmul.f32 %v1606, %v1627
        %v1637 = vmul.f32 %v1606, %v1631
        %v1638 = vadd.f32 %v1595, %v1632
        %v1639 = vadd.f32 %v1596, %v1633
        %v1640 = vadd.f32 %v1597, %v1634
        %v1641 = vadd.f32 %v1598, %v1635
        %v1642 = vadd.f32 %v1599, %v1636
        %v1643 = vadd.f32 %v1600, %v1637
        %s1644 = scalar_lea.vmem %s9, 40
        %v1645 = vld [vmem:[%s1644] sm:$0xff]
        %1646 = vrot.lane.b32.xlu0 %v1352, 127
        %v1647 = vpop.permute.xlu0 %1646
        %1648 = vrot.lane.b32.xlu0 %v1353, 127
        %v1649 = vpop.permute.xlu0 %1648
        %1650 = vrot.lane.b32.xlu0 %v1354, 127
        %v1651 = vpop.permute.xlu0 %1650
        %1652 = vrot.lane.b32.xlu0 %v1355, 127
        %v1653 = vpop.permute.xlu0 %1652
        %1654 = vrot.lane.b32.xlu0 %v1356, 127
        %v1655 = vpop.permute.xlu0 %1654
        %1656 = vrot.lane.b32.xlu0 %v1357, 127
        %v1657 = vpop.permute.xlu0 %1656
        %vm1658 = vcmp.lt.s32.totalorder %v1372, 127
        %v1659 = vsel %vm1658, %v1655, %v1657
        %v1660 = vsel %vm1658, %v1653, %v1655
        %v1661 = vsel %vm1658, %v1651, %v1653
        %v1662 = vsel %vm1658, %v1649, %v1651
        %v1663 = vsel %vm1658, %v1647, %v1649
        %v1664 = vsel %vm1658, %v1657, %v1647
        %1666 = vset.pattern.permute.xlu0 0
        %1667 = vperm.xlu0 %1666, %v1645
        %v1668 = vpop.permute.xlu0 %1667
        %v1670 = vlaneseq
        %v1671 = vshrl.u32 %v1670, 7
        %v1672 = vsub.s32 0, %v1671
        %v1673 = vrot.slane %v1663, %v1672
        %v1674 = vlaneseq
        %v1675 = vshrl.u32 %v1674, 7
        %v1676 = vsub.s32 0, %v1675
        %v1677 = vrot.slane %v1662, %v1676
        %v1678 = vlaneseq
        %v1679 = vshrl.u32 %v1678, 7
        %v1680 = vsub.s32 0, %v1679
        %v1681 = vrot.slane %v1661, %v1680
        %v1682 = vlaneseq
        %v1683 = vshrl.u32 %v1682, 7
        %v1684 = vsub.s32 0, %v1683
        %v1685 = vrot.slane %v1660, %v1684
        %v1686 = vlaneseq
        %v1687 = vshrl.u32 %v1686, 7
        %v1688 = vsub.s32 0, %v1687
        %v1689 = vrot.slane %v1659, %v1688
        %v1690 = vlaneseq
        %v1691 = vshrl.u32 %v1690, 7
        %v1692 = vsub.s32 0, %v1691
        %v1693 = vrot.slane %v1664, %v1692
        %v1694 = vmul.f32 %v1668, %v1673
        %v1695 = vmul.f32 %v1668, %v1677
        %v1696 = vmul.f32 %v1668, %v1681
        %v1697 = vmul.f32 %v1668, %v1685
        %v1698 = vmul.f32 %v1668, %v1689
        %v1699 = vmul.f32 %v1668, %v1693
        %v1700 = vadd.f32 %v1638, %v1694
        %v1701 = vadd.f32 %v1639, %v1695
        %v1702 = vadd.f32 %v1640, %v1696
        %v1703 = vadd.f32 %v1641, %v1697
        %v1704 = vadd.f32 %v1642, %v1698
        %v1705 = vadd.f32 %v1643, %v1699
        %s1706 = scalar_lea.vmem %s9, 48
        %v1707 = vld [vmem:[%s1706] sm:$0xff]
        %1708 = vrot.lane.b32.xlu0 %v1352, 103
        %v1709 = vpop.permute.xlu0 %1708
        %1710 = vrot.lane.b32.xlu0 %v1353, 103
        %v1711 = vpop.permute.xlu0 %1710
        %1712 = vrot.lane.b32.xlu0 %v1354, 103
        %v1713 = vpop.permute.xlu0 %1712
        %1714 = vrot.lane.b32.xlu0 %v1355, 103
        %v1715 = vpop.permute.xlu0 %1714
        %1716 = vrot.lane.b32.xlu0 %v1356, 103
        %v1717 = vpop.permute.xlu0 %1716
        %1718 = vrot.lane.b32.xlu0 %v1357, 103
        %v1719 = vpop.permute.xlu0 %1718
        %vm1720 = vcmp.lt.s32.totalorder %v1372, 103
        %v1721 = vsel %vm1720, %v1717, %v1719
        %v1722 = vsel %vm1720, %v1715, %v1717
        %v1723 = vsel %vm1720, %v1713, %v1715
        %v1724 = vsel %vm1720, %v1711, %v1713
        %v1725 = vsel %vm1720, %v1709, %v1711
        %v1726 = vsel %vm1720, %v1719, %v1709
        %1728 = vset.pattern.permute.xlu0 0
        %1729 = vperm.xlu0 %1728, %v1707
        %v1730 = vpop.permute.xlu0 %1729
        %v1732 = vlaneseq
        %v1733 = vshrl.u32 %v1732, 7
        %v1734 = vsub.s32 0, %v1733
        %v1735 = vrot.slane %v1725, %v1734
        %v1736 = vlaneseq
        %v1737 = vshrl.u32 %v1736, 7
        %v1738 = vsub.s32 0, %v1737
        %v1739 = vrot.slane %v1724, %v1738
        %v1740 = vlaneseq
        %v1741 = vshrl.u32 %v1740, 7
        %v1742 = vsub.s32 0, %v1741
        %v1743 = vrot.slane %v1723, %v1742
        %v1744 = vlaneseq
        %v1745 = vshrl.u32 %v1744, 7
        %v1746 = vsub.s32 0, %v1745
        %v1747 = vrot.slane %v1722, %v1746
        %v1748 = vlaneseq
        %v1749 = vshrl.u32 %v1748, 7
        %v1750 = vsub.s32 0, %v1749
        %v1751 = vrot.slane %v1721, %v1750
        %v1752 = vlaneseq
        %v1753 = vshrl.u32 %v1752, 7
        %v1754 = vsub.s32 0, %v1753
        %v1755 = vrot.slane %v1726, %v1754
        %v1756 = vmul.f32 %v1730, %v1735
        %v1757 = vmul.f32 %v1730, %v1739
        %v1758 = vmul.f32 %v1730, %v1743
        %v1759 = vmul.f32 %v1730, %v1747
        %v1760 = vmul.f32 %v1730, %v1751
        %v1761 = vmul.f32 %v1730, %v1755
        %v1762 = vadd.f32 %v1700, %v1756
        %v1763 = vadd.f32 %v1701, %v1757
        %v1764 = vadd.f32 %v1702, %v1758
        %v1765 = vadd.f32 %v1703, %v1759
        %v1766 = vadd.f32 %v1704, %v1760
        %v1767 = vadd.f32 %v1705, %v1761
        %s1768 = scalar_lea.vmem %s9, 56
        %v1769 = vld [vmem:[%s1768] sm:$0xff]
        %1770 = vrot.lane.b32.xlu0 %v1352, 102
        %v1771 = vpop.permute.xlu0 %1770
        %1772 = vrot.lane.b32.xlu0 %v1353, 102
        %v1773 = vpop.permute.xlu0 %1772
        %1774 = vrot.lane.b32.xlu0 %v1354, 102
        %v1775 = vpop.permute.xlu0 %1774
        %1776 = vrot.lane.b32.xlu0 %v1355, 102
        %v1777 = vpop.permute.xlu0 %1776
        %1778 = vrot.lane.b32.xlu0 %v1356, 102
        %v1779 = vpop.permute.xlu0 %1778
        %1780 = vrot.lane.b32.xlu0 %v1357, 102
        %v1781 = vpop.permute.xlu0 %1780
        %vm1782 = vcmp.lt.s32.totalorder %v1372, 102
        %v1783 = vsel %vm1782, %v1779, %v1781
        %v1784 = vsel %vm1782, %v1777, %v1779
        %v1785 = vsel %vm1782, %v1775, %v1777
        %v1786 = vsel %vm1782, %v1773, %v1775
        %v1787 = vsel %vm1782, %v1771, %v1773
        %v1788 = vsel %vm1782, %v1781, %v1771
        %1790 = vset.pattern.permute.xlu0 0
        %1791 = vperm.xlu0 %1790, %v1769
        %v1792 = vpop.permute.xlu0 %1791
        %v1794 = vlaneseq
        %v1795 = vshrl.u32 %v1794, 7
        %v1796 = vsub.s32 0, %v1795
        %v1797 = vrot.slane %v1787, %v1796
        %v1798 = vlaneseq
        %v1799 = vshrl.u32 %v1798, 7
        %v1800 = vsub.s32 0, %v1799
        %v1801 = vrot.slane %v1786, %v1800
        %v1802 = vlaneseq
        %v1803 = vshrl.u32 %v1802, 7
        %v1804 = vsub.s32 0, %v1803
        %v1805 = vrot.slane %v1785, %v1804
        %v1806 = vlaneseq
        %v1807 = vshrl.u32 %v1806, 7
        %v1808 = vsub.s32 0, %v1807
        %v1809 = vrot.slane %v1784, %v1808
        %v1810 = vlaneseq
        %v1811 = vshrl.u32 %v1810, 7
        %v1812 = vsub.s32 0, %v1811
        %v1813 = vrot.slane %v1783, %v1812
        %v1814 = vlaneseq
        %v1815 = vshrl.u32 %v1814, 7
        %v1816 = vsub.s32 0, %v1815
        %v1817 = vrot.slane %v1788, %v1816
        %v1818 = vmul.f32 %v1792, %v1797
        %v1819 = vmul.f32 %v1792, %v1801
        %v1820 = vmul.f32 %v1792, %v1805
        %v1821 = vmul.f32 %v1792, %v1809
        %v1822 = vmul.f32 %v1792, %v1813
        %v1823 = vmul.f32 %v1792, %v1817
        %v1824 = vadd.f32 %v1762, %v1818
        %v1825 = vadd.f32 %v1763, %v1819
        %v1826 = vadd.f32 %v1764, %v1820
        %v1827 = vadd.f32 %v1765, %v1821
        %v1828 = vadd.f32 %v1766, %v1822
        %v1829 = vadd.f32 %v1767, %v1823
        %s1830 = scalar_lea.vmem %s9, 64
        %v1831 = vld [vmem:[%s1830] sm:$0xff]
        %1832 = vrot.lane.b32.xlu0 %v1352, 101
        %v1833 = vpop.permute.xlu0 %1832
        %1834 = vrot.lane.b32.xlu0 %v1353, 101
        %v1835 = vpop.permute.xlu0 %1834
        %1836 = vrot.lane.b32.xlu0 %v1354, 101
        %v1837 = vpop.permute.xlu0 %1836
        %1838 = vrot.lane.b32.xlu0 %v1355, 101
        %v1839 = vpop.permute.xlu0 %1838
        %1840 = vrot.lane.b32.xlu0 %v1356, 101
        %v1841 = vpop.permute.xlu0 %1840
        %1842 = vrot.lane.b32.xlu0 %v1357, 101
        %v1843 = vpop.permute.xlu0 %1842
        %vm1844 = vcmp.lt.s32.totalorder %v1372, 101
        %v1845 = vsel %vm1844, %v1841, %v1843
        %v1846 = vsel %vm1844, %v1839, %v1841
        %v1847 = vsel %vm1844, %v1837, %v1839
        %v1848 = vsel %vm1844, %v1835, %v1837
        %v1849 = vsel %vm1844, %v1833, %v1835
        %v1850 = vsel %vm1844, %v1843, %v1833
        %1852 = vset.pattern.permute.xlu0 0
        %1853 = vperm.xlu0 %1852, %v1831
        %v1854 = vpop.permute.xlu0 %1853
        %v1856 = vlaneseq
        %v1857 = vshrl.u32 %v1856, 7
        %v1858 = vsub.s32 0, %v1857
        %v1859 = vrot.slane %v1849, %v1858
        %v1860 = vlaneseq
        %v1861 = vshrl.u32 %v1860, 7
        %v1862 = vsub.s32 0, %v1861
        %v1863 = vrot.slane %v1848, %v1862
        %v1864 = vlaneseq
        %v1865 = vshrl.u32 %v1864, 7
        %v1866 = vsub.s32 0, %v1865
        %v1867 = vrot.slane %v1847, %v1866
        %v1868 = vlaneseq
        %v1869 = vshrl.u32 %v1868, 7
        %v1870 = vsub.s32 0, %v1869
        %v1871 = vrot.slane %v1846, %v1870
        %v1872 = vlaneseq
        %v1873 = vshrl.u32 %v1872, 7
        %v1874 = vsub.s32 0, %v1873
        %v1875 = vrot.slane %v1845, %v1874
        %v1876 = vlaneseq
        %v1877 = vshrl.u32 %v1876, 7
        %v1878 = vsub.s32 0, %v1877
        %v1879 = vrot.slane %v1850, %v1878
        %v1880 = vmul.f32 %v1854, %v1859
        %v1881 = vmul.f32 %v1854, %v1863
        %v1882 = vmul.f32 %v1854, %v1867
        %v1883 = vmul.f32 %v1854, %v1871
        %v1884 = vmul.f32 %v1854, %v1875
        %v1885 = vmul.f32 %v1854, %v1879
        %v1886 = vadd.f32 %v1824, %v1880
        %v1887 = vadd.f32 %v1825, %v1881
        %v1888 = vadd.f32 %v1826, %v1882
        %v1889 = vadd.f32 %v1827, %v1883
        %v1890 = vadd.f32 %v1828, %v1884
        %v1891 = vadd.f32 %v1829, %v1885
        %v1892 = vld [vmem:[%s10] sm:$0xff]
        %1894 = vset.pattern.permute.xlu0 0
        %1895 = vperm.xlu0 %1894, %v1892
        %v1896 = vpop.permute.xlu0 %1895
        %v1898 = vadd.f32 %v1886, %v1896
        %v1899 = vadd.f32 %v1887, %v1896
        %v1900 = vadd.f32 %v1888, %v1896
        %v1901 = vadd.f32 %v1889, %v1896
        %v1902 = vadd.f32 %v1890, %v1896
        %v1903 = vadd.f32 %v1891, %v1896
        %v1904 = vmax.f32 %v1898, 0.0
        %v1905 = vmax.f32 %v1899, 0.0
        %v1906 = vmax.f32 %v1900, 0.0
        %v1907 = vmax.f32 %v1901, 0.0
        %v1908 = vmax.f32 %v1902, 0.0
        %v1909 = vmax.f32 %v1903, 0.0
        %v1910 = vmul.f32 %v1904, %v1325
        %v1911 = vmul.f32 %v1905, %v1329
        %v1912 = vmul.f32 %v1906, %v1333
        %v1913 = vmul.f32 %v1907, %v1337
        %v1914 = vmul.f32 %v1908, %v1341
        %v1915 = vmul.f32 %v1909, %v1345
        %1916 = vrot.lane.b32.xlu0 %v1910, 27
        %v1917 = vpop.permute.xlu0 %1916
        %1918 = vrot.lane.b32.xlu0 %v1911, 27
        %v1919 = vpop.permute.xlu0 %1918
        %1920 = vrot.lane.b32.xlu0 %v1912, 27
        %v1921 = vpop.permute.xlu0 %1920
        %1922 = vrot.lane.b32.xlu0 %v1913, 27
        %v1923 = vpop.permute.xlu0 %1922
        %1924 = vrot.lane.b32.xlu0 %v1914, 27
        %v1925 = vpop.permute.xlu0 %1924
        %1926 = vrot.lane.b32.xlu0 %v1915, 27
        %v1927 = vpop.permute.xlu0 %1926
        %v1928 = vsel %vm1373, %v1925, %v1927
        %v1929 = vsel %vm1373, %v1923, %v1925
        %v1930 = vsel %vm1373, %v1921, %v1923
        %v1931 = vsel %vm1373, %v1919, %v1921
        %v1932 = vsel %vm1373, %v1917, %v1919
        %v1933 = vsel %vm1373, %v1927, %v1917
        %1934 = vrot.lane.b32.xlu0 %v1910, 26
        %v1935 = vpop.permute.xlu0 %1934
        %1936 = vrot.lane.b32.xlu0 %v1911, 26
        %v1937 = vpop.permute.xlu0 %1936
        %1938 = vrot.lane.b32.xlu0 %v1912, 26
        %v1939 = vpop.permute.xlu0 %1938
        %1940 = vrot.lane.b32.xlu0 %v1913, 26
        %v1941 = vpop.permute.xlu0 %1940
        %1942 = vrot.lane.b32.xlu0 %v1914, 26
        %v1943 = vpop.permute.xlu0 %1942
        %1944 = vrot.lane.b32.xlu0 %v1915, 26
        %v1945 = vpop.permute.xlu0 %1944
        %v1946 = vsel %vm1429, %v1943, %v1945
        %v1947 = vsel %vm1429, %v1941, %v1943
        %v1948 = vsel %vm1429, %v1939, %v1941
        %v1949 = vsel %vm1429, %v1937, %v1939
        %v1950 = vsel %vm1429, %v1935, %v1937
        %v1951 = vsel %vm1429, %v1945, %v1935
        %1952 = vrot.lane.b32.xlu0 %v1910, 25
        %v1953 = vpop.permute.xlu0 %1952
        %1954 = vrot.lane.b32.xlu0 %v1911, 25
        %v1955 = vpop.permute.xlu0 %1954
        %1956 = vrot.lane.b32.xlu0 %v1912, 25
        %v1957 = vpop.permute.xlu0 %1956
        %1958 = vrot.lane.b32.xlu0 %v1913, 25
        %v1959 = vpop.permute.xlu0 %1958
        %1960 = vrot.lane.b32.xlu0 %v1914, 25
        %v1961 = vpop.permute.xlu0 %1960
        %1962 = vrot.lane.b32.xlu0 %v1915, 25
        %v1963 = vpop.permute.xlu0 %1962
        %v1964 = vsel %vm1491, %v1961, %v1963
        %v1965 = vsel %vm1491, %v1959, %v1961
        %v1966 = vsel %vm1491, %v1957, %v1959
        %v1967 = vsel %vm1491, %v1955, %v1957
        %v1968 = vsel %vm1491, %v1953, %v1955
        %v1969 = vsel %vm1491, %v1963, %v1953
        %1970 = vrot.lane.b32.xlu0 %v1910, 1
        %v1971 = vpop.permute.xlu0 %1970
        %1972 = vrot.lane.b32.xlu0 %v1911, 1
        %v1973 = vpop.permute.xlu0 %1972
        %1974 = vrot.lane.b32.xlu0 %v1912, 1
        %v1975 = vpop.permute.xlu0 %1974
        %1976 = vrot.lane.b32.xlu0 %v1913, 1
        %v1977 = vpop.permute.xlu0 %1976
        %1978 = vrot.lane.b32.xlu0 %v1914, 1
        %v1979 = vpop.permute.xlu0 %1978
        %1980 = vrot.lane.b32.xlu0 %v1915, 1
        %v1981 = vpop.permute.xlu0 %1980
        %v1982 = vsel %vm1553, %v1979, %v1981
        %v1983 = vsel %vm1553, %v1977, %v1979
        %v1984 = vsel %vm1553, %v1975, %v1977
        %v1985 = vsel %vm1553, %v1973, %v1975
        %v1986 = vsel %vm1553, %v1971, %v1973
        %v1987 = vsel %vm1553, %v1981, %v1971
        %1988 = vrot.lane.b32.xlu0 %v1910, 127
        %v1989 = vpop.permute.xlu0 %1988
        %1990 = vrot.lane.b32.xlu0 %v1911, 127
        %v1991 = vpop.permute.xlu0 %1990
        %1992 = vrot.lane.b32.xlu0 %v1912, 127
        %v1993 = vpop.permute.xlu0 %1992
        %1994 = vrot.lane.b32.xlu0 %v1913, 127
        %v1995 = vpop.permute.xlu0 %1994
        %1996 = vrot.lane.b32.xlu0 %v1914, 127
        %v1997 = vpop.permute.xlu0 %1996
        %1998 = vrot.lane.b32.xlu0 %v1915, 127
        %v1999 = vpop.permute.xlu0 %1998
        %v2000 = vsel %vm1658, %v1997, %v1999
        %v2001 = vsel %vm1658, %v1995, %v1997
        %v2002 = vsel %vm1658, %v1993, %v1995
        %v2003 = vsel %vm1658, %v1991, %v1993
        %v2004 = vsel %vm1658, %v1989, %v1991
        %v2005 = vsel %vm1658, %v1999, %v1989
        %2006 = vrot.lane.b32.xlu0 %v1910, 103
        %v2007 = vpop.permute.xlu0 %2006
        %2008 = vrot.lane.b32.xlu0 %v1911, 103
        %v2009 = vpop.permute.xlu0 %2008
        %2010 = vrot.lane.b32.xlu0 %v1912, 103
        %v2011 = vpop.permute.xlu0 %2010
        %2012 = vrot.lane.b32.xlu0 %v1913, 103
        %v2013 = vpop.permute.xlu0 %2012
        %2014 = vrot.lane.b32.xlu0 %v1914, 103
        %v2015 = vpop.permute.xlu0 %2014
        %2016 = vrot.lane.b32.xlu0 %v1915, 103
        %v2017 = vpop.permute.xlu0 %2016
        %v2018 = vsel %vm1720, %v2015, %v2017
        %v2019 = vsel %vm1720, %v2013, %v2015
        %v2020 = vsel %vm1720, %v2011, %v2013
        %v2021 = vsel %vm1720, %v2009, %v2011
        %v2022 = vsel %vm1720, %v2007, %v2009
        %v2023 = vsel %vm1720, %v2017, %v2007
        %2024 = vrot.lane.b32.xlu0 %v1910, 102
        %v2025 = vpop.permute.xlu0 %2024
        %2026 = vrot.lane.b32.xlu0 %v1911, 102
        %v2027 = vpop.permute.xlu0 %2026
        %2028 = vrot.lane.b32.xlu0 %v1912, 102
        %v2029 = vpop.permute.xlu0 %2028
        %2030 = vrot.lane.b32.xlu0 %v1913, 102
        %v2031 = vpop.permute.xlu0 %2030
        %2032 = vrot.lane.b32.xlu0 %v1914, 102
        %v2033 = vpop.permute.xlu0 %2032
        %2034 = vrot.lane.b32.xlu0 %v1915, 102
        %v2035 = vpop.permute.xlu0 %2034
        %v2036 = vsel %vm1782, %v2033, %v2035
        %v2037 = vsel %vm1782, %v2031, %v2033
        %v2038 = vsel %vm1782, %v2029, %v2031
        %v2039 = vsel %vm1782, %v2027, %v2029
        %v2040 = vsel %vm1782, %v2025, %v2027
        %v2041 = vsel %vm1782, %v2035, %v2025
        %2042 = vrot.lane.b32.xlu0 %v1910, 101
        %v2043 = vpop.permute.xlu0 %2042
        %2044 = vrot.lane.b32.xlu0 %v1911, 101
        %v2045 = vpop.permute.xlu0 %2044
        %2046 = vrot.lane.b32.xlu0 %v1912, 101
        %v2047 = vpop.permute.xlu0 %2046
        %2048 = vrot.lane.b32.xlu0 %v1913, 101
        %v2049 = vpop.permute.xlu0 %2048
        %2050 = vrot.lane.b32.xlu0 %v1914, 101
        %v2051 = vpop.permute.xlu0 %2050
        %2052 = vrot.lane.b32.xlu0 %v1915, 101
        %v2053 = vpop.permute.xlu0 %2052
        %v2054 = vsel %vm1844, %v2051, %v2053
        %v2055 = vsel %vm1844, %v2049, %v2051
        %v2056 = vsel %vm1844, %v2047, %v2049
        %v2057 = vsel %vm1844, %v2045, %v2047
        %v2058 = vsel %vm1844, %v2043, %v2045
        %v2059 = vsel %vm1844, %v2053, %v2043
        %v2060 = vld [vmem:[%s11] sm:$0xff]
        %v2061 = vld [vmem:[%s11 + $0x8] sm:$0xff]
        %v2062 = vld [vmem:[%s12] sm:$0xff]
        %v2063 = vld [vmem:[%s12 + $0x8] sm:$0xff]
        %2065 = vset.pattern.permute.xlu0 0
        %2066 = vperm.xlu0 %2065, %v2062
        %v2067 = vpop.permute.xlu0 %2066
        %2070 = vset.pattern.permute.xlu0 0
        %2071 = vperm.xlu0 %2070, %v2063
        %v2072 = vpop.permute.xlu0 %2071
        %vm2074 = vcmask 588800
        %v2076 = vsel %vm2074, %v2060, 0
        %v2079 = vsel %vm2074, %v2061, 0
        %2081 = vmatprep.subr.mxu0 %v1932
        %2082 = vmatpush1.msra.mxu0 %v1933
        %2083 = vmatprep.subr.mxu0 %v1950
        %2084 = vmatpush1.msra.mxu0 %v1951
        %2085 = vmatprep.subr.mxu0 %v1968
        %2086 = vmatpush1.msra.mxu0 %v1969
        %2087 = vmatprep.subr.mxu0 %v1986
        %2088 = vmatpush1.msra.mxu0 %v1987
        %2089 = vmatprep.subr.mxu0 %v1911
        %2090 = vmatpush1.msra.mxu0 %v1910
        %2091 = vmatprep.subr.mxu0 %v2003
        %2092 = vmatpush1.msra.mxu0 %v2004
        %2093 = vmatprep.subr.mxu0 %v2021
        %2094 = vmatpush1.msra.mxu0 %v2022
        %2095 = vmatprep.subr.mxu0 %v2039
        %2096 = vmatpush1.msra.mxu0 %v2040
        %2097 = vmatprep.subr.mxu0 %v2057
        %2098 = vmatpush1.msra.mxu0 %v2058
        %2099 = vmatprep.subr.mxu0 0.0
        %2100 = vmatpush1.msra.mxu0 0.0
        %2101 = vmatprep.subr.mxu0 0.0
        %2102 = vmatpush1.msra.mxu0 0.0
        %2103 = vmatprep.subr.mxu0 0.0
        %2104 = vmatpush1.msra.mxu0 0.0
        %2105 = vmatprep.subr.mxu0 0.0
        %2106 = vmatpush1.msra.mxu0 0.0
        %2107 = vmatprep.subr.mxu0 0.0
        %2108 = vmatpush1.msra.mxu0 0.0
        %2109 = vmatprep.subr.mxu0 0.0
        %2110 = vmatpush1.msra.mxu0 0.0
        %2111 = vmatprep.subr.mxu0 0.0
        %2112 = vmatpush1.msra.mxu0 0.0
        %2113 = vmatprep.subr.mxu0 0.0
        %2114 = vmatpush1.msra.mxu0 0.0
        %2115 = vmatprep.subr.mxu0 0.0
        %2116 = vmatpush1.msra.mxu0 0.0
        %2117 = vmatprep.subr.mxu0 0.0
        %2118 = vmatpush1.msra.mxu0 0.0
        %2119 = vmatprep.subr.mxu0 0.0
        %2120 = vmatpush1.msra.mxu0 0.0
        %2121 = vmatprep.subr.mxu0 0.0
        %2122 = vmatpush1.msra.mxu0 0.0
        %2123 = vmatprep.subr.mxu0 0.0
        %2124 = vmatpush1.msra.mxu0 0.0
        %2125 = vmatprep.subr.mxu0 0.0
        %2126 = vmatpush1.msra.mxu0 0.0
        %2127 = vmatprep.subr.mxu0 0.0
        %2128 = vmatpush1.msra.mxu0 0.0
        %2129 = vmatprep.subr.mxu0 0.0
        %2130 = vmatpush1.msra.mxu0 0.0
        %2131 = vmatprep.subr.mxu0 0.0
        %2132 = vmatpush1.msra.mxu0 0.0
        %2133 = vmatprep.subr.mxu0 0.0
        %2134 = vmatpush1.msra.mxu0 0.0
        %2135 = vmatprep.subr.mxu0 0.0
        %2136 = vmatpush1.msra.mxu0 0.0
        %2137 = vmatprep.subr.mxu0 0.0
        %2138 = vmatpush1.msra.mxu0 0.0
        %2139 = vmatprep.subr.mxu0 0.0
        %2140 = vmatpush1.msra.mxu0 0.0
        %2141 = vmatprep.subr.mxu0 0.0
        %2142 = vmatpush1.msra.mxu0 0.0
        %2143 = vmatprep.subr.mxu0 0.0
        %2144 = vmatpush1.msra.mxu0 0.0
        %2145 = vmatprep.mubr.f32.mxu0 0.0
        %2146 = vmatmul.mubr.f32.gmra.mrb[0].mxu0 %v2076
        %v2147 = vpop.f32.mrb[0].mxu0
        %v2148 = vadd.f32 %v2067, %v2147
        %v2149 = vpop.f32.mrb[0].mxu0
        %v2150 = vadd.f32 %v2067, %v2149
        %2151 = vmatprep.mubr.f32.mxu0 0.0
        %2152 = vmatmul.mubr.f32.gmra.mrb[0].mxu0 %v2079
        %v2153 = vpop.f32.mrb[0].mxu0
        %v2154 = vadd.f32 %v2072, %v2153
        %v2155 = vpop.f32.mrb[0].mxu0
        %v2156 = vadd.f32 %v2072, %v2155
        %2157 = vdwg.mxu0
        %2158 = vmatprep.subr.mxu0 %v1930
        %2159 = vmatpush1.msra.mxu0 %v1931
        %2160 = vmatprep.subr.mxu0 %v1948
        %2161 = vmatpush1.msra.mxu0 %v1949
        %2162 = vmatprep.subr.mxu0 %v1966
        %2163 = vmatpush1.msra.mxu0 %v1967
        %2164 = vmatprep.subr.mxu0 %v1984
        %2165 = vmatpush1.msra.mxu0 %v1985
        %2166 = vmatprep.subr.mxu0 %v1913
        %2167 = vmatpush1.msra.mxu0 %v1912
        %2168 = vmatprep.subr.mxu0 %v2001
        %2169 = vmatpush1.msra.mxu0 %v2002
        %2170 = vmatprep.subr.mxu0 %v2019
        %2171 = vmatpush1.msra.mxu0 %v2020
        %2172 = vmatprep.subr.mxu0 %v2037
        %2173 = vmatpush1.msra.mxu0 %v2038
        %2174 = vmatprep.subr.mxu0 %v2055
        %2175 = vmatpush1.msra.mxu0 %v2056
        %2176 = vmatprep.subr.mxu0 0.0
        %2177 = vmatpush1.msra.mxu0 0.0
        %2178 = vmatprep.subr.mxu0 0.0
        %2179 = vmatpush1.msra.mxu0 0.0
        %2180 = vmatprep.subr.mxu0 0.0
        %2181 = vmatpush1.msra.mxu0 0.0
        %2182 = vmatprep.subr.mxu0 0.0
        %2183 = vmatpush1.msra.mxu0 0.0
        %2184 = vmatprep.subr.mxu0 0.0
        %2185 = vmatpush1.msra.mxu0 0.0
        %2186 = vmatprep.subr.mxu0 0.0
        %2187 = vmatpush1.msra.mxu0 0.0
        %2188 = vmatprep.subr.mxu0 0.0
        %2189 = vmatpush1.msra.mxu0 0.0
        %2190 = vmatprep.subr.mxu0 0.0
        %2191 = vmatpush1.msra.mxu0 0.0
        %2192 = vmatprep.subr.mxu0 0.0
        %2193 = vmatpush1.msra.mxu0 0.0
        %2194 = vmatprep.subr.mxu0 0.0
        %2195 = vmatpush1.msra.mxu0 0.0
        %2196 = vmatprep.subr.mxu0 0.0
        %2197 = vmatpush1.msra.mxu0 0.0
        %2198 = vmatprep.subr.mxu0 0.0
        %2199 = vmatpush1.msra.mxu0 0.0
        %2200 = vmatprep.subr.mxu0 0.0
        %2201 = vmatpush1.msra.mxu0 0.0
        %2202 = vmatprep.subr.mxu0 0.0
        %2203 = vmatpush1.msra.mxu0 0.0
        %2204 = vmatprep.subr.mxu0 0.0
        %2205 = vmatpush1.msra.mxu0 0.0
        %2206 = vmatprep.subr.mxu0 0.0
        %2207 = vmatpush1.msra.mxu0 0.0
        %2208 = vmatprep.subr.mxu0 0.0
        %2209 = vmatpush1.msra.mxu0 0.0
        %2210 = vmatprep.subr.mxu0 0.0
        %2211 = vmatpush1.msra.mxu0 0.0
        %2212 = vmatprep.subr.mxu0 0.0
        %2213 = vmatpush1.msra.mxu0 0.0
        %2214 = vmatprep.subr.mxu0 0.0
        %2215 = vmatpush1.msra.mxu0 0.0
        %2216 = vmatprep.subr.mxu0 0.0
        %2217 = vmatpush1.msra.mxu0 0.0
        %2218 = vmatprep.subr.mxu0 0.0
        %2219 = vmatpush1.msra.mxu0 0.0
        %2220 = vmatprep.subr.mxu0 0.0
        %2221 = vmatpush1.msra.mxu0 0.0
        %2222 = vmatprep.mubr.f32.mxu0 0.0
        %2223 = vmatmul.mubr.f32.gmra.mrb[0].mxu0 %v2076
        %v2224 = vpop.f32.mrb[0].mxu0
        %v2225 = vadd.f32 %v2067, %v2224
        %v2226 = vpop.f32.mrb[0].mxu0
        %v2227 = vadd.f32 %v2067, %v2226
        %2228 = vmatprep.mubr.f32.mxu0 0.0
        %2229 = vmatmul.mubr.f32.gmra.mrb[0].mxu0 %v2079
        %v2230 = vpop.f32.mrb[0].mxu0
        %v2231 = vadd.f32 %v2072, %v2230
        %v2232 = vpop.f32.mrb[0].mxu0
        %v2233 = vadd.f32 %v2072, %v2232
        %2234 = vdwg.mxu0
        %2235 = vmatprep.subr.mxu0 %v1928
        %2236 = vmatpush1.msra.mxu0 %v1929
        %2237 = vmatprep.subr.mxu0 %v1946
        %2238 = vmatpush1.msra.mxu0 %v1947
        %2239 = vmatprep.subr.mxu0 %v1964
        %2240 = vmatpush1.msra.mxu0 %v1965
        %2241 = vmatprep.subr.mxu0 %v1982
        %2242 = vmatpush1.msra.mxu0 %v1983
        %2243 = vmatprep.subr.mxu0 %v1915
        %2244 = vmatpush1.msra.mxu0 %v1914
        %2245 = vmatprep.subr.mxu0 %v2005
        %2246 = vmatpush1.msra.mxu0 %v2000
        %2247 = vmatprep.subr.mxu0 %v2023
        %2248 = vmatpush1.msra.mxu0 %v2018
        %2249 = vmatprep.subr.mxu0 %v2041
        %2250 = vmatpush1.msra.mxu0 %v2036
        %2251 = vmatprep.subr.mxu0 %v2059
        %2252 = vmatpush1.msra.mxu0 %v2054
        %2253 = vmatprep.subr.mxu0 0.0
        %2254 = vmatpush1.msra.mxu0 0.0
        %2255 = vmatprep.subr.mxu0 0.0
        %2256 = vmatpush1.msra.mxu0 0.0
        %2257 = vmatprep.subr.mxu0 0.0
        %2258 = vmatpush1.msra.mxu0 0.0
        %2259 = vmatprep.subr.mxu0 0.0
        %2260 = vmatpush1.msra.mxu0 0.0
        %2261 = vmatprep.subr.mxu0 0.0
        %2262 = vmatpush1.msra.mxu0 0.0
        %2263 = vmatprep.subr.mxu0 0.0
        %2264 = vmatpush1.msra.mxu0 0.0
        %2265 = vmatprep.subr.mxu0 0.0
        %2266 = vmatpush1.msra.mxu0 0.0
        %2267 = vmatprep.subr.mxu0 0.0
        %2268 = vmatpush1.msra.mxu0 0.0
        %2269 = vmatprep.subr.mxu0 0.0
        %2270 = vmatpush1.msra.mxu0 0.0
        %2271 = vmatprep.subr.mxu0 0.0
        %2272 = vmatpush1.msra.mxu0 0.0
        %2273 = vmatprep.subr.mxu0 0.0
        %2274 = vmatpush1.msra.mxu0 0.0
        %2275 = vmatprep.subr.mxu0 0.0
        %2276 = vmatpush1.msra.mxu0 0.0
        %2277 = vmatprep.subr.mxu0 0.0
        %2278 = vmatpush1.msra.mxu0 0.0
        %2279 = vmatprep.subr.mxu0 0.0
        %2280 = vmatpush1.msra.mxu0 0.0
        %2281 = vmatprep.subr.mxu0 0.0
        %2282 = vmatpush1.msra.mxu0 0.0
        %2283 = vmatprep.subr.mxu0 0.0
        %2284 = vmatpush1.msra.mxu0 0.0
        %2285 = vmatprep.subr.mxu0 0.0
        %2286 = vmatpush1.msra.mxu0 0.0
        %2287 = vmatprep.subr.mxu0 0.0
        %2288 = vmatpush1.msra.mxu0 0.0
        %2289 = vmatprep.subr.mxu0 0.0
        %2290 = vmatpush1.msra.mxu0 0.0
        %2291 = vmatprep.subr.mxu0 0.0
        %2292 = vmatpush1.msra.mxu0 0.0
        %2293 = vmatprep.subr.mxu0 0.0
        %2294 = vmatpush1.msra.mxu0 0.0
        %2295 = vmatprep.subr.mxu0 0.0
        %2296 = vmatpush1.msra.mxu0 0.0
        %2297 = vmatprep.subr.mxu0 0.0
        %2298 = vmatpush1.msra.mxu0 0.0
        %2299 = vmatprep.mubr.f32.mxu0 0.0
        %2300 = vmatmul.mubr.f32.gmra.mrb[0].mxu0 %v2076
        %v2301 = vpop.f32.mrb[0].mxu0
        %v2302 = vadd.f32 %v2067, %v2301
        %v2303 = vpop.f32.mrb[0].mxu0
        %v2304 = vadd.f32 %v2067, %v2303
        %2305 = vmatprep.mubr.f32.mxu0 0.0
        %2306 = vmatmul.mubr.f32.gmra.mrb[0].mxu0 %v2079
        %v2307 = vpop.f32.mrb[0].mxu0
        %v2308 = vadd.f32 %v2072, %v2307
        %v2309 = vpop.f32.mrb[0].mxu0
        %v2310 = vadd.f32 %v2072, %v2309
        %2311 = vdwg.mxu0
        %v2312 = vmax.f32 %v2148, 0.0
        %v2313 = vmax.f32 %v2150, 0.0
        %v2314 = vmax.f32 %v2225, 0.0
        %v2315 = vmax.f32 %v2227, 0.0
        %v2316 = vmax.f32 %v2302, 0.0
        %v2317 = vmax.f32 %v2304, 0.0
        %v2318 = vmax.f32 %v2154, 0.0
        %v2319 = vmax.f32 %v2156, 0.0
        %v2320 = vmax.f32 %v2231, 0.0
        %v2321 = vmax.f32 %v2233, 0.0
        %v2322 = vmax.f32 %v2308, 0.0
        %v2323 = vmax.f32 %v2310, 0.0
        %v2324 = vmul.f32 %v2312, %v1325
        %v2325 = vmul.f32 %v2313, %v1329
        %v2326 = vmul.f32 %v2314, %v1333
        %v2327 = vmul.f32 %v2315, %v1337
        %v2328 = vmul.f32 %v2316, %v1341
        %v2329 = vmul.f32 %v2317, %v1345
        %v2330 = vmul.f32 %v2318, %v1325
        %v2331 = vmul.f32 %v2319, %v1329
        %v2332 = vmul.f32 %v2320, %v1333
        %v2333 = vmul.f32 %v2321, %v1337
        %v2334 = vmul.f32 %v2322, %v1341
        %v2335 = vmul.f32 %v2323, %v1345
        %v2336 = vld [vmem:[#allocation9] sm:$0xff]
        %v2337 = vld [vmem:[#allocation9 + $0x8] sm:$0xff]
        %v2338 = vld [vmem:[#allocation9 + $0x10] sm:$0xff]
        %v2339 = vld [vmem:[#allocation9 + $0x18] sm:$0xff]
        %v2340 = vld [vmem:[#allocation9 + $0x20] sm:$0xff]
        %v2341 = vld [vmem:[#allocation9 + $0x28] sm:$0xff]
        %v2342 = vld [vmem:[#allocation9 + $0x30] sm:$0xff]
        %v2343 = vld [vmem:[#allocation9 + $0x38] sm:$0xff]
        %v2344 = vld [vmem:[#allocation9 + $0x40] sm:$0xff]
        %v2345 = vld [vmem:[#allocation9 + $0x48] sm:$0xff]
        %v2346 = vld [vmem:[#allocation9 + $0x50] sm:$0xff]
        %v2347 = vld [vmem:[#allocation9 + $0x58] sm:$0xff]
        %v2348 = vld [vmem:[#allocation9 + $0x60] sm:$0xff]
        %v2349 = vld [vmem:[#allocation9 + $0x68] sm:$0xff]
        %v2350 = vld [vmem:[#allocation9 + $0x70] sm:$0xff]
        %v2351 = vld [vmem:[#allocation9 + $0x78] sm:$0xff]
        %v2352 = vld [vmem:[#allocation9 + $0x80] sm:$0xff]
        %v2353 = vld [vmem:[#allocation9 + $0x88] sm:$0xff]
        %v2354 = vld [vmem:[#allocation9 + $0x90] sm:$0xff]
        %v2355 = vld [vmem:[#allocation9 + $0x98] sm:$0xff]
        %v2356 = vld [vmem:[#allocation9 + $0xa0] sm:$0xff]
        %v2357 = vld [vmem:[#allocation9 + $0xa8] sm:$0xff]
        %v2358 = vld [vmem:[#allocation9 + $0xb0] sm:$0xff]
        %v2359 = vld [vmem:[#allocation9 + $0xb8] sm:$0xff]
        %v2360 = vld [vmem:[#allocation9 + $0xc0] sm:$0xff]
        %v2361 = vld [vmem:[#allocation9 + $0xc8] sm:$0xff]
        %v2362 = vld [vmem:[#allocation9 + $0xd0] sm:$0xff]
        %v2363 = vld [vmem:[#allocation9 + $0xd8] sm:$0xff]
        %v2364 = vld [vmem:[#allocation9 + $0xe0] sm:$0xff]
        %v2365 = vld [vmem:[#allocation9 + $0xe8] sm:$0xff]
        %v2366 = vld [vmem:[#allocation9 + $0xf0] sm:$0xff]
        %v2367 = vld [vmem:[#allocation9 + $0xf8] sm:$0xff]
        %v2368 = vld [vmem:[#allocation9 + $0x100] sm:$0xff]
        %v2369 = vld [vmem:[#allocation9 + $0x108] sm:$0xff]
        %v2370 = vld [vmem:[#allocation9 + $0x110] sm:$0xff]
        %v2371 = vld [vmem:[#allocation9 + $0x118] sm:$0xff]
        %v2372 = vld [vmem:[#allocation9 + $0x120] sm:$0xff]
        %v2373 = vld [vmem:[#allocation9 + $0x128] sm:$0xff]
        %v2374 = vld [vmem:[#allocation9 + $0x130] sm:$0xff]
        %v2375 = vld [vmem:[#allocation9 + $0x138] sm:$0xff]
        %v2376 = vld [vmem:[#allocation9 + $0x140] sm:$0xff]
        %v2377 = vld [vmem:[#allocation9 + $0x148] sm:$0xff]
        %v2378 = vld [vmem:[#allocation9 + $0x150] sm:$0xff]
        %v2379 = vld [vmem:[#allocation9 + $0x158] sm:$0xff]
        %v2380 = vld [vmem:[#allocation9 + $0x160] sm:$0xff]
        %v2381 = vld [vmem:[#allocation9 + $0x168] sm:$0xff]
        %v2382 = vld [vmem:[#allocation9 + $0x170] sm:$0xff]
        %v2383 = vld [vmem:[#allocation9 + $0x178] sm:$0xff]
        %v2384 = vld [vmem:[#allocation9 + $0x180] sm:$0xff]
        %v2385 = vld [vmem:[#allocation9 + $0x188] sm:$0xff]
        %v2386 = vld [vmem:[#allocation9 + $0x190] sm:$0xff]
        %v2387 = vld [vmem:[#allocation9 + $0x198] sm:$0xff]
        %v2388 = vld [vmem:[#allocation9 + $0x1a0] sm:$0xff]
        %v2389 = vld [vmem:[#allocation9 + $0x1a8] sm:$0xff]
        %v2390 = vld [vmem:[#allocation9 + $0x1b0] sm:$0xff]
        %v2391 = vld [vmem:[#allocation9 + $0x1b8] sm:$0xff]
        %v2392 = vld [vmem:[#allocation9 + $0x1c0] sm:$0xff]
        %v2393 = vld [vmem:[#allocation9 + $0x1c8] sm:$0xff]
        %v2394 = vld [vmem:[#allocation9 + $0x1d0] sm:$0xff]
        %v2395 = vld [vmem:[#allocation9 + $0x1d8] sm:$0xff]
        %v2396 = vld [vmem:[#allocation9 + $0x1e0] sm:$0xff]
        %v2397 = vld [vmem:[#allocation9 + $0x1e8] sm:$0xff]
        %v2398 = vld [vmem:[#allocation9 + $0x1f0] sm:$0xff]
        %v2399 = vld [vmem:[#allocation9 + $0x1f8] sm:$0xff]
        %v2400 = vld [vmem:[#allocation9 + $0x200] sm:$0xff]
        %v2401 = vld [vmem:[#allocation9 + $0x208] sm:$0xff]
        %v2402 = vld [vmem:[#allocation9 + $0x210] sm:$0xff]
        %v2403 = vld [vmem:[#allocation9 + $0x218] sm:$0xff]
        %v2404 = vld [vmem:[#allocation9 + $0x220] sm:$0xff]
        %v2405 = vld [vmem:[#allocation9 + $0x228] sm:$0xff]
        %v2406 = vld [vmem:[#allocation9 + $0x230] sm:$0xff]
        %v2407 = vld [vmem:[#allocation9 + $0x238] sm:$0xff]
        %v2408 = vld [vmem:[#allocation9 + $0x240] sm:$0xff]
        %v2409 = vld [vmem:[#allocation9 + $0x248] sm:$0xff]
        %v2410 = vld [vmem:[#allocation9 + $0x250] sm:$0xff]
        %v2411 = vld [vmem:[#allocation9 + $0x258] sm:$0xff]
        %v2412 = vld [vmem:[#allocation9 + $0x260] sm:$0xff]
        %v2413 = vld [vmem:[#allocation9 + $0x268] sm:$0xff]
        %v2414 = vld [vmem:[#allocation9 + $0x270] sm:$0xff]
        %v2415 = vld [vmem:[#allocation9 + $0x278] sm:$0xff]
        %v2416 = vld [vmem:[#allocation9 + $0x280] sm:$0xff]
        %v2417 = vld [vmem:[#allocation9 + $0x288] sm:$0xff]
        %v2418 = vld [vmem:[#allocation9 + $0x290] sm:$0xff]
        %v2419 = vld [vmem:[#allocation9 + $0x298] sm:$0xff]
        %v2420 = vld [vmem:[#allocation9 + $0x2a0] sm:$0xff]
        %v2421 = vld [vmem:[#allocation9 + $0x2a8] sm:$0xff]
        %v2422 = vld [vmem:[#allocation9 + $0x2b0] sm:$0xff]
        %v2423 = vld [vmem:[#allocation9 + $0x2b8] sm:$0xff]
        %v2424 = vld [vmem:[#allocation9 + $0x2c0] sm:$0xff]
        %v2425 = vld [vmem:[#allocation9 + $0x2c8] sm:$0xff]
        %v2426 = vld [vmem:[#allocation9 + $0x2d0] sm:$0xff]
        %v2427 = vld [vmem:[#allocation9 + $0x2d8] sm:$0xff]
        %v2428 = vld [vmem:[#allocation9 + $0x2e0] sm:$0xff]
        %v2429 = vld [vmem:[#allocation9 + $0x2e8] sm:$0xff]
        %v2430 = vld [vmem:[#allocation9 + $0x2f0] sm:$0xff]
        %v2431 = vld [vmem:[#allocation9 + $0x2f8] sm:$0xff]
        %v2432 = vld [vmem:[#allocation9 + $0x300] sm:$0xff]
        %v2433 = vld [vmem:[#allocation9 + $0x308] sm:$0xff]
        %v2434 = vld [vmem:[#allocation9 + $0x310] sm:$0xff]
        %v2435 = vld [vmem:[#allocation9 + $0x318] sm:$0xff]
        %v2436 = vld [vmem:[#allocation9 + $0x320] sm:$0xff]
        %v2437 = vld [vmem:[#allocation9 + $0x328] sm:$0xff]
        %v2438 = vld [vmem:[#allocation9 + $0x330] sm:$0xff]
        %v2439 = vld [vmem:[#allocation9 + $0x338] sm:$0xff]
        %v2440 = vld [vmem:[#allocation9 + $0x340] sm:$0xff]
        %v2441 = vld [vmem:[#allocation9 + $0x348] sm:$0xff]
        %v2442 = vld [vmem:[#allocation9 + $0x350] sm:$0xff]
        %v2443 = vld [vmem:[#allocation9 + $0x358] sm:$0xff]
        %v2444 = vld [vmem:[#allocation9 + $0x360] sm:$0xff]
        %v2445 = vld [vmem:[#allocation9 + $0x368] sm:$0xff]
        %v2446 = vld [vmem:[#allocation9 + $0x370] sm:$0xff]
        %v2447 = vld [vmem:[#allocation9 + $0x378] sm:$0xff]
        %v2448 = vld [vmem:[#allocation9 + $0x380] sm:$0xff]
        %v2449 = vld [vmem:[#allocation9 + $0x388] sm:$0xff]
        %v2450 = vld [vmem:[#allocation9 + $0x390] sm:$0xff]
        %v2451 = vld [vmem:[#allocation9 + $0x398] sm:$0xff]
        %v2452 = vld [vmem:[#allocation9 + $0x3a0] sm:$0xff]
        %v2453 = vld [vmem:[#allocation9 + $0x3a8] sm:$0xff]
        %v2454 = vld [vmem:[#allocation9 + $0x3b0] sm:$0xff]
        %v2455 = vld [vmem:[#allocation9 + $0x3b8] sm:$0xff]
        %v2456 = vld [vmem:[#allocation9 + $0x3c0] sm:$0xff]
        %v2457 = vld [vmem:[#allocation9 + $0x3c8] sm:$0xff]
        %v2458 = vld [vmem:[#allocation9 + $0x3d0] sm:$0xff]
        %v2459 = vld [vmem:[#allocation9 + $0x3d8] sm:$0xff]
        %v2460 = vld [vmem:[#allocation9 + $0x3e0] sm:$0xff]
        %v2461 = vld [vmem:[#allocation9 + $0x3e8] sm:$0xff]
        %v2462 = vld [vmem:[#allocation9 + $0x3f0] sm:$0xff]
        %v2463 = vld [vmem:[#allocation9 + $0x3f8] sm:$0xff]
        %v2464 = vld [vmem:[#allocation9 + $0x400] sm:$0xff]
        %v2465 = vld [vmem:[#allocation9 + $0x408] sm:$0xff]
        %v2466 = vld [vmem:[#allocation9 + $0x410] sm:$0xff]
        %v2467 = vld [vmem:[#allocation9 + $0x418] sm:$0xff]
        %v2468 = vld [vmem:[#allocation9 + $0x420] sm:$0xff]
        %v2469 = vld [vmem:[#allocation9 + $0x428] sm:$0xff]
        %v2470 = vld [vmem:[#allocation9 + $0x430] sm:$0xff]
        %v2471 = vld [vmem:[#allocation9 + $0x438] sm:$0xff]
        %v2472 = vld [vmem:[#allocation9 + $0x440] sm:$0xff]
        %v2473 = vld [vmem:[#allocation9 + $0x448] sm:$0xff]
        %v2474 = vld [vmem:[#allocation9 + $0x450] sm:$0xff]
        %v2475 = vld [vmem:[#allocation9 + $0x458] sm:$0xff]
        %v2476 = vld [vmem:[#allocation9 + $0x460] sm:$0xff]
        %v2477 = vld [vmem:[#allocation9 + $0x468] sm:$0xff]
        %v2478 = vld [vmem:[#allocation9 + $0x470] sm:$0xff]
        %v2479 = vld [vmem:[#allocation9 + $0x478] sm:$0xff]
        %v2480 = vld [vmem:[#allocation9 + $0x480] sm:$0xff]
        %v2481 = vld [vmem:[#allocation9 + $0x488] sm:$0xff]
        %v2482 = vld [vmem:[#allocation9 + $0x490] sm:$0xff]
        %v2483 = vld [vmem:[#allocation9 + $0x498] sm:$0xff]
        %v2484 = vld [vmem:[#allocation9 + $0x4a0] sm:$0xff]
        %v2485 = vld [vmem:[#allocation9 + $0x4a8] sm:$0xff]
        %v2486 = vld [vmem:[#allocation9 + $0x4b0] sm:$0xff]
        %v2487 = vld [vmem:[#allocation9 + $0x4b8] sm:$0xff]
        %v2488 = vld [vmem:[#allocation9 + $0x4c0] sm:$0xff]
        %v2489 = vld [vmem:[#allocation9 + $0x4c8] sm:$0xff]
        %v2490 = vld [vmem:[#allocation9 + $0x4d0] sm:$0xff]
        %v2491 = vld [vmem:[#allocation9 + $0x4d8] sm:$0xff]
        %v2492 = vld [vmem:[#allocation9 + $0x4e0] sm:$0xff]
        %v2493 = vld [vmem:[#allocation9 + $0x4e8] sm:$0xff]
        %v2494 = vld [vmem:[#allocation9 + $0x4f0] sm:$0xff]
        %v2495 = vld [vmem:[#allocation9 + $0x4f8] sm:$0xff]
        %v2496 = vld [vmem:[#allocation9 + $0x500] sm:$0xff]
        %v2497 = vld [vmem:[#allocation9 + $0x508] sm:$0xff]
        %v2498 = vld [vmem:[#allocation9 + $0x510] sm:$0xff]
        %v2499 = vld [vmem:[#allocation9 + $0x518] sm:$0xff]
        %v2500 = vld [vmem:[#allocation9 + $0x520] sm:$0xff]
        %v2501 = vld [vmem:[#allocation9 + $0x528] sm:$0xff]
        %v2502 = vld [vmem:[#allocation9 + $0x530] sm:$0xff]
        %v2503 = vld [vmem:[#allocation9 + $0x538] sm:$0xff]
        %v2504 = vld [vmem:[#allocation9 + $0x540] sm:$0xff]
        %v2505 = vld [vmem:[#allocation9 + $0x548] sm:$0xff]
        %v2506 = vld [vmem:[#allocation9 + $0x550] sm:$0xff]
        %v2507 = vld [vmem:[#allocation9 + $0x558] sm:$0xff]
        %v2508 = vld [vmem:[#allocation9 + $0x560] sm:$0xff]
        %v2509 = vld [vmem:[#allocation9 + $0x568] sm:$0xff]
        %v2510 = vld [vmem:[#allocation9 + $0x570] sm:$0xff]
        %v2511 = vld [vmem:[#allocation9 + $0x578] sm:$0xff]
        %v2512 = vld [vmem:[#allocation9 + $0x580] sm:$0xff]
        %v2513 = vld [vmem:[#allocation9 + $0x588] sm:$0xff]
        %v2514 = vld [vmem:[#allocation9 + $0x590] sm:$0xff]
        %v2515 = vld [vmem:[#allocation9 + $0x598] sm:$0xff]
        %v2516 = vld [vmem:[#allocation9 + $0x5a0] sm:$0xff]
        %v2517 = vld [vmem:[#allocation9 + $0x5a8] sm:$0xff]
        %v2518 = vld [vmem:[#allocation9 + $0x5b0] sm:$0xff]
        %v2519 = vld [vmem:[#allocation9 + $0x5b8] sm:$0xff]
        %v2520 = vld [vmem:[#allocation9 + $0x5c0] sm:$0xff]
        %v2521 = vld [vmem:[#allocation9 + $0x5c8] sm:$0xff]
        %v2522 = vld [vmem:[#allocation9 + $0x5d0] sm:$0xff]
        %v2523 = vld [vmem:[#allocation9 + $0x5d8] sm:$0xff]
        %v2524 = vld [vmem:[#allocation9 + $0x5e0] sm:$0xff]
        %v2525 = vld [vmem:[#allocation9 + $0x5e8] sm:$0xff]
        %v2526 = vld [vmem:[#allocation9 + $0x5f0] sm:$0xff]
        %v2527 = vld [vmem:[#allocation9 + $0x5f8] sm:$0xff]
        %v2528 = vld [vmem:[#allocation9 + $0x600] sm:$0xff]
        %v2529 = vld [vmem:[#allocation9 + $0x608] sm:$0xff]
        %v2530 = vld [vmem:[#allocation9 + $0x610] sm:$0xff]
        %v2531 = vld [vmem:[#allocation9 + $0x618] sm:$0xff]
        %v2532 = vld [vmem:[#allocation9 + $0x620] sm:$0xff]
        %v2533 = vld [vmem:[#allocation9 + $0x628] sm:$0xff]
        %v2534 = vld [vmem:[#allocation9 + $0x630] sm:$0xff]
        %v2535 = vld [vmem:[#allocation9 + $0x638] sm:$0xff]
        %v2536 = vld [vmem:[#allocation9 + $0x640] sm:$0xff]
        %v2537 = vld [vmem:[#allocation9 + $0x648] sm:$0xff]
        %v2538 = vld [vmem:[#allocation9 + $0x650] sm:$0xff]
        %v2539 = vld [vmem:[#allocation9 + $0x658] sm:$0xff]
        %v2540 = vld [vmem:[#allocation9 + $0x660] sm:$0xff]
        %v2541 = vld [vmem:[#allocation9 + $0x668] sm:$0xff]
        %v2542 = vld [vmem:[#allocation9 + $0x670] sm:$0xff]
        %v2543 = vld [vmem:[#allocation9 + $0x678] sm:$0xff]
        %v2544 = vld [vmem:[#allocation9 + $0x680] sm:$0xff]
        %v2545 = vld [vmem:[#allocation9 + $0x688] sm:$0xff]
        %v2546 = vld [vmem:[#allocation9 + $0x690] sm:$0xff]
        %v2547 = vld [vmem:[#allocation9 + $0x698] sm:$0xff]
        %v2548 = vld [vmem:[#allocation9 + $0x6a0] sm:$0xff]
        %v2549 = vld [vmem:[#allocation9 + $0x6a8] sm:$0xff]
        %v2550 = vld [vmem:[#allocation9 + $0x6b0] sm:$0xff]
        %v2551 = vld [vmem:[#allocation9 + $0x6b8] sm:$0xff]
        %v2552 = vld [vmem:[#allocation9 + $0x6c0] sm:$0xff]
        %v2553 = vld [vmem:[#allocation9 + $0x6c8] sm:$0xff]
        %v2554 = vld [vmem:[#allocation9 + $0x6d0] sm:$0xff]
        %v2555 = vld [vmem:[#allocation9 + $0x6d8] sm:$0xff]
        %v2556 = vld [vmem:[#allocation9 + $0x6e0] sm:$0xff]
        %v2557 = vld [vmem:[#allocation9 + $0x6e8] sm:$0xff]
        %v2558 = vld [vmem:[#allocation9 + $0x6f0] sm:$0xff]
        %v2559 = vld [vmem:[#allocation9 + $0x6f8] sm:$0xff]
        %v2560 = vld [vmem:[#allocation9 + $0x700] sm:$0xff]
        %v2561 = vld [vmem:[#allocation9 + $0x708] sm:$0xff]
        %v2562 = vld [vmem:[#allocation9 + $0x710] sm:$0xff]
        %v2563 = vld [vmem:[#allocation9 + $0x718] sm:$0xff]
        %v2564 = vld [vmem:[#allocation9 + $0x720] sm:$0xff]
        %v2565 = vld [vmem:[#allocation9 + $0x728] sm:$0xff]
        %v2566 = vld [vmem:[#allocation9 + $0x730] sm:$0xff]
        %v2567 = vld [vmem:[#allocation9 + $0x738] sm:$0xff]
        %v2568 = vld [vmem:[#allocation9 + $0x740] sm:$0xff]
        %v2569 = vld [vmem:[#allocation9 + $0x748] sm:$0xff]
        %v2570 = vld [vmem:[#allocation9 + $0x750] sm:$0xff]
        %v2571 = vld [vmem:[#allocation9 + $0x758] sm:$0xff]
        %v2572 = vld [vmem:[#allocation9 + $0x760] sm:$0xff]
        %v2573 = vld [vmem:[#allocation9 + $0x768] sm:$0xff]
        %v2574 = vld [vmem:[#allocation9 + $0x770] sm:$0xff]
        %v2575 = vld [vmem:[#allocation9 + $0x778] sm:$0xff]
        %v2576 = vld [vmem:[#allocation9 + $0x780] sm:$0xff]
        %v2577 = vld [vmem:[#allocation9 + $0x788] sm:$0xff]
        %v2578 = vld [vmem:[#allocation9 + $0x790] sm:$0xff]
        %v2579 = vld [vmem:[#allocation9 + $0x798] sm:$0xff]
        %v2580 = vld [vmem:[#allocation9 + $0x7a0] sm:$0xff]
        %v2581 = vld [vmem:[#allocation9 + $0x7a8] sm:$0xff]
        %v2582 = vld [vmem:[#allocation9 + $0x7b0] sm:$0xff]
        %v2583 = vld [vmem:[#allocation9 + $0x7b8] sm:$0xff]
        %v2584 = vld [vmem:[#allocation9 + $0x7c0] sm:$0xff]
        %v2585 = vld [vmem:[#allocation9 + $0x7c8] sm:$0xff]
        %v2586 = vld [vmem:[#allocation9 + $0x7d0] sm:$0xff]
        %v2587 = vld [vmem:[#allocation9 + $0x7d8] sm:$0xff]
        %v2588 = vld [vmem:[#allocation9 + $0x7e0] sm:$0xff]
        %v2589 = vld [vmem:[#allocation9 + $0x7e8] sm:$0xff]
        %v2590 = vld [vmem:[#allocation9 + $0x7f0] sm:$0xff]
        %v2591 = vld [vmem:[#allocation9 + $0x7f8] sm:$0xff]
        %v2592 = vld [vmem:[#allocation9 + $0x800] sm:$0xff]
        %v2593 = vld [vmem:[#allocation9 + $0x808] sm:$0xff]
        %v2594 = vld [vmem:[#allocation9 + $0x810] sm:$0xff]
        %v2595 = vld [vmem:[#allocation9 + $0x818] sm:$0xff]
        %v2596 = vld [vmem:[#allocation9 + $0x820] sm:$0xff]
        %v2597 = vld [vmem:[#allocation9 + $0x828] sm:$0xff]
        %v2598 = vld [vmem:[#allocation9 + $0x830] sm:$0xff]
        %v2599 = vld [vmem:[#allocation9 + $0x838] sm:$0xff]
        %v2600 = vld [vmem:[#allocation9 + $0x840] sm:$0xff]
        %v2601 = vld [vmem:[#allocation9 + $0x848] sm:$0xff]
        %v2602 = vld [vmem:[#allocation9 + $0x850] sm:$0xff]
        %v2603 = vld [vmem:[#allocation9 + $0x858] sm:$0xff]
        %v2604 = vld [vmem:[#allocation9 + $0x860] sm:$0xff]
        %v2605 = vld [vmem:[#allocation9 + $0x868] sm:$0xff]
        %v2606 = vld [vmem:[#allocation9 + $0x870] sm:$0xff]
        %v2607 = vld [vmem:[#allocation9 + $0x878] sm:$0xff]
        %v2608 = vld [vmem:[#allocation9 + $0x880] sm:$0xff]
        %v2609 = vld [vmem:[#allocation9 + $0x888] sm:$0xff]
        %v2610 = vld [vmem:[#allocation9 + $0x890] sm:$0xff]
        %v2611 = vld [vmem:[#allocation9 + $0x898] sm:$0xff]
        %v2612 = vld [vmem:[#allocation9 + $0x8a0] sm:$0xff]
        %v2613 = vld [vmem:[#allocation9 + $0x8a8] sm:$0xff]
        %v2614 = vld [vmem:[#allocation9 + $0x8b0] sm:$0xff]
        %v2615 = vld [vmem:[#allocation9 + $0x8b8] sm:$0xff]
        %v2616 = vld [vmem:[#allocation9 + $0x8c0] sm:$0xff]
        %v2617 = vld [vmem:[#allocation9 + $0x8c8] sm:$0xff]
        %v2618 = vld [vmem:[#allocation9 + $0x8d0] sm:$0xff]
        %v2619 = vld [vmem:[#allocation9 + $0x8d8] sm:$0xff]
        %v2620 = vld [vmem:[#allocation9 + $0x8e0] sm:$0xff]
        %v2621 = vld [vmem:[#allocation9 + $0x8e8] sm:$0xff]
        %v2622 = vld [vmem:[#allocation9 + $0x8f0] sm:$0xff]
        %v2623 = vld [vmem:[#allocation9 + $0x8f8] sm:$0xff]
        %2624 = vmatprep.subr.mxu0 %v2337
        %2625 = vmatpush1.msra.mxu0 %v2336
        %2626 = vmatprep.subr.mxu0 %v2340
        %2627 = vmatpush1.msra.mxu0 %v2339
        %2628 = vmatprep.subr.mxu0 %v2343
        %2629 = vmatpush1.msra.mxu0 %v2342
        %2630 = vmatprep.subr.mxu0 %v2346
        %2631 = vmatpush1.msra.mxu0 %v2345
        %2632 = vmatprep.subr.mxu0 %v2349
        %2633 = vmatpush1.msra.mxu0 %v2348
        %2634 = vmatprep.subr.mxu0 %v2352
        %2635 = vmatpush1.msra.mxu0 %v2351
        %2636 = vmatprep.subr.mxu0 %v2355
        %2637 = vmatpush1.msra.mxu0 %v2354
        %2638 = vmatprep.subr.mxu0 %v2358
        %2639 = vmatpush1.msra.mxu0 %v2357
        %2640 = vmatprep.subr.mxu0 %v2361
        %2641 = vmatpush1.msra.mxu0 %v2360
        %2642 = vmatprep.subr.mxu0 %v2364
        %2643 = vmatpush1.msra.mxu0 %v2363
        %2644 = vmatprep.subr.mxu0 %v2367
        %2645 = vmatpush1.msra.mxu0 %v2366
        %2646 = vmatprep.subr.mxu0 %v2370
        %2647 = vmatpush1.msra.mxu0 %v2369
        %2648 = vmatprep.subr.mxu0 %v2373
        %2649 = vmatpush1.msra.mxu0 %v2372
        %2650 = vmatprep.subr.mxu0 %v2376
        %2651 = vmatpush1.msra.mxu0 %v2375
        %2652 = vmatprep.subr.mxu0 %v2379
        %2653 = vmatpush1.msra.mxu0 %v2378
        %2654 = vmatprep.subr.mxu0 %v2382
        %2655 = vmatpush1.msra.mxu0 %v2381
        %2656 = vmatprep.subr.mxu0 %v2385
        %2657 = vmatpush1.msra.mxu0 %v2384
        %2658 = vmatprep.subr.mxu0 %v2388
        %2659 = vmatpush1.msra.mxu0 %v2387
        %2660 = vmatprep.subr.mxu0 %v2391
        %2661 = vmatpush1.msra.mxu0 %v2390
        %2662 = vmatprep.subr.mxu0 %v2394
        %2663 = vmatpush1.msra.mxu0 %v2393
        %2664 = vmatprep.subr.mxu0 %v2397
        %2665 = vmatpush1.msra.mxu0 %v2396
        %2666 = vmatprep.subr.mxu0 %v2400
        %2667 = vmatpush1.msra.mxu0 %v2399
        %2668 = vmatprep.subr.mxu0 %v2403
        %2669 = vmatpush1.msra.mxu0 %v2402
        %2670 = vmatprep.subr.mxu0 %v2406
        %2671 = vmatpush1.msra.mxu0 %v2405
        %2672 = vmatprep.subr.mxu0 %v2409
        %2673 = vmatpush1.msra.mxu0 %v2408
        %2674 = vmatprep.subr.mxu0 %v2412
        %2675 = vmatpush1.msra.mxu0 %v2411
        %2676 = vmatprep.subr.mxu0 %v2415
        %2677 = vmatpush1.msra.mxu0 %v2414
        %2678 = vmatprep.subr.mxu0 %v2418
        %2679 = vmatpush1.msra.mxu0 %v2417
        %2680 = vmatprep.subr.mxu0 %v2421
        %2681 = vmatpush1.msra.mxu0 %v2420
        %2682 = vmatprep.subr.mxu0 %v2424
        %2683 = vmatpush1.msra.mxu0 %v2423
        %2684 = vmatprep.subr.mxu0 %v2427
        %2685 = vmatpush1.msra.mxu0 %v2426
        %2686 = vmatprep.subr.mxu0 %v2430
        %2687 = vmatpush1.msra.mxu0 %v2429
        %2688 = vmatprep.mubr.f32.mxu0 %v2325
        %2689 = vmatmul.mubr.f32.gmra.mrb[0].mxu0 %v2324
        %v2690 = vpop.f32.mrb[0].mxu0
        %v2691 = vadd.f32 0.0, %v2690
        %v2692 = vpop.f32.mrb[0].mxu0
        %v2693 = vadd.f32 0.0, %v2692
        %2694 = vmatprep.mubr.f32.mxu0 %v2331
        %2695 = vmatmul.mubr.f32.gmra.mrb[0].mxu0 %v2330
        %v2696 = vpop.f32.mrb[0].mxu0
        %v2697 = vadd.f32 0.0, %v2696
        %v2698 = vpop.f32.mrb[0].mxu0
        %v2699 = vadd.f32 0.0, %v2698
        %2700 = vdwg.mxu0
        %2701 = vmatprep.subr.mxu0 %v2433
        %2702 = vmatpush1.msra.mxu0 %v2432
        %2703 = vmatprep.subr.mxu0 %v2436
        %2704 = vmatpush1.msra.mxu0 %v2435
        %2705 = vmatprep.subr.mxu0 %v2439
        %2706 = vmatpush1.msra.mxu0 %v2438
        %2707 = vmatprep.subr.mxu0 %v2442
        %2708 = vmatpush1.msra.mxu0 %v2441
        %2709 = vmatprep.subr.mxu0 %v2445
        %2710 = vmatpush1.msra.mxu0 %v2444
        %2711 = vmatprep.subr.mxu0 %v2448
        %2712 = vmatpush1.msra.mxu0 %v2447
        %2713 = vmatprep.subr.mxu0 %v2451
        %2714 = vmatpush1.msra.mxu0 %v2450
        %2715 = vmatprep.subr.mxu0 %v2454
        %2716 = vmatpush1.msra.mxu0 %v2453
        %2717 = vmatprep.subr.mxu0 %v2457
        %2718 = vmatpush1.msra.mxu0 %v2456
        %2719 = vmatprep.subr.mxu0 %v2460
        %2720 = vmatpush1.msra.mxu0 %v2459
        %2721 = vmatprep.subr.mxu0 %v2463
        %2722 = vmatpush1.msra.mxu0 %v2462
        %2723 = vmatprep.subr.mxu0 %v2466
        %2724 = vmatpush1.msra.mxu0 %v2465
        %2725 = vmatprep.subr.mxu0 %v2469
        %2726 = vmatpush1.msra.mxu0 %v2468
        %2727 = vmatprep.subr.mxu0 %v2472
        %2728 = vmatpush1.msra.mxu0 %v2471
        %2729 = vmatprep.subr.mxu0 %v2475
        %2730 = vmatpush1.msra.mxu0 %v2474
        %2731 = vmatprep.subr.mxu0 %v2478
        %2732 = vmatpush1.msra.mxu0 %v2477
        %2733 = vmatprep.subr.mxu0 %v2481
        %2734 = vmatpush1.msra.mxu0 %v2480
        %2735 = vmatprep.subr.mxu0 %v2484
        %2736 = vmatpush1.msra.mxu0 %v2483
        %2737 = vmatprep.subr.mxu0 %v2487
        %2738 = vmatpush1.msra.mxu0 %v2486
        %2739 = vmatprep.subr.mxu0 %v2490
        %2740 = vmatpush1.msra.mxu0 %v2489
        %2741 = vmatprep.subr.mxu0 %v2493
        %2742 = vmatpush1.msra.mxu0 %v2492
        %2743 = vmatprep.subr.mxu0 %v2496
        %2744 = vmatpush1.msra.mxu0 %v2495
        %2745 = vmatprep.subr.mxu0 %v2499
        %2746 = vmatpush1.msra.mxu0 %v2498
        %2747 = vmatprep.subr.mxu0 %v2502
        %2748 = vmatpush1.msra.mxu0 %v2501
        %2749 = vmatprep.subr.mxu0 %v2505
        %2750 = vmatpush1.msra.mxu0 %v2504
        %2751 = vmatprep.subr.mxu0 %v2508
        %2752 = vmatpush1.msra.mxu0 %v2507
        %2753 = vmatprep.subr.mxu0 %v2511
        %2754 = vmatpush1.msra.mxu0 %v2510
        %2755 = vmatprep.subr.mxu0 %v2514
        %2756 = vmatpush1.msra.mxu0 %v2513
        %2757 = vmatprep.subr.mxu0 %v2517
        %2758 = vmatpush1.msra.mxu0 %v2516
        %2759 = vmatprep.subr.mxu0 %v2520
        %2760 = vmatpush1.msra.mxu0 %v2519
        %2761 = vmatprep.subr.mxu0 %v2523
        %2762 = vmatpush1.msra.mxu0 %v2522
        %2763 = vmatprep.subr.mxu0 %v2526
        %2764 = vmatpush1.msra.mxu0 %v2525
        %2765 = vmatprep.mubr.f32.mxu0 %v2327
        %2766 = vmatmul.mubr.f32.gmra.mrb[0].mxu0 %v2326
        %v2767 = vpop.f32.mrb[0].mxu0
        %v2768 = vadd.f32 %v2691, %v2767
        %v2769 = vpop.f32.mrb[0].mxu0
        %v2770 = vadd.f32 %v2693, %v2769
        %2771 = vmatprep.mubr.f32.mxu0 %v2333
        %2772 = vmatmul.mubr.f32.gmra.mrb[0].mxu0 %v2332
        %v2773 = vpop.f32.mrb[0].mxu0
        %v2774 = vadd.f32 %v2697, %v2773
        %v2775 = vpop.f32.mrb[0].mxu0
        %v2776 = vadd.f32 %v2699, %v2775
        %2777 = vdwg.mxu0
        %2778 = vmatprep.subr.mxu0 %v2529
        %2779 = vmatpush1.msra.mxu0 %v2528
        %2780 = vmatprep.subr.mxu0 %v2532
        %2781 = vmatpush1.msra.mxu0 %v2531
        %2782 = vmatprep.subr.mxu0 %v2535
        %2783 = vmatpush1.msra.mxu0 %v2534
        %2784 = vmatprep.subr.mxu0 %v2538
        %2785 = vmatpush1.msra.mxu0 %v2537
        %2786 = vmatprep.subr.mxu0 %v2541
        %2787 = vmatpush1.msra.mxu0 %v2540
        %2788 = vmatprep.subr.mxu0 %v2544
        %2789 = vmatpush1.msra.mxu0 %v2543
        %2790 = vmatprep.subr.mxu0 %v2547
        %2791 = vmatpush1.msra.mxu0 %v2546
        %2792 = vmatprep.subr.mxu0 %v2550
        %2793 = vmatpush1.msra.mxu0 %v2549
        %2794 = vmatprep.subr.mxu0 %v2553
        %2795 = vmatpush1.msra.mxu0 %v2552
        %2796 = vmatprep.subr.mxu0 %v2556
        %2797 = vmatpush1.msra.mxu0 %v2555
        %2798 = vmatprep.subr.mxu0 %v2559
        %2799 = vmatpush1.msra.mxu0 %v2558
        %2800 = vmatprep.subr.mxu0 %v2562
        %2801 = vmatpush1.msra.mxu0 %v2561
        %2802 = vmatprep.subr.mxu0 %v2565
        %2803 = vmatpush1.msra.mxu0 %v2564
        %2804 = vmatprep.subr.mxu0 %v2568
        %2805 = vmatpush1.msra.mxu0 %v2567
        %2806 = vmatprep.subr.mxu0 %v2571
        %2807 = vmatpush1.msra.mxu0 %v2570
        %2808 = vmatprep.subr.mxu0 %v2574
        %2809 = vmatpush1.msra.mxu0 %v2573
        %2810 = vmatprep.subr.mxu0 %v2577
        %2811 = vmatpush1.msra.mxu0 %v2576
        %2812 = vmatprep.subr.mxu0 %v2580
        %2813 = vmatpush1.msra.mxu0 %v2579
        %2814 = vmatprep.subr.mxu0 %v2583
        %2815 = vmatpush1.msra.mxu0 %v2582
        %2816 = vmatprep.subr.mxu0 %v2586
        %2817 = vmatpush1.msra.mxu0 %v2585
        %2818 = vmatprep.subr.mxu0 %v2589
        %2819 = vmatpush1.msra.mxu0 %v2588
        %2820 = vmatprep.subr.mxu0 %v2592
        %2821 = vmatpush1.msra.mxu0 %v2591
        %2822 = vmatprep.subr.mxu0 %v2595
        %2823 = vmatpush1.msra.mxu0 %v2594
        %2824 = vmatprep.subr.mxu0 %v2598
        %2825 = vmatpush1.msra.mxu0 %v2597
        %2826 = vmatprep.subr.mxu0 %v2601
        %2827 = vmatpush1.msra.mxu0 %v2600
        %2828 = vmatprep.subr.mxu0 %v2604
        %2829 = vmatpush1.msra.mxu0 %v2603
        %2830 = vmatprep.subr.mxu0 %v2607
        %2831 = vmatpush1.msra.mxu0 %v2606
        %2832 = vmatprep.subr.mxu0 %v2610
        %2833 = vmatpush1.msra.mxu0 %v2609
        %2834 = vmatprep.subr.mxu0 %v2613
        %2835 = vmatpush1.msra.mxu0 %v2612
        %2836 = vmatprep.subr.mxu0 %v2616
        %2837 = vmatpush1.msra.mxu0 %v2615
        %2838 = vmatprep.subr.mxu0 %v2619
        %2839 = vmatpush1.msra.mxu0 %v2618
        %2840 = vmatprep.subr.mxu0 %v2622
        %2841 = vmatpush1.msra.mxu0 %v2621
        %2842 = vmatprep.mubr.f32.mxu0 %v2329
        %2843 = vmatmul.mubr.f32.gmra.mrb[0].mxu0 %v2328
        %v2844 = vpop.f32.mrb[0].mxu0
        %v2845 = vadd.f32 %v2768, %v2844
        %v2846 = vpop.f32.mrb[0].mxu0
        %v2847 = vadd.f32 %v2770, %v2846
        %2848 = vmatprep.mubr.f32.mxu0 %v2335
        %2849 = vmatmul.mubr.f32.gmra.mrb[0].mxu0 %v2334
        %v2850 = vpop.f32.mrb[0].mxu0
        %v2851 = vadd.f32 %v2774, %v2850
        %v2852 = vpop.f32.mrb[0].mxu0
        %v2853 = vadd.f32 %v2776, %v2852
        %2854 = vdwg.mxu0
        %2855 = vmatprep.subr.mxu0 0.0
        %2856 = vmatpush1.msra.mxu0 %v2338
        %2857 = vmatprep.subr.mxu0 0.0
        %2858 = vmatpush1.msra.mxu0 %v2341
        %2859 = vmatprep.subr.mxu0 0.0
        %2860 = vmatpush1.msra.mxu0 %v2344
        %2861 = vmatprep.subr.mxu0 0.0
        %2862 = vmatpush1.msra.mxu0 %v2347
        %2863 = vmatprep.subr.mxu0 0.0
        %2864 = vmatpush1.msra.mxu0 %v2350
        %2865 = vmatprep.subr.mxu0 0.0
        %2866 = vmatpush1.msra.mxu0 %v2353
        %2867 = vmatprep.subr.mxu0 0.0
        %2868 = vmatpush1.msra.mxu0 %v2356
        %2869 = vmatprep.subr.mxu0 0.0
        %2870 = vmatpush1.msra.mxu0 %v2359
        %2871 = vmatprep.subr.mxu0 0.0
        %2872 = vmatpush1.msra.mxu0 %v2362
        %2873 = vmatprep.subr.mxu0 0.0
        %2874 = vmatpush1.msra.mxu0 %v2365
        %2875 = vmatprep.subr.mxu0 0.0
        %2876 = vmatpush1.msra.mxu0 %v2368
        %2877 = vmatprep.subr.mxu0 0.0
        %2878 = vmatpush1.msra.mxu0 %v2371
        %2879 = vmatprep.subr.mxu0 0.0
        %2880 = vmatpush1.msra.mxu0 %v2374
        %2881 = vmatprep.subr.mxu0 0.0
        %2882 = vmatpush1.msra.mxu0 %v2377
        %2883 = vmatprep.subr.mxu0 0.0
        %2884 = vmatpush1.msra.mxu0 %v2380
        %2885 = vmatprep.subr.mxu0 0.0
        %2886 = vmatpush1.msra.mxu0 %v2383
        %2887 = vmatprep.subr.mxu0 0.0
        %2888 = vmatpush1.msra.mxu0 %v2386
        %2889 = vmatprep.subr.mxu0 0.0
        %2890 = vmatpush1.msra.mxu0 %v2389
        %2891 = vmatprep.subr.mxu0 0.0
        %2892 = vmatpush1.msra.mxu0 %v2392
        %2893 = vmatprep.subr.mxu0 0.0
        %2894 = vmatpush1.msra.mxu0 %v2395
        %2895 = vmatprep.subr.mxu0 0.0
        %2896 = vmatpush1.msra.mxu0 %v2398
        %2897 = vmatprep.subr.mxu0 0.0
        %2898 = vmatpush1.msra.mxu0 %v2401
        %2899 = vmatprep.subr.mxu0 0.0
        %2900 = vmatpush1.msra.mxu0 %v2404
        %2901 = vmatprep.subr.mxu0 0.0
        %2902 = vmatpush1.msra.mxu0 %v2407
        %2903 = vmatprep.subr.mxu0 0.0
        %2904 = vmatpush1.msra.mxu0 %v2410
        %2905 = vmatprep.subr.mxu0 0.0
        %2906 = vmatpush1.msra.mxu0 %v2413
        %2907 = vmatprep.subr.mxu0 0.0
        %2908 = vmatpush1.msra.mxu0 %v2416
        %2909 = vmatprep.subr.mxu0 0.0
        %2910 = vmatpush1.msra.mxu0 %v2419
        %2911 = vmatprep.subr.mxu0 0.0
        %2912 = vmatpush1.msra.mxu0 %v2422
        %2913 = vmatprep.subr.mxu0 0.0
        %2914 = vmatpush1.msra.mxu0 %v2425
        %2915 = vmatprep.subr.mxu0 0.0
        %2916 = vmatpush1.msra.mxu0 %v2428
        %2917 = vmatprep.subr.mxu0 0.0
        %2918 = vmatpush1.msra.mxu0 %v2431
        %2919 = vmatprep.mubr.f32.mxu0 %v2325
        %2920 = vmatmul.mubr.f32.gmra.mrb[0].mxu0 %v2324
        %v2921 = vpop.f32.mrb[0].mxu0
        %v2922 = vadd.f32 0.0, %v2921
        %v2923 = vpop.f32.mrb[0].mxu0
        %2924 = vmatprep.mubr.f32.mxu0 %v2331
        %2925 = vmatmul.mubr.f32.gmra.mrb[0].mxu0 %v2330
        %v2926 = vpop.f32.mrb[0].mxu0
        %v2927 = vadd.f32 0.0, %v2926
        %v2928 = vpop.f32.mrb[0].mxu0
        %2929 = vdwg.mxu0
        %2930 = vmatprep.subr.mxu0 0.0
        %2931 = vmatpush1.msra.mxu0 %v2434
        %2932 = vmatprep.subr.mxu0 0.0
        %2933 = vmatpush1.msra.mxu0 %v2437
        %2934 = vmatprep.subr.mxu0 0.0
        %2935 = vmatpush1.msra.mxu0 %v2440
        %2936 = vmatprep.subr.mxu0 0.0
        %2937 = vmatpush1.msra.mxu0 %v2443
        %2938 = vmatprep.subr.mxu0 0.0
        %2939 = vmatpush1.msra.mxu0 %v2446
        %2940 = vmatprep.subr.mxu0 0.0
        %2941 = vmatpush1.msra.mxu0 %v2449
        %2942 = vmatprep.subr.mxu0 0.0
        %2943 = vmatpush1.msra.mxu0 %v2452
        %2944 = vmatprep.subr.mxu0 0.0
        %2945 = vmatpush1.msra.mxu0 %v2455
        %2946 = vmatprep.subr.mxu0 0.0
        %2947 = vmatpush1.msra.mxu0 %v2458
        %2948 = vmatprep.subr.mxu0 0.0
        %2949 = vmatpush1.msra.mxu0 %v2461
        %2950 = vmatprep.subr.mxu0 0.0
        %2951 = vmatpush1.msra.mxu0 %v2464
        %2952 = vmatprep.subr.mxu0 0.0
        %2953 = vmatpush1.msra.mxu0 %v2467
        %2954 = vmatprep.subr.mxu0 0.0
        %2955 = vmatpush1.msra.mxu0 %v2470
        %2956 = vmatprep.subr.mxu0 0.0
        %2957 = vmatpush1.msra.mxu0 %v2473
        %2958 = vmatprep.subr.mxu0 0.0
        %2959 = vmatpush1.msra.mxu0 %v2476
        %2960 = vmatprep.subr.mxu0 0.0
        %2961 = vmatpush1.msra.mxu0 %v2479
        %2962 = vmatprep.subr.mxu0 0.0
        %2963 = vmatpush1.msra.mxu0 %v2482
        %2964 = vmatprep.subr.mxu0 0.0
        %2965 = vmatpush1.msra.mxu0 %v2485
        %2966 = vmatprep.subr.mxu0 0.0
        %2967 = vmatpush1.msra.mxu0 %v2488
        %2968 = vmatprep.subr.mxu0 0.0
        %2969 = vmatpush1.msra.mxu0 %v2491
        %2970 = vmatprep.subr.mxu0 0.0
        %2971 = vmatpush1.msra.mxu0 %v2494
        %2972 = vmatprep.subr.mxu0 0.0
        %2973 = vmatpush1.msra.mxu0 %v2497
        %2974 = vmatprep.subr.mxu0 0.0
        %2975 = vmatpush1.msra.mxu0 %v2500
        %2976 = vmatprep.subr.mxu0 0.0
        %2977 = vmatpush1.msra.mxu0 %v2503
        %2978 = vmatprep.subr.mxu0 0.0
        %2979 = vmatpush1.msra.mxu0 %v2506
        %2980 = vmatprep.subr.mxu0 0.0
        %2981 = vmatpush1.msra.mxu0 %v2509
        %2982 = vmatprep.subr.mxu0 0.0
        %2983 = vmatpush1.msra.mxu0 %v2512
        %2984 = vmatprep.subr.mxu0 0.0
        %2985 = vmatpush1.msra.mxu0 %v2515
        %2986 = vmatprep.subr.mxu0 0.0
        %2987 = vmatpush1.msra.mxu0 %v2518
        %2988 = vmatprep.subr.mxu0 0.0
        %2989 = vmatpush1.msra.mxu0 %v2521
        %2990 = vmatprep.subr.mxu0 0.0
        %2991 = vmatpush1.msra.mxu0 %v2524
        %2992 = vmatprep.subr.mxu0 0.0
        %2993 = vmatpush1.msra.mxu0 %v2527
        %2994 = vmatprep.mubr.f32.mxu0 %v2327
        %2995 = vmatmul.mubr.f32.gmra.mrb[0].mxu0 %v2326
        %v2996 = vpop.f32.mrb[0].mxu0
        %v2997 = vadd.f32 %v2922, %v2996
        %v2998 = vpop.f32.mrb[0].mxu0
        %2999 = vmatprep.mubr.f32.mxu0 %v2333
        %3000 = vmatmul.mubr.f32.gmra.mrb[0].mxu0 %v2332
        %v3001 = vpop.f32.mrb[0].mxu0
        %v3002 = vadd.f32 %v2927, %v3001
        %v3003 = vpop.f32.mrb[0].mxu0
        %3004 = vdwg.mxu0
        %3005 = vmatprep.subr.mxu0 0.0
        %3006 = vmatpush1.msra.mxu0 %v2530
        %3007 = vmatprep.subr.mxu0 0.0
        %3008 = vmatpush1.msra.mxu0 %v2533
        %3009 = vmatprep.subr.mxu0 0.0
        %3010 = vmatpush1.msra.mxu0 %v2536
        %3011 = vmatprep.subr.mxu0 0.0
        %3012 = vmatpush1.msra.mxu0 %v2539
        %3013 = vmatprep.subr.mxu0 0.0
        %3014 = vmatpush1.msra.mxu0 %v2542
        %3015 = vmatprep.subr.mxu0 0.0
        %3016 = vmatpush1.msra.mxu0 %v2545
        %3017 = vmatprep.subr.mxu0 0.0
        %3018 = vmatpush1.msra.mxu0 %v2548
        %3019 = vmatprep.subr.mxu0 0.0
        %3020 = vmatpush1.msra.mxu0 %v2551
        %3021 = vmatprep.subr.mxu0 0.0
        %3022 = vmatpush1.msra.mxu0 %v2554
        %3023 = vmatprep.subr.mxu0 0.0
        %3024 = vmatpush1.msra.mxu0 %v2557
        %3025 = vmatprep.subr.mxu0 0.0
        %3026 = vmatpush1.msra.mxu0 %v2560
        %3027 = vmatprep.subr.mxu0 0.0
        %3028 = vmatpush1.msra.mxu0 %v2563
        %3029 = vmatprep.subr.mxu0 0.0
        %3030 = vmatpush1.msra.mxu0 %v2566
        %3031 = vmatprep.subr.mxu0 0.0
        %3032 = vmatpush1.msra.mxu0 %v2569
        %3033 = vmatprep.subr.mxu0 0.0
        %3034 = vmatpush1.msra.mxu0 %v2572
        %3035 = vmatprep.subr.mxu0 0.0
        %3036 = vmatpush1.msra.mxu0 %v2575
        %3037 = vmatprep.subr.mxu0 0.0
        %3038 = vmatpush1.msra.mxu0 %v2578
        %3039 = vmatprep.subr.mxu0 0.0
        %3040 = vmatpush1.msra.mxu0 %v2581
        %3041 = vmatprep.subr.mxu0 0.0
        %3042 = vmatpush1.msra.mxu0 %v2584
        %3043 = vmatprep.subr.mxu0 0.0
        %3044 = vmatpush1.msra.mxu0 %v2587
        %3045 = vmatprep.subr.mxu0 0.0
        %3046 = vmatpush1.msra.mxu0 %v2590
        %3047 = vmatprep.subr.mxu0 0.0
        %3048 = vmatpush1.msra.mxu0 %v2593
        %3049 = vmatprep.subr.mxu0 0.0
        %3050 = vmatpush1.msra.mxu0 %v2596
        %3051 = vmatprep.subr.mxu0 0.0
        %3052 = vmatpush1.msra.mxu0 %v2599
        %3053 = vmatprep.subr.mxu0 0.0
        %3054 = vmatpush1.msra.mxu0 %v2602
        %3055 = vmatprep.subr.mxu0 0.0
        %3056 = vmatpush1.msra.mxu0 %v2605
        %3057 = vmatprep.subr.mxu0 0.0
        %3058 = vmatpush1.msra.mxu0 %v2608
        %3059 = vmatprep.subr.mxu0 0.0
        %3060 = vmatpush1.msra.mxu0 %v2611
        %3061 = vmatprep.subr.mxu0 0.0
        %3062 = vmatpush1.msra.mxu0 %v2614
        %3063 = vmatprep.subr.mxu0 0.0
        %3064 = vmatpush1.msra.mxu0 %v2617
        %3065 = vmatprep.subr.mxu0 0.0
        %3066 = vmatpush1.msra.mxu0 %v2620
        %3067 = vmatprep.subr.mxu0 0.0
        %3068 = vmatpush1.msra.mxu0 %v2623
        %3069 = vmatprep.mubr.f32.mxu0 %v2329
        %3070 = vmatmul.mubr.f32.gmra.mrb[0].mxu0 %v2328
        %v3071 = vpop.f32.mrb[0].mxu0
        %v3072 = vadd.f32 %v2997, %v3071
        %v3073 = vpop.f32.mrb[0].mxu0
        %3074 = vmatprep.mubr.f32.mxu0 %v2335
        %3075 = vmatmul.mubr.f32.gmra.mrb[0].mxu0 %v2334
        %v3076 = vpop.f32.mrb[0].mxu0
        %v3077 = vadd.f32 %v3002, %v3076
        %v3078 = vpop.f32.mrb[0].mxu0
        %3079 = vdwg.mxu0
        %3080 = vrot.lane.b32.xlu0 %v2845, 19
        %v3081 = vpop.permute.xlu0 %3080
        %3082 = vrot.lane.b32.xlu0 %v2851, 19
        %v3083 = vpop.permute.xlu0 %3082
        %3084 = vrot.lane.b32.xlu0 %v2847, 19
        %v3085 = vpop.permute.xlu0 %3084
        %3086 = vrot.lane.b32.xlu0 %v2853, 19
        %v3087 = vpop.permute.xlu0 %3086
        %3088 = vrot.lane.b32.xlu0 %v3072, 19
        %v3089 = vpop.permute.xlu0 %3088
        %3090 = vrot.lane.b32.xlu0 %v3077, 19
        %v3091 = vpop.permute.xlu0 %3090
        %vm3092 = vcmp.lt.s32.totalorder %v1372, 19
        %v3093 = vsel %vm3092, %v3085, %v3089
        %v3094 = vsel %vm3092, %v3087, %v3091
        %v3095 = vsel %vm3092, %v3081, %v3085
        %v3096 = vsel %vm3092, %v3083, %v3087
        %v3097 = vsel %vm3092, %v3089, %v3081
        %v3098 = vsel %vm3092, %v3091, %v3083
        %3099 = vrot.lane.b32.xlu0 %v2845, 18
        %v3100 = vpop.permute.xlu0 %3099
        %3101 = vrot.lane.b32.xlu0 %v2851, 18
        %v3102 = vpop.permute.xlu0 %3101
        %3103 = vrot.lane.b32.xlu0 %v2847, 18
        %v3104 = vpop.permute.xlu0 %3103
        %3105 = vrot.lane.b32.xlu0 %v2853, 18
        %v3106 = vpop.permute.xlu0 %3105
        %3107 = vrot.lane.b32.xlu0 %v3072, 18
        %v3108 = vpop.permute.xlu0 %3107
        %3109 = vrot.lane.b32.xlu0 %v3077, 18
        %v3110 = vpop.permute.xlu0 %3109
        %vm3111 = vcmp.lt.s32.totalorder %v1372, 18
        %v3112 = vsel %vm3111, %v3104, %v3108
        %v3113 = vsel %vm3111, %v3106, %v3110
        %v3114 = vsel %vm3111, %v3100, %v3104
        %v3115 = vsel %vm3111, %v3102, %v3106
        %v3116 = vsel %vm3111, %v3108, %v3100
        %v3117 = vsel %vm3111, %v3110, %v3102
        %3118 = vrot.lane.b32.xlu0 %v2845, 17
        %v3119 = vpop.permute.xlu0 %3118
        %3120 = vrot.lane.b32.xlu0 %v2851, 17
        %v3121 = vpop.permute.xlu0 %3120
        %3122 = vrot.lane.b32.xlu0 %v2847, 17
        %v3123 = vpop.permute.xlu0 %3122
        %3124 = vrot.lane.b32.xlu0 %v2853, 17
        %v3125 = vpop.permute.xlu0 %3124
        %3126 = vrot.lane.b32.xlu0 %v3072, 17
        %v3127 = vpop.permute.xlu0 %3126
        %3128 = vrot.lane.b32.xlu0 %v3077, 17
        %v3129 = vpop.permute.xlu0 %3128
        %vm3130 = vcmp.lt.s32.totalorder %v1372, 17
        %v3131 = vsel %vm3130, %v3123, %v3127
        %v3132 = vsel %vm3130, %v3125, %v3129
        %v3133 = vsel %vm3130, %v3119, %v3123
        %v3134 = vsel %vm3130, %v3121, %v3125
        %v3135 = vsel %vm3130, %v3127, %v3119
        %v3136 = vsel %vm3130, %v3129, %v3121
        %3137 = vrot.lane.b32.xlu0 %v2845, 1
        %v3138 = vpop.permute.xlu0 %3137
        %3139 = vrot.lane.b32.xlu0 %v2851, 1
        %v3140 = vpop.permute.xlu0 %3139
        %3141 = vrot.lane.b32.xlu0 %v2847, 1
        %v3142 = vpop.permute.xlu0 %3141
        %3143 = vrot.lane.b32.xlu0 %v2853, 1
        %v3144 = vpop.permute.xlu0 %3143
        %3145 = vrot.lane.b32.xlu0 %v3072, 1
        %v3146 = vpop.permute.xlu0 %3145
        %3147 = vrot.lane.b32.xlu0 %v3077, 1
        %v3148 = vpop.permute.xlu0 %3147
        %v3149 = vsel %vm1553, %v3142, %v3146
        %v3150 = vsel %vm1553, %v3144, %v3148
        %v3151 = vsel %vm1553, %v3138, %v3142
        %v3152 = vsel %vm1553, %v3140, %v3144
        %v3153 = vsel %vm1553, %v3146, %v3138
        %v3154 = vsel %vm1553, %v3148, %v3140
        %3155 = vrot.lane.b32.xlu0 %v2845, 127
        %v3156 = vpop.permute.xlu0 %3155
        %3157 = vrot.lane.b32.xlu0 %v2851, 127
        %v3158 = vpop.permute.xlu0 %3157
        %3159 = vrot.lane.b32.xlu0 %v2847, 127
        %v3160 = vpop.permute.xlu0 %3159
        %3161 = vrot.lane.b32.xlu0 %v2853, 127
        %v3162 = vpop.permute.xlu0 %3161
        %3163 = vrot.lane.b32.xlu0 %v3072, 127
        %v3164 = vpop.permute.xlu0 %3163
        %3165 = vrot.lane.b32.xlu0 %v3077, 127
        %v3166 = vpop.permute.xlu0 %3165
        %v3167 = vsel %vm1658, %v3160, %v3164
        %v3168 = vsel %vm1658, %v3162, %v3166
        %v3169 = vsel %vm1658, %v3156, %v3160
        %v3170 = vsel %vm1658, %v3158, %v3162
        %v3171 = vsel %vm1658, %v3164, %v3156
        %v3172 = vsel %vm1658, %v3166, %v3158
        %3173 = vrot.lane.b32.xlu0 %v2845, 111
        %v3174 = vpop.permute.xlu0 %3173
        %3175 = vrot.lane.b32.xlu0 %v2851, 111
        %v3176 = vpop.permute.xlu0 %3175
        %3177 = vrot.lane.b32.xlu0 %v2847, 111
        %v3178 = vpop.permute.xlu0 %3177
        %3179 = vrot.lane.b32.xlu0 %v2853, 111
        %v3180 = vpop.permute.xlu0 %3179
        %3181 = vrot.lane.b32.xlu0 %v3072, 111
        %v3182 = vpop.permute.xlu0 %3181
        %3183 = vrot.lane.b32.xlu0 %v3077, 111
        %v3184 = vpop.permute.xlu0 %3183
        %vm3185 = vcmp.lt.s32.totalorder %v1372, 111
        %v3186 = vsel %vm3185, %v3178, %v3182
        %v3187 = vsel %vm3185, %v3180, %v3184
        %v3188 = vsel %vm3185, %v3174, %v3178
        %v3189 = vsel %vm3185, %v3176, %v3180
        %v3190 = vsel %vm3185, %v3182, %v3174
        %v3191 = vsel %vm3185, %v3184, %v3176
        %3192 = vrot.lane.b32.xlu0 %v2845, 110
        %v3193 = vpop.permute.xlu0 %3192
        %3194 = vrot.lane.b32.xlu0 %v2851, 110
        %v3195 = vpop.permute.xlu0 %3194
        %3196 = vrot.lane.b32.xlu0 %v2847, 110
        %v3197 = vpop.permute.xlu0 %3196
        %3198 = vrot.lane.b32.xlu0 %v2853, 110
        %v3199 = vpop.permute.xlu0 %3198
        %3200 = vrot.lane.b32.xlu0 %v3072, 110
        %v3201 = vpop.permute.xlu0 %3200
        %3202 = vrot.lane.b32.xlu0 %v3077, 110
        %v3203 = vpop.permute.xlu0 %3202
        %vm3204 = vcmp.lt.s32.totalorder %v1372, 110
        %v3205 = vsel %vm3204, %v3197, %v3201
        %v3206 = vsel %vm3204, %v3199, %v3203
        %v3207 = vsel %vm3204, %v3193, %v3197
        %v3208 = vsel %vm3204, %v3195, %v3199
        %v3209 = vsel %vm3204, %v3201, %v3193
        %v3210 = vsel %vm3204, %v3203, %v3195
        %3211 = vrot.lane.b32.xlu0 %v2845, 109
        %v3212 = vpop.permute.xlu0 %3211
        %3213 = vrot.lane.b32.xlu0 %v2851, 109
        %v3214 = vpop.permute.xlu0 %3213
        %3215 = vrot.lane.b32.xlu0 %v2847, 109
        %v3216 = vpop.permute.xlu0 %3215
        %3217 = vrot.lane.b32.xlu0 %v2853, 109
        %v3218 = vpop.permute.xlu0 %3217
        %3219 = vrot.lane.b32.xlu0 %v3072, 109
        %v3220 = vpop.permute.xlu0 %3219
        %3221 = vrot.lane.b32.xlu0 %v3077, 109
        %v3222 = vpop.permute.xlu0 %3221
        %vm3223 = vcmp.lt.s32.totalorder %v1372, 109
        %v3224 = vsel %vm3223, %v3216, %v3220
        %v3225 = vsel %vm3223, %v3218, %v3222
        %v3226 = vsel %vm3223, %v3212, %v3216
        %v3227 = vsel %vm3223, %v3214, %v3218
        %v3228 = vsel %vm3223, %v3220, %v3212
        %v3229 = vsel %vm3223, %v3222, %v3214
        %v3230 = vld [vmem:[%s13] sm:$0x77]
        %v3232 = vcombine.high %v3230, %v3230
        %vm3233 = vcmask 130048
        %v3234 = vsel %vm3233, %v3232, 0
        %3236 = vmatprep.subr.mxu0 %v3095
        %3237 = vmatpush1.msra.mxu0 %v3097
        %3238 = vmatprep.subr.mxu0 %v3096
        %3239 = vmatpush1.msra.mxu0 %v3098
        %3240 = vmatprep.subr.mxu0 %v3114
        %3241 = vmatpush1.msra.mxu0 %v3116
        %3242 = vmatprep.subr.mxu0 %v3115
        %3243 = vmatpush1.msra.mxu0 %v3117
        %3244 = vmatprep.subr.mxu0 %v3133
        %3245 = vmatpush1.msra.mxu0 %v3135
        %3246 = vmatprep.subr.mxu0 %v3134
        %3247 = vmatpush1.msra.mxu0 %v3136
        %3248 = vmatprep.subr.mxu0 %v3151
        %3249 = vmatpush1.msra.mxu0 %v3153
        %3250 = vmatprep.subr.mxu0 %v3152
        %3251 = vmatpush1.msra.mxu0 %v3154
        %3252 = vmatprep.subr.mxu0 %v2847
        %3253 = vmatpush1.msra.mxu0 %v2845
        %3254 = vmatprep.subr.mxu0 %v2853
        %3255 = vmatpush1.msra.mxu0 %v2851
        %3256 = vmatprep.subr.mxu0 %v3167
        %3257 = vmatpush1.msra.mxu0 %v3169
        %3258 = vmatprep.subr.mxu0 %v3168
        %3259 = vmatpush1.msra.mxu0 %v3170
        %3260 = vmatprep.subr.mxu0 %v3186
        %3261 = vmatpush1.msra.mxu0 %v3188
        %3262 = vmatprep.subr.mxu0 %v3187
        %3263 = vmatpush1.msra.mxu0 %v3189
        %3264 = vmatprep.subr.mxu0 %v3205
        %3265 = vmatpush1.msra.mxu0 %v3207
        %3266 = vmatprep.subr.mxu0 %v3206
        %3267 = vmatpush1.msra.mxu0 %v3208
        %3268 = vmatprep.subr.mxu0 %v3224
        %3269 = vmatpush1.msra.mxu0 %v3226
        %3270 = vmatprep.subr.mxu0 %v3225
        %3271 = vmatpush1.msra.mxu0 %v3227
        %3272 = vmatprep.subr.mxu0 0.0
        %3273 = vmatpush1.msra.mxu0 0.0
        %3274 = vmatprep.subr.mxu0 0.0
        %3275 = vmatpush1.msra.mxu0 0.0
        %3276 = vmatprep.subr.mxu0 0.0
        %3277 = vmatpush1.msra.mxu0 0.0
        %3278 = vmatprep.subr.mxu0 0.0
        %3279 = vmatpush1.msra.mxu0 0.0
        %3280 = vmatprep.subr.mxu0 0.0
        %3281 = vmatpush1.msra.mxu0 0.0
        %3282 = vmatprep.subr.mxu0 0.0
        %3283 = vmatpush1.msra.mxu0 0.0
        %3284 = vmatprep.subr.mxu0 0.0
        %3285 = vmatpush1.msra.mxu0 0.0
        %3286 = vmatprep.subr.mxu0 0.0
        %3287 = vmatpush1.msra.mxu0 0.0
        %3288 = vmatprep.subr.mxu0 0.0
        %3289 = vmatpush1.msra.mxu0 0.0
        %3290 = vmatprep.subr.mxu0 0.0
        %3291 = vmatpush1.msra.mxu0 0.0
        %3292 = vmatprep.subr.mxu0 0.0
        %3293 = vmatpush1.msra.mxu0 0.0
        %3294 = vmatprep.subr.mxu0 0.0
        %3295 = vmatpush1.msra.mxu0 0.0
        %3296 = vmatprep.subr.mxu0 0.0
        %3297 = vmatpush1.msra.mxu0 0.0
        %3298 = vmatprep.subr.mxu0 0.0
        %3299 = vmatpush1.msra.mxu0 0.0
        %3300 = vmatprep.mubr.f32.mxu0 %v3234
        %3301 = vmatmul.mubr.f32.gmra.mrb[0].mxu0 %v3230
        %v3302 = vpop.f32.mrb[0].mxu0
        %v3303 = vadd.f32 0.0, %v3302
        %v3304 = vpop.f32.mrb[0].mxu0
        %v3305 = vadd.f32 0.0, %v3304
        %3306 = vdwg.mxu0
        %3307 = vmatprep.subr.mxu0 0.0
        %3308 = vmatpush1.msra.mxu0 %v3093
        %3309 = vmatprep.subr.mxu0 0.0
        %3310 = vmatpush1.msra.mxu0 %v3094
        %3311 = vmatprep.subr.mxu0 0.0
        %3312 = vmatpush1.msra.mxu0 %v3112
        %3313 = vmatprep.subr.mxu0 0.0
        %3314 = vmatpush1.msra.mxu0 %v3113
        %3315 = vmatprep.subr.mxu0 0.0
        %3316 = vmatpush1.msra.mxu0 %v3131
        %3317 = vmatprep.subr.mxu0 0.0
        %3318 = vmatpush1.msra.mxu0 %v3132
        %3319 = vmatprep.subr.mxu0 0.0
        %3320 = vmatpush1.msra.mxu0 %v3149
        %3321 = vmatprep.subr.mxu0 0.0
        %3322 = vmatpush1.msra.mxu0 %v3150
        %3323 = vmatprep.subr.mxu0 0.0
        %3324 = vmatpush1.msra.mxu0 %v3072
        %3325 = vmatprep.subr.mxu0 0.0
        %3326 = vmatpush1.msra.mxu0 %v3077
        %3327 = vmatprep.subr.mxu0 0.0
        %3328 = vmatpush1.msra.mxu0 %v3171
        %3329 = vmatprep.subr.mxu0 0.0
        %3330 = vmatpush1.msra.mxu0 %v3172
        %3331 = vmatprep.subr.mxu0 0.0
        %3332 = vmatpush1.msra.mxu0 %v3190
        %3333 = vmatprep.subr.mxu0 0.0
        %3334 = vmatpush1.msra.mxu0 %v3191
        %3335 = vmatprep.subr.mxu0 0.0
        %3336 = vmatpush1.msra.mxu0 %v3209
        %3337 = vmatprep.subr.mxu0 0.0
        %3338 = vmatpush1.msra.mxu0 %v3210
        %3339 = vmatprep.subr.mxu0 0.0
        %3340 = vmatpush1.msra.mxu0 %v3228
        %3341 = vmatprep.subr.mxu0 0.0
        %3342 = vmatpush1.msra.mxu0 %v3229
        %3343 = vmatprep.subr.mxu0 0.0
        %3344 = vmatpush1.msra.mxu0 0.0
        %3345 = vmatprep.subr.mxu0 0.0
        %3346 = vmatpush1.msra.mxu0 0.0
        %3347 = vmatprep.subr.mxu0 0.0
        %3348 = vmatpush1.msra.mxu0 0.0
        %3349 = vmatprep.subr.mxu0 0.0
        %3350 = vmatpush1.msra.mxu0 0.0
        %3351 = vmatprep.subr.mxu0 0.0
        %3352 = vmatpush1.msra.mxu0 0.0
        %3353 = vmatprep.subr.mxu0 0.0
        %3354 = vmatpush1.msra.mxu0 0.0
        %3355 = vmatprep.subr.mxu0 0.0
        %3356 = vmatpush1.msra.mxu0 0.0
        %3357 = vmatprep.subr.mxu0 0.0
        %3358 = vmatpush1.msra.mxu0 0.0
        %3359 = vmatprep.subr.mxu0 0.0
        %3360 = vmatpush1.msra.mxu0 0.0
        %3361 = vmatprep.subr.mxu0 0.0
        %3362 = vmatpush1.msra.mxu0 0.0
        %3363 = vmatprep.subr.mxu0 0.0
        %3364 = vmatpush1.msra.mxu0 0.0
        %3365 = vmatprep.subr.mxu0 0.0
        %3366 = vmatpush1.msra.mxu0 0.0
        %3367 = vmatprep.subr.mxu0 0.0
        %3368 = vmatpush1.msra.mxu0 0.0
        %3369 = vmatprep.subr.mxu0 0.0
        %3370 = vmatpush1.msra.mxu0 0.0
        %3371 = vmatprep.mubr.f32.mxu0 %v3234
        %3372 = vmatmul.mubr.f32.gmra.mrb[0].mxu0 %v3230
        %v3373 = vpop.f32.mrb[0].mxu0
        %v3374 = vadd.f32 0.0, %v3373
        %v3375 = vpop.f32.mrb[0].mxu0
        %3376 = vdwg.mxu0
        %v3377 = vld [vmem:[#allocation10] sm:$0xff]
        %v3378 = vld [vmem:[#allocation10 + $0x8] sm:$0xff]
        %v3379 = vld [vmem:[#allocation10 + $0x10] sm:$0xff]
        %v3380 = vld [vmem:[#allocation10 + $0x18] sm:$0xff]
        %v3381 = vld [vmem:[#allocation10 + $0x20] sm:$0xff]
        %v3382 = vld [vmem:[#allocation10 + $0x28] sm:$0xff]
        %v3383 = vld [vmem:[#allocation10 + $0x30] sm:$0xff]
        %v3384 = vld [vmem:[#allocation10 + $0x38] sm:$0xff]
        %v3385 = vld [vmem:[#allocation10 + $0x40] sm:$0xff]
        %v3386 = vld [vmem:[#allocation10 + $0x48] sm:$0xff]
        %v3387 = vld [vmem:[#allocation10 + $0x50] sm:$0xff]
        %v3388 = vld [vmem:[#allocation10 + $0x58] sm:$0xff]
        %v3389 = vld [vmem:[#allocation10 + $0x60] sm:$0xff]
        %v3390 = vld [vmem:[#allocation10 + $0x68] sm:$0xff]
        %v3391 = vld [vmem:[#allocation10 + $0x70] sm:$0xff]
        %v3392 = vld [vmem:[#allocation10 + $0x78] sm:$0xff]
        %v3393 = vld [vmem:[#allocation10 + $0x80] sm:$0xff]
        %v3394 = vld [vmem:[#allocation10 + $0x88] sm:$0xff]
        %v3395 = vld [vmem:[#allocation10 + $0x90] sm:$0xff]
        %v3396 = vld [vmem:[#allocation10 + $0x98] sm:$0xff]
        %v3397 = vld [vmem:[#allocation10 + $0xa0] sm:$0xff]
        %v3398 = vld [vmem:[#allocation10 + $0xa8] sm:$0xff]
        %v3399 = vld [vmem:[#allocation10 + $0xb0] sm:$0xff]
        %v3400 = vld [vmem:[#allocation10 + $0xb8] sm:$0xff]
        %v3401 = vld [vmem:[#allocation10 + $0xc0] sm:$0xff]
        %v3402 = vld [vmem:[#allocation10 + $0xc8] sm:$0xff]
        %v3403 = vld [vmem:[#allocation10 + $0xd0] sm:$0xff]
        %v3404 = vld [vmem:[#allocation10 + $0xd8] sm:$0xff]
        %v3405 = vld [vmem:[#allocation10 + $0xe0] sm:$0xff]
        %v3406 = vld [vmem:[#allocation10 + $0xe8] sm:$0xff]
        %v3407 = vld [vmem:[#allocation10 + $0xf0] sm:$0xff]
        %v3408 = vld [vmem:[#allocation10 + $0xf8] sm:$0xff]
        %v3409 = vld [vmem:[#allocation10 + $0x100] sm:$0xff]
        %v3410 = vld [vmem:[#allocation10 + $0x108] sm:$0xff]
        %v3411 = vld [vmem:[#allocation10 + $0x110] sm:$0xff]
        %v3412 = vld [vmem:[#allocation10 + $0x118] sm:$0xff]
        %v3413 = vld [vmem:[#allocation10 + $0x120] sm:$0xff]
        %v3414 = vld [vmem:[#allocation10 + $0x128] sm:$0xff]
        %v3415 = vld [vmem:[#allocation10 + $0x130] sm:$0xff]
        %v3416 = vld [vmem:[#allocation10 + $0x138] sm:$0xff]
        %v3417 = vld [vmem:[#allocation10 + $0x140] sm:$0xff]
        %v3418 = vld [vmem:[#allocation10 + $0x148] sm:$0xff]
        %v3419 = vld [vmem:[#allocation10 + $0x150] sm:$0xff]
        %v3420 = vld [vmem:[#allocation10 + $0x158] sm:$0xff]
        %v3421 = vld [vmem:[#allocation10 + $0x160] sm:$0xff]
        %v3422 = vld [vmem:[#allocation10 + $0x168] sm:$0xff]
        %v3423 = vld [vmem:[#allocation10 + $0x170] sm:$0xff]
        %v3424 = vld [vmem:[#allocation10 + $0x178] sm:$0xff]
        %v3425 = vld [vmem:[#allocation10 + $0x180] sm:$0xff]
        %v3426 = vld [vmem:[#allocation10 + $0x188] sm:$0xff]
        %v3427 = vld [vmem:[#allocation10 + $0x190] sm:$0xff]
        %v3428 = vld [vmem:[#allocation10 + $0x198] sm:$0xff]
        %v3429 = vld [vmem:[#allocation10 + $0x1a0] sm:$0xff]
        %v3430 = vld [vmem:[#allocation10 + $0x1a8] sm:$0xff]
        %v3431 = vld [vmem:[#allocation10 + $0x1b0] sm:$0xff]
        %v3432 = vld [vmem:[#allocation10 + $0x1b8] sm:$0xff]
        %v3433 = vld [vmem:[#allocation10 + $0x1c0] sm:$0xff]
        %v3434 = vld [vmem:[#allocation10 + $0x1c8] sm:$0xff]
        %v3435 = vld [vmem:[#allocation10 + $0x1d0] sm:$0xff]
        %v3436 = vld [vmem:[#allocation10 + $0x1d8] sm:$0xff]
        %v3437 = vld [vmem:[#allocation10 + $0x1e0] sm:$0xff]
        %v3438 = vld [vmem:[#allocation10 + $0x1e8] sm:$0xff]
        %v3439 = vld [vmem:[#allocation10 + $0x1f0] sm:$0xff]
        %v3440 = vld [vmem:[#allocation10 + $0x1f8] sm:$0xff]
        %v3441 = vld [vmem:[#allocation10 + $0x200] sm:$0xff]
        %v3442 = vld [vmem:[#allocation10 + $0x208] sm:$0xff]
        %v3443 = vld [vmem:[#allocation10 + $0x210] sm:$0xff]
        %v3444 = vld [vmem:[#allocation10 + $0x218] sm:$0xff]
        %v3445 = vld [vmem:[#allocation10 + $0x220] sm:$0xff]
        %v3446 = vld [vmem:[#allocation10 + $0x228] sm:$0xff]
        %v3447 = vld [vmem:[#allocation10 + $0x230] sm:$0xff]
        %v3448 = vld [vmem:[#allocation10 + $0x238] sm:$0xff]
        %v3449 = vld [vmem:[#allocation10 + $0x240] sm:$0xff]
        %v3450 = vld [vmem:[#allocation10 + $0x248] sm:$0xff]
        %v3451 = vld [vmem:[#allocation10 + $0x250] sm:$0xff]
        %v3452 = vld [vmem:[#allocation10 + $0x258] sm:$0xff]
        %v3453 = vld [vmem:[#allocation10 + $0x260] sm:$0xff]
        %v3454 = vld [vmem:[#allocation10 + $0x268] sm:$0xff]
        %v3455 = vld [vmem:[#allocation10 + $0x270] sm:$0xff]
        %v3456 = vld [vmem:[#allocation10 + $0x278] sm:$0xff]
        %v3457 = vld [vmem:[#allocation10 + $0x280] sm:$0xff]
        %v3458 = vld [vmem:[#allocation10 + $0x288] sm:$0xff]
        %v3459 = vld [vmem:[#allocation10 + $0x290] sm:$0xff]
        %v3460 = vld [vmem:[#allocation10 + $0x298] sm:$0xff]
        %v3461 = vld [vmem:[#allocation10 + $0x2a0] sm:$0xff]
        %v3462 = vld [vmem:[#allocation10 + $0x2a8] sm:$0xff]
        %v3463 = vld [vmem:[#allocation10 + $0x2b0] sm:$0xff]
        %v3464 = vld [vmem:[#allocation10 + $0x2b8] sm:$0xff]
        %v3465 = vld [vmem:[#allocation10 + $0x2c0] sm:$0xff]
        %v3466 = vld [vmem:[#allocation10 + $0x2c8] sm:$0xff]
        %v3467 = vld [vmem:[#allocation10 + $0x2d0] sm:$0xff]
        %v3468 = vld [vmem:[#allocation10 + $0x2d8] sm:$0xff]
        %v3469 = vld [vmem:[#allocation10 + $0x2e0] sm:$0xff]
        %v3470 = vld [vmem:[#allocation10 + $0x2e8] sm:$0xff]
        %v3471 = vld [vmem:[#allocation10 + $0x2f0] sm:$0xff]
        %v3472 = vld [vmem:[#allocation10 + $0x2f8] sm:$0xff]
        %v3473 = vld [vmem:[%s14] sm:$0x7]
        %3475 = vset.pattern.permute.xlu0 0
        %3476 = vperm.xlu0 %3475, %v3473
        %v3477 = vpop.permute.xlu0 %3476
        %3479 = vmatprep.subr.mxu0 %v3378
        %3480 = vmatpush1.msra.mxu0 %v3377
        %3481 = vmatprep.subr.mxu0 %v3380
        %3482 = vmatpush1.msra.mxu0 %v3379
        %3483 = vmatprep.subr.mxu0 %v3382
        %3484 = vmatpush1.msra.mxu0 %v3381
        %3485 = vmatprep.subr.mxu0 %v3384
        %3486 = vmatpush1.msra.mxu0 %v3383
        %3487 = vmatprep.subr.mxu0 %v3386
        %3488 = vmatpush1.msra.mxu0 %v3385
        %3489 = vmatprep.subr.mxu0 %v3388
        %3490 = vmatpush1.msra.mxu0 %v3387
        %3491 = vmatprep.subr.mxu0 %v3390
        %3492 = vmatpush1.msra.mxu0 %v3389
        %3493 = vmatprep.subr.mxu0 %v3392
        %3494 = vmatpush1.msra.mxu0 %v3391
        %3495 = vmatprep.subr.mxu0 %v3394
        %3496 = vmatpush1.msra.mxu0 %v3393
        %3497 = vmatprep.subr.mxu0 %v3396
        %3498 = vmatpush1.msra.mxu0 %v3395
        %3499 = vmatprep.subr.mxu0 %v3398
        %3500 = vmatpush1.msra.mxu0 %v3397
        %3501 = vmatprep.subr.mxu0 %v3400
        %3502 = vmatpush1.msra.mxu0 %v3399
        %3503 = vmatprep.subr.mxu0 %v3402
        %3504 = vmatpush1.msra.mxu0 %v3401
        %3505 = vmatprep.subr.mxu0 %v3404
        %3506 = vmatpush1.msra.mxu0 %v3403
        %3507 = vmatprep.subr.mxu0 %v3406
        %3508 = vmatpush1.msra.mxu0 %v3405
        %3509 = vmatprep.subr.mxu0 %v3408
        %3510 = vmatpush1.msra.mxu0 %v3407
        %3511 = vmatprep.subr.mxu0 %v3410
        %3512 = vmatpush1.msra.mxu0 %v3409
        %3513 = vmatprep.subr.mxu0 %v3412
        %3514 = vmatpush1.msra.mxu0 %v3411
        %3515 = vmatprep.subr.mxu0 %v3414
        %3516 = vmatpush1.msra.mxu0 %v3413
        %3517 = vmatprep.subr.mxu0 %v3416
        %3518 = vmatpush1.msra.mxu0 %v3415
        %3519 = vmatprep.subr.mxu0 %v3418
        %3520 = vmatpush1.msra.mxu0 %v3417
        %3521 = vmatprep.subr.mxu0 %v3420
        %3522 = vmatpush1.msra.mxu0 %v3419
        %3523 = vmatprep.subr.mxu0 %v3422
        %3524 = vmatpush1.msra.mxu0 %v3421
        %3525 = vmatprep.subr.mxu0 %v3424
        %3526 = vmatpush1.msra.mxu0 %v3423
        %3527 = vmatprep.subr.mxu0 %v3426
        %3528 = vmatpush1.msra.mxu0 %v3425
        %3529 = vmatprep.subr.mxu0 %v3428
        %3530 = vmatpush1.msra.mxu0 %v3427
        %3531 = vmatprep.subr.mxu0 %v3430
        %3532 = vmatpush1.msra.mxu0 %v3429
        %3533 = vmatprep.subr.mxu0 %v3432
        %3534 = vmatpush1.msra.mxu0 %v3431
        %3535 = vmatprep.subr.mxu0 %v3434
        %3536 = vmatpush1.msra.mxu0 %v3433
        %3537 = vmatprep.subr.mxu0 %v3436
        %3538 = vmatpush1.msra.mxu0 %v3435
        %3539 = vmatprep.subr.mxu0 %v3438
        %3540 = vmatpush1.msra.mxu0 %v3437
        %3541 = vmatprep.subr.mxu0 %v3440
        %3542 = vmatpush1.msra.mxu0 %v3439
        %3543 = vmatprep.mubr.f32.mxu0 %v3305
        %3544 = vmatmul.mubr.f32.gmra.mrb[0].mxu0 %v3303
        %v3545 = vpop.f32.mrb[0].mxu0
        %v3546 = vadd.f32 %v3477, %v3545
        %v3547 = vpop.f32.mrb[0].mxu0
        %v3548 = vadd.f32 %v3477, %v3547
        %3549 = vdwg.mxu0
        %3550 = vmatprep.subr.mxu0 %v3442
        %3551 = vmatpush1.msra.mxu0 %v3441
        %3552 = vmatprep.subr.mxu0 %v3444
        %3553 = vmatpush1.msra.mxu0 %v3443
        %3554 = vmatprep.subr.mxu0 %v3446
        %3555 = vmatpush1.msra.mxu0 %v3445
        %3556 = vmatprep.subr.mxu0 %v3448
        %3557 = vmatpush1.msra.mxu0 %v3447
        %3558 = vmatprep.subr.mxu0 %v3450
        %3559 = vmatpush1.msra.mxu0 %v3449
        %3560 = vmatprep.subr.mxu0 %v3452
        %3561 = vmatpush1.msra.mxu0 %v3451
        %3562 = vmatprep.subr.mxu0 %v3454
        %3563 = vmatpush1.msra.mxu0 %v3453
        %3564 = vmatprep.subr.mxu0 %v3456
        %3565 = vmatpush1.msra.mxu0 %v3455
        %3566 = vmatprep.subr.mxu0 %v3458
        %3567 = vmatpush1.msra.mxu0 %v3457
        %3568 = vmatprep.subr.mxu0 %v3460
        %3569 = vmatpush1.msra.mxu0 %v3459
        %3570 = vmatprep.subr.mxu0 %v3462
        %3571 = vmatpush1.msra.mxu0 %v3461
        %3572 = vmatprep.subr.mxu0 %v3464
        %3573 = vmatpush1.msra.mxu0 %v3463
        %3574 = vmatprep.subr.mxu0 %v3466
        %3575 = vmatpush1.msra.mxu0 %v3465
        %3576 = vmatprep.subr.mxu0 %v3468
        %3577 = vmatpush1.msra.mxu0 %v3467
        %3578 = vmatprep.subr.mxu0 %v3470
        %3579 = vmatpush1.msra.mxu0 %v3469
        %3580 = vmatprep.subr.mxu0 %v3472
        %3581 = vmatpush1.msra.mxu0 %v3471
        %3582 = vmatprep.subr.mxu0 0.0
        %3583 = vmatpush1.msra.mxu0 0.0
        %3584 = vmatprep.subr.mxu0 0.0
        %3585 = vmatpush1.msra.mxu0 0.0
        %3586 = vmatprep.subr.mxu0 0.0
        %3587 = vmatpush1.msra.mxu0 0.0
        %3588 = vmatprep.subr.mxu0 0.0
        %3589 = vmatpush1.msra.mxu0 0.0
        %3590 = vmatprep.subr.mxu0 0.0
        %3591 = vmatpush1.msra.mxu0 0.0
        %3592 = vmatprep.subr.mxu0 0.0
        %3593 = vmatpush1.msra.mxu0 0.0
        %3594 = vmatprep.subr.mxu0 0.0
        %3595 = vmatpush1.msra.mxu0 0.0
        %3596 = vmatprep.subr.mxu0 0.0
        %3597 = vmatpush1.msra.mxu0 0.0
        %3598 = vmatprep.subr.mxu0 0.0
        %3599 = vmatpush1.msra.mxu0 0.0
        %3600 = vmatprep.subr.mxu0 0.0
        %3601 = vmatpush1.msra.mxu0 0.0
        %3602 = vmatprep.subr.mxu0 0.0
        %3603 = vmatpush1.msra.mxu0 0.0
        %3604 = vmatprep.subr.mxu0 0.0
        %3605 = vmatpush1.msra.mxu0 0.0
        %3606 = vmatprep.subr.mxu0 0.0
        %3607 = vmatpush1.msra.mxu0 0.0
        %3608 = vmatprep.subr.mxu0 0.0
        %3609 = vmatpush1.msra.mxu0 0.0
        %3610 = vmatprep.subr.mxu0 0.0
        %3611 = vmatpush1.msra.mxu0 0.0
        %3612 = vmatprep.subr.mxu0 0.0
        %3613 = vmatpush1.msra.mxu0 0.0
        %3614 = vmatprep.mubr.f32.mxu0 0.0
        %3615 = vmatmul.mubr.f32.gmra.mrb[0].mxu0 %v3374
        %v3616 = vpop.f32.mrb[0].mxu0
        %v3617 = vadd.f32 %v3546, %v3616
        %v3618 = vpop.f32.mrb[0].mxu0
        %v3619 = vadd.f32 %v3548, %v3618
        %3620 = vdwg.mxu0
        %v3621 = vlaneseq
        %v3622 = vshrl.u32 %v3621, 7
        %vm3623 = vcmp.eq.s32.totalorder %v3622, 0
        %vm3624 = vcmp.gt.f32.partialorder %v3617, 20.0
        %vm3625 = vcmp.gt.f32.partialorder %v3619, 20.0
        %v3626 = vmin.f32 %v3617, 20.0
        %v3627 = vmin.f32 %v3619, 20.0
        %v3628 = vmul.f32 %v3626, 1.442695
        %v3629 = vpow.pop %v3628
        %v3630 = vmul.f32 %v3627, 1.442695
        %v3631 = vpow.pop %v3630
        %v3632 = vadd.f32 %v3629, 1.0
        %v3633 = vadd.f32 %v3631, 1.0
        %v3634 = vlog2.pop %v3632
        %v3635 = vmul.f32 %v3634, 0.6931472
        %v3636 = vlog2.pop %v3633
        %v3637 = vmul.f32 %v3636, 0.6931472
        %v3638 = vsel %vm3624, %v3617, %v3635
        %v3639 = vsel %vm3625, %v3619, %v3637
        %v3640 = vtanh.pop %v3617
        %v3641 = vtanh.pop %v3619
        %v3642 = vsel %vm3623, %v3638, %v3640
        %v3643 = vsel %vm3623, %v3639, %v3641
        %v3646 = vcombine.low %v3642, %v3643
        %3648 = vst [vmem:[%s609] sm:$0x77] %v3646
        %p3649 = scmp.lt.s32.totalorder %s30, 1
        %s3650 = scalar_select %p3649, %s30, 1
        %s3651 = smul.addr %s3650, 2
        %s3652 = smul.addr %s3651, 4
        %s3653 = scalar_lea.vmem %s15, %s3652
        // Predicated region
        $region105: #{cnn_forward_pallas.1} parent=79 // pred_check
          %p3654 = pneg %p378
        $region106: #{cnn_forward_pallas.1} parent=79 // pred_check_branch
          %3656 = sbr.rel (%p3654) target = $region108
        $region107: #{cnn_forward_pallas.1} parent=79 // pred_region
          _
        $region108: #{cnn_forward_pallas.1} parent=79 // pred_fallthru
          _
      $region80: #{cnn_forward_pallas.1} parent=5 // pred_fallthru
        _
      %p3657 = scmp.le.s32.totalorder 2, %s25
      // Predicated region
      $region109: #{cnn_forward_pallas.1} parent=5 // pred_check
        %p3658 = pneg %p3657
      $region110: #{cnn_forward_pallas.1} parent=5 // pred_check_branch
        %3660 = sbr.rel (%p3658) target = $region112
      $region111: #{cnn_forward_pallas.1} parent=5 // pred_region
        %s3661 = ssub.s32 %s25, 2
        // Predicated region
        $region113: #{cnn_forward_pallas.1} parent=111 // pred_check
          %p3662 = pneg %p384
        $region114: #{cnn_forward_pallas.1} parent=111 // pred_check_branch
          %3664 = sbr.rel (%p3662) target = $region116
        $region115: #{cnn_forward_pallas.1} parent=111 // pred_region
          %p3665 = scmp.lt.s32.totalorder %s31, 1
          %s3666 = scalar_select %p3665, %s31, 1
          %s3667 = smul.addr %s3666, 2
          %s3668 = smul.addr %s3667, 4
          %s3669 = scalar_lea.vmem %s15, %s3668
        $region116: #{cnn_forward_pallas.1} parent=111 // pred_fallthru
          _
      $region112: #{cnn_forward_pallas.1} parent=5 // pred_fallthru
        _
    $region6: #{cnn_forward_pallas.1} parent=1 // loop_footer
      %s29 = sadd.s32 1, %s25
    $region7: #{cnn_forward_pallas.1} parent=1 // loop_footer_branch
      %24 = sbr.rel target = $region3
    $region8: #{cnn_forward_pallas.1} parent=1 // loop_exit
      _
    %3670 = vsyncpa [#allocation3], 1
    %s3671 = scalar_lea.sflag [#allocation3], 1
    %3672 = vsyncpa %s3671, 1
    %3673 = vsyncpa [#allocation5], 1
    %3674 = vsyncpa [#allocation8], 1
    %3675 = vsyncpa [#allocation11], 1

</llo_original>
